<compile_context>
chip_gen: v7x
topology: tpu7x:2x2x1
jax: 0.10.0
libtpu: 0.0.40
codegen_flags: <defaults>
</compile_context>

<pallas_src>
import functools
import math

import jax
import jax.numpy as jnp
import numpy as np
from jax import lax
from jax.experimental import pallas as pl
from jax.experimental.pallas import tpu as pltpu

HEAD_PAD = 128   # padded lane width of the dueling-head output slab


# ---------------------------------------------------------------------------
# Fused Pallas kernel: whole network, weights VMEM-resident across batch tiles
# ---------------------------------------------------------------------------
def _fused_forward_kernel(
    xt_ref, xp_ref,
    t_m1, t_c1, t_m2, t_c2, t_w3, t_b3, t_w4, t_b4,
    p_m1, p_c1, p_m2, p_c2, p_w3, p_b3, p_w4, p_b4,
    h_w1t, h_w1p, h_b1, h_w2, h_b2,
    o_ref):
    """One batch tile of the dueling_placenet_TacRot forward, all in VMEM."""

    def aff(x_bf16, w_ref, b_ref):
        # bf16 MXU matmul, f32 accumulation + bias + ReLU, then cast to bf16
        # so the (TB, N) intermediate costs half the VMEM / vld bandwidth.
        y = jnp.dot(x_bf16, w_ref[...], preferred_element_type=jnp.float32)
        y = y + b_ref[...]
        return jnp.maximum(y, 0.0).astype(jnp.bfloat16)

    # --- tactile_ftrs: 2x Conv2Plus1D (folded to dense) + 2 FC layers -------
    t = aff(xt_ref[...].astype(jnp.bfloat16), t_m1, t_c1)   # (TB, 896)
    t = aff(t, t_m2, t_c2)                                   # (TB, 512)
    t = aff(t, t_w3, t_b3)                                   # (TB, 128)
    t = aff(t, t_w4, t_b4)                                   # (TB, 128)

    # --- pose_embedding: 2x Conv2d (dense) + 2 FC layers --------------------
    p = aff(xp_ref[...].astype(jnp.bfloat16), p_m1, p_c1)   # (TB, 128)
    p = aff(p, p_m2, p_c2)                                   # (TB, 256)
    p = aff(p, p_w3, p_b3)                                   # (TB, 128)
    p = aff(p, p_w4, p_b4)                                   # (TB, 128)

    # --- packed dueling head (no concat: two MXU pushes, one accumulator) ---
    h = (jnp.dot(t, h_w1t[...], preferred_element_type=jnp.float32)
         + jnp.dot(p, h_w1p[...], preferred_element_type=jnp.float32)
         + h_b1[...])
    h = jnp.maximum(h, 0.0).astype(jnp.bfloat16)             # (TB, 256)

    # [advantage | value | zeros] in one lane-dense (TB, 128) f32 store.
    o_ref[...] = (jnp.dot(h, h_w2[...], preferred_element_type=jnp.float32)
                  + h_b2[...])


_WEIGHT_ORDER = (
    't_m1', 't_c1', 't_m2', 't_c2', 't_w3', 't_b3', 't_w4', 't_b4',
    'p_m1', 'p_c1', 'p_m2', 'p_c2', 'p_w3', 'p_b3', 'p_w4', 'p_b4',
    'h_w1t', 'h_w1p', 'h_b1', 'h_w2', 'h_b2',
)


def _fused_forward(params, xt, xp):
    B = xt.shape[0]
    # Batch tile: keeps activations small on v7x's 64 MiB VMEM while large
    # enough to hide per-grid-step overhead.  TB == B (full) for small batch.
    TB = B if B <= 256 else 256
    grid = (pl.cdiv(B, TB),)

    weights = [params[k] for k in _WEIGHT_ORDER]

    def batch_spec(a):
        return pl.BlockSpec((TB, a.shape[1]), lambda i: (i, 0))

    def const_spec(a):
        return pl.BlockSpec(a.shape, lambda i: (0,) * a.ndim)

    return pl.pallas_call(
        _fused_forward_kernel,
        out_shape=jax.ShapeDtypeStruct((B, HEAD_PAD), jnp.float32),
        grid=grid,
        in_specs=[batch_spec(xt), batch_spec(xp)]
                 + [const_spec(w) for w in weights],
        out_specs=pl.BlockSpec((TB, HEAD_PAD), lambda i: (i, 0)),
        compiler_params=pltpu.CompilerParams(
            dimension_semantics=("parallel",),
            vmem_limit_bytes=32 * 1024 * 1024),
    )(xt, xp, *weights)


@functools.partial(jax.jit, static_argnames=("n_actions",))
def forward(params, myrmex_data, pose, j_pos=None, j_tau=None, j_vel=None,
            *, n_actions=8):
    """Matches dueling_placenet_TacRot.forward; j_pos/j_tau/j_vel unused."""
    del j_pos, j_tau, j_vel
    B = myrmex_data.shape[0]
    xt = myrmex_data.reshape(B, -1).astype(jnp.float32)   # NCDHW flatten order
    xp = pose.reshape(B, -1).astype(jnp.float32)          # NCHW  flatten order
    av = _fused_forward(params, xt, xp)                    # (B, 128) padded
    adv = av[:, :n_actions]
    val = av[:, n_actions:n_actions + 1]
    # torch: q_values = value + (advantage - advantage.mean())   [GLOBAL mean]
    return val + (adv - jnp.mean(adv))


# ---------------------------------------------------------------------------
# Parameter construction (torch layouts -> fused kernel layouts, done ONCE)
# ---------------------------------------------------------------------------
def _conv3d(x, w, b):
    y = lax.conv_general_dilated(
        x, w, window_strides=(1, 1, 1), padding='VALID',
        dimension_numbers=('NCDHW', 'OIDHW', 'NCDHW'))
    return y + b[None, :, None, None, None]


def _conv2d(x, w, b):
    y = lax.conv_general_dilated(
        x, w, window_strides=(1, 1), padding='VALID',
        dimension_numbers=('NCHW', 'OIHW', 'NCHW'))
    return y + b[None, :, None, None]


def _dense_affine(f, n_in):
    """Materialize affine f: (batch, n_in) -> (batch, n_out) as (M, c) with
    f(x) == x @ M + c (conv expressed exactly as a dense map via identity
    probing)."""
    c = f(jnp.zeros((1, n_in), jnp.float32))[0]
    M = f(jnp.eye(n_in, dtype=jnp.float32)) - c[None, :]
    return M, c


def _pad2d(a, rows, cols):
    out = jnp.zeros((rows, cols), a.dtype)
    return out.at[:a.shape[0], :a.shape[1]].set(a)


def _pad1d(v, n):
    out = jnp.zeros((n,), v.dtype)
    return out.at[:v.shape[0]].set(v)


def init_torch_params(key, n_actions, n_timesteps=10):
    """Synthetic params in the torch layouts of dueling_placenet_TacRot
    (sensor_type='plate', size=4, pitch_only=True)."""
    shapes_w = {
        't1a_w': (16, 2, 1, 2, 2),   't1b_w': (16, 16, 5, 1, 1),
        't2a_w': (32, 16, 1, 2, 2),  't2b_w': (32, 32, 3, 1, 1),
        't_fc1_w': (128, 512),       't_fc2_w': (128, 128),
        'p1_w': (16, 1, 5, 1),       'p2_w': (32, 16, 2, 1),
        'p_fc1_w': (128, 160),       'p_fc2_w': (128, 128),
        'a1_w': (128, 256),          'a2_w': (n_actions, 128),
        'v1_w': (128, 256),          'v2_w': (1, 128),
    }
    shapes_b = {
        't1a_b': 16, 't1b_b': 16, 't2a_b': 32, 't2b_b': 32,
        't_fc1_b': 128, 't_fc2_b': 128,
        'p1_b': 16, 'p2_b': 32, 'p_fc1_b': 128, 'p_fc2_b': 128,
        'a1_b': 128, 'a2_b': n_actions, 'v1_b': 128, 'v2_b': 1,
    }
    keys = iter(jax.random.split(key, len(shapes_w) + len(shapes_b)))
    p = {}
    for name, shp in shapes_w.items():
        fan_in = math.prod(shp[1:])
        p[name] = jax.random.normal(next(keys), shp, jnp.float32) / math.sqrt(fan_in)
    for name, n in shapes_b.items():
        p[name] = jax.random.normal(next(keys), (n,), jnp.float32) * 0.01
    return p


def build_kernel_params(tp, n_actions, n_timesteps=10):
    """Fold/repack the torch-layout params into the fused-kernel layout.
    All padding below is with exact zeros, applied consistently across
    consecutive layers, so the math is bit-identical to the unpadded maps."""
    d1 = n_timesteps - 5 + 1            # temporal extent after Conv2Plus1D #1

    def t_block1(xb):                   # Conv2Plus1D(2, 16, spatial=2, temporal=5)
        x = xb.reshape(-1, 2, n_timesteps, 4, 4)
        y = _conv3d(x, tp['t1a_w'], tp['t1a_b'])
        y = _conv3d(y, tp['t1b_w'], tp['t1b_b'])
        return y.reshape(xb.shape[0], -1)

    def t_block2(xb):                   # Conv2Plus1D(16, 32, spatial=2, temporal=3)
        x = xb.reshape(-1, 16, d1, 3, 3)
        y = _conv3d(x, tp['t2a_w'], tp['t2a_b'])
        y = _conv3d(y, tp['t2b_w'], tp['t2b_b'])
        return y.reshape(xb.shape[0], -1)

    def p_block1(xb):                   # Conv2d(1, 16, (5, 1))
        x = xb.reshape(-1, 1, n_timesteps, 1)
        return _conv2d(x, tp['p1_w'], tp['p1_b']).reshape(xb.shape[0], -1)

    def p_block2(xb):                   # Conv2d(16, 32, (2, 1))
        x = xb.reshape(-1, 16, d1, 1)
        return _conv2d(x, tp['p2_w'], tp['p2_b']).reshape(xb.shape[0], -1)

    t_m1, t_c1 = _dense_affine(t_block1, 2 * n_timesteps * 16)   # (320, 864)
    t_m2, t_c2 = _dense_affine(t_block2, 16 * d1 * 9)            # (864, 512)
    p_m1, p_c1 = _dense_affine(p_block1, n_timesteps)            # (10, 96)
    p_m2, p_c2 = _dense_affine(p_block2, 16 * d1)                # (96, 160)

    # --- (8,128)-align lane/contraction dims (exact zero padding) -----------
    t_m1 = _pad2d(t_m1, 320, 896); t_c1 = _pad1d(t_c1, 896)
    t_m2 = _pad2d(t_m2, 896, 512)                       # zero rows for pad cols
    p_m1 = _pad2d(p_m1, 10, 128);  p_c1 = _pad1d(p_c1, 128)
    p_m2 = _pad2d(p_m2, 128, 256); p_c2 = _pad1d(p_c2, 256)
    p_w3 = _pad2d(tp['p_fc1_w'].T, 256, 128)            # (160,128) -> (256,128)

    # --- packed dueling head, split for the concat-free kernel --------------
    A = n_actions
    a1t, a1p = tp['a1_w'].T[:128], tp['a1_w'].T[128:]
    v1t, v1p = tp['v1_w'].T[:128], tp['v1_w'].T[128:]
    h_w1t = jnp.concatenate([a1t, v1t], axis=1)          # (128, 256)
    h_w1p = jnp.concatenate([a1p, v1p], axis=1)          # (128, 256)
    h_b1 = jnp.concatenate([tp['a1_b'], tp['v1_b']])     # (256,)
    h_w2 = jnp.zeros((256, HEAD_PAD), jnp.float32)
    h_w2 = h_w2.at[:128, :A].set(tp['a2_w'].T)           # advantage columns
    h_w2 = h_w2.at[128:, A:A + 1].set(tp['v2_w'].T)      # value column
    h_b2 = jnp.zeros((HEAD_PAD,), jnp.float32)
    h_b2 = h_b2.at[:A].set(tp['a2_b']).at[A].set(tp['v2_b'][0])

    bf = lambda a: a.astype(jnp.bfloat16)
    row = lambda a: a.reshape(1, -1).astype(jnp.float32)
    return {
        't_m1': bf(t_m1), 't_c1': row(t_c1),
        't_m2': bf(t_m2), 't_c2': row(t_c2),
        't_w3': bf(tp['t_fc1_w'].T), 't_b3': row(tp['t_fc1_b']),
        't_w4': bf(tp['t_fc2_w'].T), 't_b4': row(tp['t_fc2_b']),
        'p_m1': bf(p_m1), 'p_c1': row(p_c1),
        'p_m2': bf(p_m2), 'p_c2': row(p_c2),
        'p_w3': bf(p_w3), 'p_b3': row(tp['p_fc1_b']),
        'p_w4': bf(tp['p_fc2_w'].T), 'p_b4': row(tp['p_fc2_b']),
        'h_w1t': bf(h_w1t), 'h_w1p': bf(h_w1p), 'h_b1': row(h_b1),
        'h_w2': bf(h_w2), 'h_b2': row(h_b2),
    }


# ---------------------------------------------------------------------------
# Pure-JAX f32 reference (mirrors the torch module op-for-op) — sanity check
# ---------------------------------------------------------------------------
def reference_forward(tp, myrmex_data, pose):
    relu = jax.nn.relu
    x = _conv3d(myrmex_data, tp['t1a_w'], tp['t1a_b'])
    x = _conv3d(x, tp['t1b_w'], tp['t1b_b'])
    x = relu(x)
    x = _conv3d(x, tp['t2a_w'], tp['t2a_b'])
    x = _conv3d(x, tp['t2b_w'], tp['t2b_b'])
    x = relu(x)
    B = x.shape[0]
    t = x.reshape(B, -1)
    t = relu(t @ tp['t_fc1_w'].T + tp['t_fc1_b'])
    t = relu(t @ tp['t_fc2_w'].T + tp['t_fc2_b'])
    y = relu(_conv2d(pose, tp['p1_w'], tp['p1_b']))
    y = relu(_conv2d(y, tp['p2_w'], tp['p2_b']))
    q = y.reshape(B, -1)
    q = relu(q @ tp['p_fc1_w'].T + tp['p_fc1_b'])
    q = relu(q @ tp['p_fc2_w'].T + tp['p_fc2_b'])
    feat = jnp.concatenate([t, q], axis=1)
    adv = relu(feat @ tp['a1_w'].T + tp['a1_b']) @ tp['a2_w'].T + tp['a2_b']
    val = relu(feat @ tp['v1_w'].T + tp['v1_b']) @ tp['v2_w'].T + tp['v2_b']
    return val + (adv - adv.mean())


if __name__ == "__main__":
    n_actions = 8
    n_timesteps = 10   # implied by Linear(512, 128) / Linear(160, 128)

    key = jax.random.PRNGKey(0)
    k_params, k_m, k_p = jax.random.split(key, 3)
    torch_params = init_torch_params(k_params, n_actions, n_timesteps)
    params = build_kernel_params(torch_params, n_actions, n_timesteps)

    # --- small batch (single grid step) -------------------------------------
    B = 2
    myrmex_data = jax.random.normal(k_m, (B, 2, n_timesteps, 4, 4), jnp.float32)
    pose = jax.random.normal(k_p, (B, 1, n_timesteps, 1), jnp.float32)
    q_values = jax.block_until_ready(
        forward(params, myrmex_data, pose, n_actions=n_actions))
    assert q_values.shape == (B, n_actions)
    assert q_values.dtype == jnp.float32
    q_ref = reference_forward(torch_params, myrmex_data, pose)
    np.testing.assert_allclose(np.asarray(q_values), np.asarray(q_ref),
                               atol=2.5e-1, rtol=0.0)

    # --- larger batch (multi-tile grid; weights stay VMEM-resident) ---------
    B2 = 512
    k_m2, k_p2 = jax.random.split(jax.random.PRNGKey(1), 2)
    myrmex2 = jax.random.normal(k_m2, (B2, 2, n_timesteps, 4, 4), jnp.float32)
    pose2 = jax.random.normal(k_p2, (B2, 1, n_timesteps, 1), jnp.float32)
    q2 = jax.block_until_ready(
        forward(params, myrmex2, pose2, n_actions=n_actions))
    assert q2.shape == (B2, n_actions)
    q2_ref = reference_forward(torch_params, myrmex2, pose2)
    np.testing.assert_allclose(np.asarray(q2), np.asarray(q2_ref),
                               atol=3e-1, rtol=0.0)

    print("KERNEL_OK")
</pallas_src>

<mosaic_0001>
module attributes {stable_mosaic.version = 11 : i64} {
  func.func @_fused_forward_kernel(%arg0: i32, %arg1: memref<2x320xf32, #tpu.memory_space<vmem>>, %arg2: memref<2x10xf32, #tpu.memory_space<vmem>>, %arg3: memref<320x896xbf16, #tpu.memory_space<vmem>>, %arg4: memref<1x896xf32, #tpu.memory_space<vmem>>, %arg5: memref<896x512xbf16, #tpu.memory_space<vmem>>, %arg6: memref<1x512xf32, #tpu.memory_space<vmem>>, %arg7: memref<512x128xbf16, #tpu.memory_space<vmem>>, %arg8: memref<1x128xf32, #tpu.memory_space<vmem>>, %arg9: memref<128x128xbf16, #tpu.memory_space<vmem>>, %arg10: memref<1x128xf32, #tpu.memory_space<vmem>>, %arg11: memref<10x128xbf16, #tpu.memory_space<vmem>>, %arg12: memref<1x128xf32, #tpu.memory_space<vmem>>, %arg13: memref<128x256xbf16, #tpu.memory_space<vmem>>, %arg14: memref<1x256xf32, #tpu.memory_space<vmem>>, %arg15: memref<256x128xbf16, #tpu.memory_space<vmem>>, %arg16: memref<1x128xf32, #tpu.memory_space<vmem>>, %arg17: memref<128x128xbf16, #tpu.memory_space<vmem>>, %arg18: memref<1x128xf32, #tpu.memory_space<vmem>>, %arg19: memref<128x256xbf16, #tpu.memory_space<vmem>>, %arg20: memref<128x256xbf16, #tpu.memory_space<vmem>>, %arg21: memref<1x256xf32, #tpu.memory_space<vmem>>, %arg22: memref<256x128xbf16, #tpu.memory_space<vmem>>, %arg23: memref<1x128xf32, #tpu.memory_space<vmem>>, %arg24: memref<2x128xf32, #tpu.memory_space<vmem>>) attributes {dimension_semantics = [#tpu.dimension_semantics<parallel>], iteration_bounds = array<i64: 1>, scalar_prefetch = 0 : i64, scratch_operands = 0 : i64, tpu.core_type = #tpu.core_type<tc>, window_params = [{transform_indices = @transform_0, window_bounds = array<i64: 2, 320>}, {transform_indices = @transform_1, window_bounds = array<i64: 2, 10>}, {pipeline_mode = #tpu.pipeline_mode<synchronous>, transform_indices = @transform_2, window_bounds = array<i64: 320, 896>}, {pipeline_mode = #tpu.pipeline_mode<synchronous>, transform_indices = @transform_3, window_bounds = array<i64: 1, 896>}, {pipeline_mode = #tpu.pipeline_mode<synchronous>, transform_indices = @transform_4, window_bounds = array<i64: 896, 512>}, {pipeline_mode = #tpu.pipeline_mode<synchronous>, transform_indices = @transform_5, window_bounds = array<i64: 1, 512>}, {pipeline_mode = #tpu.pipeline_mode<synchronous>, transform_indices = @transform_6, window_bounds = array<i64: 512, 128>}, {pipeline_mode = #tpu.pipeline_mode<synchronous>, transform_indices = @transform_7, window_bounds = array<i64: 1, 128>}, {pipeline_mode = #tpu.pipeline_mode<synchronous>, transform_indices = @transform_8, window_bounds = array<i64: 128, 128>}, {pipeline_mode = #tpu.pipeline_mode<synchronous>, transform_indices = @transform_9, window_bounds = array<i64: 1, 128>}, {pipeline_mode = #tpu.pipeline_mode<synchronous>, transform_indices = @transform_10, window_bounds = array<i64: 10, 128>}, {pipeline_mode = #tpu.pipeline_mode<synchronous>, transform_indices = @transform_11, window_bounds = array<i64: 1, 128>}, {pipeline_mode = #tpu.pipeline_mode<synchronous>, transform_indices = @transform_12, window_bounds = array<i64: 128, 256>}, {pipeline_mode = #tpu.pipeline_mode<synchronous>, transform_indices = @transform_13, window_bounds = array<i64: 1, 256>}, {pipeline_mode = #tpu.pipeline_mode<synchronous>, transform_indices = @transform_14, window_bounds = array<i64: 256, 128>}, {pipeline_mode = #tpu.pipeline_mode<synchronous>, transform_indices = @transform_15, window_bounds = array<i64: 1, 128>}, {pipeline_mode = #tpu.pipeline_mode<synchronous>, transform_indices = @transform_16, window_bounds = array<i64: 128, 128>}, {pipeline_mode = #tpu.pipeline_mode<synchronous>, transform_indices = @transform_17, window_bounds = array<i64: 1, 128>}, {pipeline_mode = #tpu.pipeline_mode<synchronous>, transform_indices = @transform_18, window_bounds = array<i64: 128, 256>}, {pipeline_mode = #tpu.pipeline_mode<synchronous>, transform_indices = @transform_19, window_bounds = array<i64: 128, 256>}, {pipeline_mode = #tpu.pipeline_mode<synchronous>, transform_indices = @transform_20, window_bounds = array<i64: 1, 256>}, {pipeline_mode = #tpu.pipeline_mode<synchronous>, transform_indices = @transform_21, window_bounds = array<i64: 256, 128>}, {pipeline_mode = #tpu.pipeline_mode<synchronous>, transform_indices = @transform_22, window_bounds = array<i64: 1, 128>}, {transform_indices = @transform_23, window_bounds = array<i64: 2, 128>}]} {
    %c0 = arith.constant 0 : index
    %c0_0 = arith.constant 0 : index
    %0 = vector.load %arg1[%c0, %c0_0] : memref<2x320xf32, #tpu.memory_space<vmem>>, vector<2x320xf32>
    %1 = arith.truncf %0 : vector<2x320xf32> to vector<2x320xbf16>
    %c0_1 = arith.constant 0 : index
    %c0_2 = arith.constant 0 : index
    %2 = vector.load %arg3[%c0_1, %c0_2] : memref<320x896xbf16, #tpu.memory_space<vmem>>, vector<320x896xbf16>
    %cst = arith.constant dense<0.000000e+00> : vector<2x896xf32>
    %3 = tpu.matmul %1, %2, %cst {dimension_numbers = #tpu.dot_dimension_numbers<[1], [0], [0], [1], [0, 0, 1, 1], [], []>} : vector<2x320xbf16>, vector<320x896xbf16>, vector<2x896xf32> -> vector<2x896xf32>
    %c0_3 = arith.constant 0 : index
    %c0_4 = arith.constant 0 : index
    %4 = vector.load %arg4[%c0_3, %c0_4] : memref<1x896xf32, #tpu.memory_space<vmem>>, vector<1x896xf32>
    %5 = vector.broadcast %4 : vector<1x896xf32> to vector<2x896xf32>
    %6 = arith.addf %3, %5 : vector<2x896xf32>
    %cst_5 = arith.constant 0.000000e+00 : f32
    %7 = vector.broadcast %cst_5 : f32 to vector<2x896xf32>
    %8 = arith.maximumf %6, %7 : vector<2x896xf32>
    %9 = arith.truncf %8 : vector<2x896xf32> to vector<2x896xbf16>
    %c0_6 = arith.constant 0 : index
    %c0_7 = arith.constant 0 : index
    %10 = vector.load %arg5[%c0_6, %c0_7] : memref<896x512xbf16, #tpu.memory_space<vmem>>, vector<896x512xbf16>
    %cst_8 = arith.constant dense<0.000000e+00> : vector<2x512xf32>
    %11 = tpu.matmul %9, %10, %cst_8 {dimension_numbers = #tpu.dot_dimension_numbers<[1], [0], [0], [1], [0, 0, 1, 1], [], []>} : vector<2x896xbf16>, vector<896x512xbf16>, vector<2x512xf32> -> vector<2x512xf32>
    %c0_9 = arith.constant 0 : index
    %c0_10 = arith.constant 0 : index
    %12 = vector.load %arg6[%c0_9, %c0_10] : memref<1x512xf32, #tpu.memory_space<vmem>>, vector<1x512xf32>
    %13 = vector.broadcast %12 : vector<1x512xf32> to vector<2x512xf32>
    %14 = arith.addf %11, %13 : vector<2x512xf32>
    %cst_11 = arith.constant 0.000000e+00 : f32
    %15 = vector.broadcast %cst_11 : f32 to vector<2x512xf32>
    %16 = arith.maximumf %14, %15 : vector<2x512xf32>
    %17 = arith.truncf %16 : vector<2x512xf32> to vector<2x512xbf16>
    %c0_12 = arith.constant 0 : index
    %c0_13 = arith.constant 0 : index
    %18 = vector.load %arg7[%c0_12, %c0_13] : memref<512x128xbf16, #tpu.memory_space<vmem>>, vector<512x128xbf16>
    %cst_14 = arith.constant dense<0.000000e+00> : vector<2x128xf32>
    %19 = tpu.matmul %17, %18, %cst_14 {dimension_numbers = #tpu.dot_dimension_numbers<[1], [0], [0], [1], [0, 0, 1, 1], [], []>} : vector<2x512xbf16>, vector<512x128xbf16>, vector<2x128xf32> -> vector<2x128xf32>
    %c0_15 = arith.constant 0 : index
    %c0_16 = arith.constant 0 : index
    %20 = vector.load %arg8[%c0_15, %c0_16] : memref<1x128xf32, #tpu.memory_space<vmem>>, vector<1x128xf32>
    %21 = vector.broadcast %20 : vector<1x128xf32> to vector<2x128xf32>
    %22 = arith.addf %19, %21 : vector<2x128xf32>
    %cst_17 = arith.constant 0.000000e+00 : f32
    %23 = vector.broadcast %cst_17 : f32 to vector<2x128xf32>
    %24 = arith.maximumf %22, %23 : vector<2x128xf32>
    %25 = arith.truncf %24 : vector<2x128xf32> to vector<2x128xbf16>
    %c0_18 = arith.constant 0 : index
    %c0_19 = arith.constant 0 : index
    %26 = vector.load %arg9[%c0_18, %c0_19] : memref<128x128xbf16, #tpu.memory_space<vmem>>, vector<128x128xbf16>
    %cst_20 = arith.constant dense<0.000000e+00> : vector<2x128xf32>
    %27 = tpu.matmul %25, %26, %cst_20 {dimension_numbers = #tpu.dot_dimension_numbers<[1], [0], [0], [1], [0, 0, 1, 1], [], []>} : vector<2x128xbf16>, vector<128x128xbf16>, vector<2x128xf32> -> vector<2x128xf32>
    %c0_21 = arith.constant 0 : index
    %c0_22 = arith.constant 0 : index
    %28 = vector.load %arg10[%c0_21, %c0_22] : memref<1x128xf32, #tpu.memory_space<vmem>>, vector<1x128xf32>
    %29 = vector.broadcast %28 : vector<1x128xf32> to vector<2x128xf32>
    %30 = arith.addf %27, %29 : vector<2x128xf32>
    %cst_23 = arith.constant 0.000000e+00 : f32
    %31 = vector.broadcast %cst_23 : f32 to vector<2x128xf32>
    %32 = arith.maximumf %30, %31 : vector<2x128xf32>
    %33 = arith.truncf %32 : vector<2x128xf32> to vector<2x128xbf16>
    %c0_24 = arith.constant 0 : index
    %c0_25 = arith.constant 0 : index
    %34 = vector.load %arg2[%c0_24, %c0_25] : memref<2x10xf32, #tpu.memory_space<vmem>>, vector<2x10xf32>
    %35 = arith.truncf %34 : vector<2x10xf32> to vector<2x10xbf16>
    %c0_26 = arith.constant 0 : index
    %c0_27 = arith.constant 0 : index
    %36 = vector.load %arg11[%c0_26, %c0_27] : memref<10x128xbf16, #tpu.memory_space<vmem>>, vector<10x128xbf16>
    %cst_28 = arith.constant dense<0.000000e+00> : vector<2x128xf32>
    %37 = tpu.matmul %35, %36, %cst_28 {dimension_numbers = #tpu.dot_dimension_numbers<[1], [0], [0], [1], [0, 0, 1, 1], [], []>} : vector<2x10xbf16>, vector<10x128xbf16>, vector<2x128xf32> -> vector<2x128xf32>
    %c0_29 = arith.constant 0 : index
    %c0_30 = arith.constant 0 : index
    %38 = vector.load %arg12[%c0_29, %c0_30] : memref<1x128xf32, #tpu.memory_space<vmem>>, vector<1x128xf32>
    %39 = vector.broadcast %38 : vector<1x128xf32> to vector<2x128xf32>
    %40 = arith.addf %37, %39 : vector<2x128xf32>
    %cst_31 = arith.constant 0.000000e+00 : f32
    %41 = vector.broadcast %cst_31 : f32 to vector<2x128xf32>
    %42 = arith.maximumf %40, %41 : vector<2x128xf32>
    %43 = arith.truncf %42 : vector<2x128xf32> to vector<2x128xbf16>
    %c0_32 = arith.constant 0 : index
    %c0_33 = arith.constant 0 : index
    %44 = vector.load %arg13[%c0_32, %c0_33] : memref<128x256xbf16, #tpu.memory_space<vmem>>, vector<128x256xbf16>
    %cst_34 = arith.constant dense<0.000000e+00> : vector<2x256xf32>
    %45 = tpu.matmul %43, %44, %cst_34 {dimension_numbers = #tpu.dot_dimension_numbers<[1], [0], [0], [1], [0, 0, 1, 1], [], []>} : vector<2x128xbf16>, vector<128x256xbf16>, vector<2x256xf32> -> vector<2x256xf32>
    %c0_35 = arith.constant 0 : index
    %c0_36 = arith.constant 0 : index
    %46 = vector.load %arg14[%c0_35, %c0_36] : memref<1x256xf32, #tpu.memory_space<vmem>>, vector<1x256xf32>
    %47 = vector.broadcast %46 : vector<1x256xf32> to vector<2x256xf32>
    %48 = arith.addf %45, %47 : vector<2x256xf32>
    %cst_37 = arith.constant 0.000000e+00 : f32
    %49 = vector.broadcast %cst_37 : f32 to vector<2x256xf32>
    %50 = arith.maximumf %48, %49 : vector<2x256xf32>
    %51 = arith.truncf %50 : vector<2x256xf32> to vector<2x256xbf16>
    %c0_38 = arith.constant 0 : index
    %c0_39 = arith.constant 0 : index
    %52 = vector.load %arg15[%c0_38, %c0_39] : memref<256x128xbf16, #tpu.memory_space<vmem>>, vector<256x128xbf16>
    %cst_40 = arith.constant dense<0.000000e+00> : vector<2x128xf32>
    %53 = tpu.matmul %51, %52, %cst_40 {dimension_numbers = #tpu.dot_dimension_numbers<[1], [0], [0], [1], [0, 0, 1, 1], [], []>} : vector<2x256xbf16>, vector<256x128xbf16>, vector<2x128xf32> -> vector<2x128xf32>
    %c0_41 = arith.constant 0 : index
    %c0_42 = arith.constant 0 : index
    %54 = vector.load %arg16[%c0_41, %c0_42] : memref<1x128xf32, #tpu.memory_space<vmem>>, vector<1x128xf32>
    %55 = vector.broadcast %54 : vector<1x128xf32> to vector<2x128xf32>
    %56 = arith.addf %53, %55 : vector<2x128xf32>
    %cst_43 = arith.constant 0.000000e+00 : f32
    %57 = vector.broadcast %cst_43 : f32 to vector<2x128xf32>
    %58 = arith.maximumf %56, %57 : vector<2x128xf32>
    %59 = arith.truncf %58 : vector<2x128xf32> to vector<2x128xbf16>
    %c0_44 = arith.constant 0 : index
    %c0_45 = arith.constant 0 : index
    %60 = vector.load %arg17[%c0_44, %c0_45] : memref<128x128xbf16, #tpu.memory_space<vmem>>, vector<128x128xbf16>
    %cst_46 = arith.constant dense<0.000000e+00> : vector<2x128xf32>
    %61 = tpu.matmul %59, %60, %cst_46 {dimension_numbers = #tpu.dot_dimension_numbers<[1], [0], [0], [1], [0, 0, 1, 1], [], []>} : vector<2x128xbf16>, vector<128x128xbf16>, vector<2x128xf32> -> vector<2x128xf32>
    %c0_47 = arith.constant 0 : index
    %c0_48 = arith.constant 0 : index
    %62 = vector.load %arg18[%c0_47, %c0_48] : memref<1x128xf32, #tpu.memory_space<vmem>>, vector<1x128xf32>
    %63 = vector.broadcast %62 : vector<1x128xf32> to vector<2x128xf32>
    %64 = arith.addf %61, %63 : vector<2x128xf32>
    %cst_49 = arith.constant 0.000000e+00 : f32
    %65 = vector.broadcast %cst_49 : f32 to vector<2x128xf32>
    %66 = arith.maximumf %64, %65 : vector<2x128xf32>
    %67 = arith.truncf %66 : vector<2x128xf32> to vector<2x128xbf16>
    %c0_50 = arith.constant 0 : index
    %c0_51 = arith.constant 0 : index
    %68 = vector.load %arg19[%c0_50, %c0_51] : memref<128x256xbf16, #tpu.memory_space<vmem>>, vector<128x256xbf16>
    %cst_52 = arith.constant dense<0.000000e+00> : vector<2x256xf32>
    %69 = tpu.matmul %33, %68, %cst_52 {dimension_numbers = #tpu.dot_dimension_numbers<[1], [0], [0], [1], [0, 0, 1, 1], [], []>} : vector<2x128xbf16>, vector<128x256xbf16>, vector<2x256xf32> -> vector<2x256xf32>
    %c0_53 = arith.constant 0 : index
    %c0_54 = arith.constant 0 : index
    %70 = vector.load %arg20[%c0_53, %c0_54] : memref<128x256xbf16, #tpu.memory_space<vmem>>, vector<128x256xbf16>
    %cst_55 = arith.constant dense<0.000000e+00> : vector<2x256xf32>
    %71 = tpu.matmul %67, %70, %cst_55 {dimension_numbers = #tpu.dot_dimension_numbers<[1], [0], [0], [1], [0, 0, 1, 1], [], []>} : vector<2x128xbf16>, vector<128x256xbf16>, vector<2x256xf32> -> vector<2x256xf32>
    %72 = arith.addf %69, %71 : vector<2x256xf32>
    %c0_56 = arith.constant 0 : index
    %c0_57 = arith.constant 0 : index
    %73 = vector.load %arg21[%c0_56, %c0_57] : memref<1x256xf32, #tpu.memory_space<vmem>>, vector<1x256xf32>
    %74 = vector.broadcast %73 : vector<1x256xf32> to vector<2x256xf32>
    %75 = arith.addf %72, %74 : vector<2x256xf32>
    %cst_58 = arith.constant 0.000000e+00 : f32
    %76 = vector.broadcast %cst_58 : f32 to vector<2x256xf32>
    %77 = arith.maximumf %75, %76 : vector<2x256xf32>
    %78 = arith.truncf %77 : vector<2x256xf32> to vector<2x256xbf16>
    %c0_59 = arith.constant 0 : index
    %c0_60 = arith.constant 0 : index
    %79 = vector.load %arg22[%c0_59, %c0_60] : memref<256x128xbf16, #tpu.memory_space<vmem>>, vector<256x128xbf16>
    %cst_61 = arith.constant dense<0.000000e+00> : vector<2x128xf32>
    %80 = tpu.matmul %78, %79, %cst_61 {dimension_numbers = #tpu.dot_dimension_numbers<[1], [0], [0], [1], [0, 0, 1, 1], [], []>} : vector<2x256xbf16>, vector<256x128xbf16>, vector<2x128xf32> -> vector<2x128xf32>
    %c0_62 = arith.constant 0 : index
    %c0_63 = arith.constant 0 : index
    %81 = vector.load %arg23[%c0_62, %c0_63] : memref<1x128xf32, #tpu.memory_space<vmem>>, vector<1x128xf32>
    %82 = vector.broadcast %81 : vector<1x128xf32> to vector<2x128xf32>
    %83 = arith.addf %80, %82 : vector<2x128xf32>
    %c0_64 = arith.constant 0 : index
    %c0_65 = arith.constant 0 : index
    %84 = vector.load %arg24[%c0_64, %c0_65] : memref<2x128xf32, #tpu.memory_space<vmem>>, vector<2x128xf32>
    tpu.vector_store %arg24[%c0_64, %c0_65], %83 {strides = array<i32>} : memref<2x128xf32, #tpu.memory_space<vmem>>, vector<2x128xf32>,
    return
  }
  func.func @transform_0(%arg0: i32) -> (i32, i32) {
    %c0_i32 = arith.constant 0 : i32
    %c0_i32_0 = arith.constant 0 : i32
    return %arg0, %c0_i32 : i32, i32
  }
  func.func @transform_1(%arg0: i32) -> (i32, i32) {
    %c0_i32 = arith.constant 0 : i32
    %c0_i32_0 = arith.constant 0 : i32
    return %arg0, %c0_i32 : i32, i32
  }
  func.func @transform_2(%arg0: i32) -> (i32, i32) {
    %c0_i32 = arith.constant 0 : i32
    %c0_i32_0 = arith.constant 0 : i32
    %c0_i32_1 = arith.constant 0 : i32
    return %c0_i32, %c0_i32_0 : i32, i32
  }
  func.func @transform_3(%arg0: i32) -> (i32, i32) {
    %c0_i32 = arith.constant 0 : i32
    %c0_i32_0 = arith.constant 0 : i32
    %c0_i32_1 = arith.constant 0 : i32
    return %c0_i32, %c0_i32_0 : i32, i32
  }
  func.func @transform_4(%arg0: i32) -> (i32, i32) {
    %c0_i32 = arith.constant 0 : i32
    %c0_i32_0 = arith.constant 0 : i32
    %c0_i32_1 = arith.constant 0 : i32
    return %c0_i32, %c0_i32_0 : i32, i32
  }
  func.func @transform_5(%arg0: i32) -> (i32, i32) {
    %c0_i32 = arith.constant 0 : i32
    %c0_i32_0 = arith.constant 0 : i32
    %c0_i32_1 = arith.constant 0 : i32
    return %c0_i32, %c0_i32_0 : i32, i32
  }
  func.func @transform_6(%arg0: i32) -> (i32, i32) {
    %c0_i32 = arith.constant 0 : i32
    %c0_i32_0 = arith.constant 0 : i32
    %c0_i32_1 = arith.constant 0 : i32
    return %c0_i32, %c0_i32_0 : i32, i32
  }
  func.func @transform_7(%arg0: i32) -> (i32, i32) {
    %c0_i32 = arith.constant 0 : i32
    %c0_i32_0 = arith.constant 0 : i32
    %c0_i32_1 = arith.constant 0 : i32
    return %c0_i32, %c0_i32_0 : i32, i32
  }
  func.func @transform_8(%arg0: i32) -> (i32, i32) {
    %c0_i32 = arith.constant 0 : i32
    %c0_i32_0 = arith.constant 0 : i32
    %c0_i32_1 = arith.constant 0 : i32
    return %c0_i32, %c0_i32_0 : i32, i32
  }
  func.func @transform_9(%arg0: i32) -> (i32, i32) {
    %c0_i32 = arith.constant 0 : i32
    %c0_i32_0 = arith.constant 0 : i32
    %c0_i32_1 = arith.constant 0 : i32
    return %c0_i32, %c0_i32_0 : i32, i32
  }
  func.func @transform_10(%arg0: i32) -> (i32, i32) {
    %c0_i32 = arith.constant 0 : i32
    %c0_i32_0 = arith.constant 0 : i32
    %c0_i32_1 = arith.constant 0 : i32
    return %c0_i32, %c0_i32_0 : i32, i32
  }
  func.func @transform_11(%arg0: i32) -> (i32, i32) {
    %c0_i32 = arith.constant 0 : i32
    %c0_i32_0 = arith.constant 0 : i32
    %c0_i32_1 = arith.constant 0 : i32
    return %c0_i32, %c0_i32_0 : i32, i32
  }
  func.func @transform_12(%arg0: i32) -> (i32, i32) {
    %c0_i32 = arith.constant 0 : i32
    %c0_i32_0 = arith.constant 0 : i32
    %c0_i32_1 = arith.constant 0 : i32
    return %c0_i32, %c0_i32_0 : i32, i32
  }
  func.func @transform_13(%arg0: i32) -> (i32, i32) {
    %c0_i32 = arith.constant 0 : i32
    %c0_i32_0 = arith.constant 0 : i32
    %c0_i32_1 = arith.constant 0 : i32
    return %c0_i32, %c0_i32_0 : i32, i32
  }
  func.func @transform_14(%arg0: i32) -> (i32, i32) {
    %c0_i32 = arith.constant 0 : i32
    %c0_i32_0 = arith.constant 0 : i32
    %c0_i32_1 = arith.constant 0 : i32
    return %c0_i32, %c0_i32_0 : i32, i32
  }
  func.func @transform_15(%arg0: i32) -> (i32, i32) {
    %c0_i32 = arith.constant 0 : i32
    %c0_i32_0 = arith.constant 0 : i32
    %c0_i32_1 = arith.constant 0 : i32
    return %c0_i32, %c0_i32_0 : i32, i32
  }
  func.func @transform_16(%arg0: i32) -> (i32, i32) {
    %c0_i32 = arith.constant 0 : i32
    %c0_i32_0 = arith.constant 0 : i32
    %c0_i32_1 = arith.constant 0 : i32
    return %c0_i32, %c0_i32_0 : i32, i32
  }
  func.func @transform_17(%arg0: i32) -> (i32, i32) {
    %c0_i32 = arith.constant 0 : i32
    %c0_i32_0 = arith.constant 0 : i32
    %c0_i32_1 = arith.constant 0 : i32
    return %c0_i32, %c0_i32_0 : i32, i32
  }
  func.func @transform_18(%arg0: i32) -> (i32, i32) {
    %c0_i32 = arith.constant 0 : i32
    %c0_i32_0 = arith.constant 0 : i32
    %c0_i32_1 = arith.constant 0 : i32
    return %c0_i32, %c0_i32_0 : i32, i32
  }
  func.func @transform_19(%arg0: i32) -> (i32, i32) {
    %c0_i32 = arith.constant 0 : i32
    %c0_i32_0 = arith.constant 0 : i32
    %c0_i32_1 = arith.constant 0 : i32
    return %c0_i32, %c0_i32_0 : i32, i32
  }
  func.func @transform_20(%arg0: i32) -> (i32, i32) {
    %c0_i32 = arith.constant 0 : i32
    %c0_i32_0 = arith.constant 0 : i32
    %c0_i32_1 = arith.constant 0 : i32
    return %c0_i32, %c0_i32_0 : i32, i32
  }
  func.func @transform_21(%arg0: i32) -> (i32, i32) {
    %c0_i32 = arith.constant 0 : i32
    %c0_i32_0 = arith.constant 0 : i32
    %c0_i32_1 = arith.constant 0 : i32
    return %c0_i32, %c0_i32_0 : i32, i32
  }
  func.func @transform_22(%arg0: i32) -> (i32, i32) {
    %c0_i32 = arith.constant 0 : i32
    %c0_i32_0 = arith.constant 0 : i32
    %c0_i32_1 = arith.constant 0 : i32
    return %c0_i32, %c0_i32_0 : i32, i32
  }
  func.func @transform_23(%arg0: i32) -> (i32, i32) {
    %c0_i32 = arith.constant 0 : i32
    %c0_i32_0 = arith.constant 0 : i32
    return %arg0, %c0_i32 : i32, i32
  }
}

</mosaic_0001>

<llo_original>
// kernel: forward.1
$region0: #{forward.1}
  #allocation0 [shape = 'u32[]', space=smem, size = 0x4, offset = 0x4, fixed_abs, tag = 'smem constant byte address 0x4 - core index']
  #allocation1 [shape = 'u32[144,128]{1,0:T(1,128)}', space=vmem, size = 0x12000, scoped, tag = 'internal scratch']
  %s0 = inlined_call_operand.vmem [shape: f32[2,320], index: 0, kind: input, shape index: {}]
  %s1 = inlined_call_operand.vmem [shape: f32[2,10], index: 1, kind: input, shape index: {}]
  %s2 = inlined_call_operand.hbm [shape: bf16[320,896], index: 2, kind: input, shape index: {}]
  %s3 = inlined_call_operand.vmem [shape: f32[1,896], index: 3, kind: input, shape index: {}]
  %s4 = inlined_call_operand.hbm [shape: bf16[896,512], index: 4, kind: input, shape index: {}]
  %s5 = inlined_call_operand.hbm [shape: f32[1,512], index: 5, kind: input, shape index: {}]
  %s6 = inlined_call_operand.vmem [shape: bf16[512,128], index: 6, kind: input, shape index: {}]
  %s7 = inlined_call_operand.hbm [shape: f32[1,128], index: 7, kind: input, shape index: {}]
  %s8 = inlined_call_operand.vmem [shape: bf16[128,128], index: 8, kind: input, shape index: {}]
  %s9 = inlined_call_operand.hbm [shape: f32[1,128], index: 9, kind: input, shape index: {}]
  %s10 = inlined_call_operand.vmem [shape: bf16[10,128], index: 10, kind: input, shape index: {}]
  %s11 = inlined_call_operand.hbm [shape: f32[1,128], index: 11, kind: input, shape index: {}]
  %s12 = inlined_call_operand.vmem [shape: bf16[128,256], index: 12, kind: input, shape index: {}]
  %s13 = inlined_call_operand.hbm [shape: f32[1,256], index: 13, kind: input, shape index: {}]
  %s14 = inlined_call_operand.hbm [shape: bf16[256,128], index: 14, kind: input, shape index: {}]
  %s15 = inlined_call_operand.hbm [shape: f32[1,128], index: 15, kind: input, shape index: {}]
  %s16 = inlined_call_operand.hbm [shape: bf16[128,128], index: 16, kind: input, shape index: {}]
  %s17 = inlined_call_operand.hbm [shape: f32[1,128], index: 17, kind: input, shape index: {}]
  %s18 = inlined_call_operand.hbm [shape: bf16[128,256], index: 18, kind: input, shape index: {}]
  %s19 = inlined_call_operand.hbm [shape: bf16[128,256], index: 19, kind: input, shape index: {}]
  %s20 = inlined_call_operand.hbm [shape: f32[1,256], index: 20, kind: input, shape index: {}]
  %s21 = inlined_call_operand.hbm [shape: bf16[256,128], index: 21, kind: input, shape index: {}]
  %s22 = inlined_call_operand.hbm [shape: f32[1,128], index: 22, kind: input, shape index: {}]
  %s23 = inlined_call_operand.vmem [shape: f32[2,128], index: 23, kind: output, shape index: {}]
  %s24 = sld [smem:[#allocation0]]
  $region166: #{forward.1} parent=0
    _
  %s26 = ssub.s32 1, %s24
  %s27 = scalar_select 0, %s26, %s24
  $region1: #{forward.1} parent=0
    #allocation2 [shape = 'u8[573440]{0}', space=vmem, size = 0x8c000, scoped, tag = 'input window, operand 2, single buffered']
    #allocation3 [shape = 's32[1]{0}', space=sflag, size = 0x4, scoped, tag = 'scoped memory for forward.1']
    #allocation4 [shape = 'u8[917504]{0}', space=vmem, size = 0xe0000, scoped, tag = 'input window, operand 4, single buffered']
    #allocation5 [shape = 's32[1]{0}', space=sflag, size = 0x4, scoped, tag = 'scoped memory for forward.1']
    #allocation6 [shape = 'u8[2048]{0}', space=vmem, size = 0x800, scoped, tag = 'input window, operand 5, single buffered']
    #allocation7 [shape = 'u8[512]{0}', space=vmem, size = 0x400, scoped, tag = 'input window, operand 7, single buffered']
    #allocation8 [shape = 's32[1]{0}', space=sflag, size = 0x4, scoped, tag = 'scoped memory for forward.1']
    #allocation9 [shape = 'u8[512]{0}', space=vmem, size = 0x400, scoped, tag = 'input window, operand 9, single buffered']
    #allocation10 [shape = 'u8[512]{0}', space=vmem, size = 0x400, scoped, tag = 'input window, operand 11, single buffered']
    #allocation11 [shape = 's32[1]{0}', space=sflag, size = 0x4, scoped, tag = 'scoped memory for forward.1']
    #allocation12 [shape = 'u8[1024]{0}', space=vmem, size = 0x400, scoped, tag = 'input window, operand 13, single buffered']
    #allocation13 [shape = 'u8[65536]{0}', space=vmem, size = 0x10000, scoped, tag = 'input window, operand 14, single buffered']
    #allocation14 [shape = 's32[1]{0}', space=sflag, size = 0x4, scoped, tag = 'scoped memory for forward.1']
    #allocation15 [shape = 'u8[512]{0}', space=vmem, size = 0x400, scoped, tag = 'input window, operand 15, single buffered']
    #allocation16 [shape = 'u8[32768]{0}', space=vmem, size = 0x8000, scoped, tag = 'input window, operand 16, single buffered']
    #allocation17 [shape = 's32[1]{0}', space=sflag, size = 0x4, scoped, tag = 'scoped memory for forward.1']
    #allocation18 [shape = 'u8[512]{0}', space=vmem, size = 0x400, scoped, tag = 'input window, operand 17, single buffered']
    #allocation19 [shape = 'u8[65536]{0}', space=vmem, size = 0x10000, scoped, tag = 'input window, operand 18, single buffered']
    #allocation20 [shape = 's32[1]{0}', space=sflag, size = 0x4, scoped, tag = 'scoped memory for forward.1']
    #allocation21 [shape = 'u8[65536]{0}', space=vmem, size = 0x10000, scoped, tag = 'input window, operand 19, single buffered']
    #allocation22 [shape = 'u8[1024]{0}', space=vmem, size = 0x400, scoped, tag = 'input window, operand 20, single buffered']
    #allocation23 [shape = 's32[1]{0}', space=sflag, size = 0x4, scoped, tag = 'scoped memory for forward.1']
    #allocation24 [shape = 'u8[65536]{0}', space=vmem, size = 0x10000, scoped, tag = 'input window, operand 21, single buffered']
    #allocation25 [shape = 'u8[512]{0}', space=vmem, size = 0x400, scoped, tag = 'input window, operand 22, single buffered']
    #allocation26 [shape = 's32[1]{0}', space=sflag, size = 0x4, scoped, tag = 'scoped memory for forward.1']
    %28 = vsyncpa [#allocation3], 0
    %29 = vsyncpa [#allocation5], 0
    %30 = vsyncpa [#allocation8], 0
    %31 = vsyncpa [#allocation11], 0
    %32 = vsyncpa [#allocation14], 0
    %33 = vsyncpa [#allocation17], 0
    %34 = vsyncpa [#allocation20], 0
    %35 = vsyncpa [#allocation23], 0
    %36 = vsyncpa [#allocation26], 0
    // Predicated region
    $region2: #{forward.1} parent=1 // pred_check
      _
    $region3: #{forward.1} parent=1 // pred_check_branch
      %38 = sbr.rel (0) target = $region5
    $region4: #{forward.1} parent=1 // pred_region
      _
    $region5: #{forward.1} parent=1 // pred_fallthru
      _
    // Predicated region
    $region6: #{forward.1} parent=1 // pred_check
      _
    $region7: #{forward.1} parent=1 // pred_check_branch
      %40 = sbr.rel (0) target = $region9
    $region8: #{forward.1} parent=1 // pred_region
      _
    $region9: #{forward.1} parent=1 // pred_fallthru
      _
    // Predicated region
    $region10: #{forward.1} parent=1 // pred_check
      _
    $region11: #{forward.1} parent=1 // pred_check_branch
      %42 = sbr.rel (0) target = $region13
    $region12: #{forward.1} parent=1 // pred_region
      %s44 = ssub.s32 17920, 17920
      %45 = vsyncadd [#allocation3], %s44
      %s46 = sshll.u32 [#allocation2], 4
      %s47 = int_to_ptr.vmem [resolvable:$true] %s46
      %52 = dma.hbm_to_vmem [thread:$0]  %s2, 17920, %s47, [#allocation3], 448, 448, 28
    $region13: #{forward.1} parent=1 // pred_fallthru
      _
    // Predicated region
    $region14: #{forward.1} parent=1 // pred_check
      _
    $region15: #{forward.1} parent=1 // pred_check_branch
      %54 = sbr.rel (0) target = $region17
    $region16: #{forward.1} parent=1 // pred_region
      _
    $region17: #{forward.1} parent=1 // pred_fallthru
      _
    // Predicated region
    $region18: #{forward.1} parent=1 // pred_check
      _
    $region19: #{forward.1} parent=1 // pred_check_branch
      %56 = sbr.rel (0) target = $region21
    $region20: #{forward.1} parent=1 // pred_region
      %s58 = ssub.s32 28672, 28672
      %59 = vsyncadd [#allocation5], %s58
      %s60 = sshll.u32 [#allocation4], 4
      %s61 = int_to_ptr.vmem [resolvable:$true] %s60
      %66 = dma.hbm_to_vmem [thread:$0]  %s4, 28672, %s61, [#allocation5], 256, 256, 16
    $region21: #{forward.1} parent=1 // pred_fallthru
      _
    // Predicated region
    $region22: #{forward.1} parent=1 // pred_check
      _
    $region23: #{forward.1} parent=1 // pred_check_branch
      %68 = sbr.rel (0) target = $region25
    $region24: #{forward.1} parent=1 // pred_region
      %s70 = ssub.s32 64, 64
      %71 = vsyncadd [#allocation5], %s70
      %s73 = sshll.u32 [#allocation6], 4
      %s74 = int_to_ptr.vmem [resolvable:$true] %s73
      %76 = dma.hbm_to_vmem [thread:$0]  %s5, 64, %s74, [#allocation5]
    $region25: #{forward.1} parent=1 // pred_fallthru
      _
    // Predicated region
    $region26: #{forward.1} parent=1 // pred_check
      _
    $region27: #{forward.1} parent=1 // pred_check_branch
      %78 = sbr.rel (0) target = $region29
    $region28: #{forward.1} parent=1 // pred_region
      _
    $region29: #{forward.1} parent=1 // pred_fallthru
      _
    // Predicated region
    $region30: #{forward.1} parent=1 // pred_check
      _
    $region31: #{forward.1} parent=1 // pred_check_branch
      %80 = sbr.rel (0) target = $region33
    $region32: #{forward.1} parent=1 // pred_region
      %s82 = ssub.s32 16, 16
      %83 = vsyncadd [#allocation8], %s82
      %s85 = sshll.u32 [#allocation7], 4
      %s86 = int_to_ptr.vmem [resolvable:$true] %s85
      %88 = dma.hbm_to_vmem [thread:$0]  %s7, 16, %s86, [#allocation8]
    $region33: #{forward.1} parent=1 // pred_fallthru
      _
    // Predicated region
    $region34: #{forward.1} parent=1 // pred_check
      _
    $region35: #{forward.1} parent=1 // pred_check_branch
      %90 = sbr.rel (0) target = $region37
    $region36: #{forward.1} parent=1 // pred_region
      _
    $region37: #{forward.1} parent=1 // pred_fallthru
      _
    // Predicated region
    $region38: #{forward.1} parent=1 // pred_check
      _
    $region39: #{forward.1} parent=1 // pred_check_branch
      %92 = sbr.rel (0) target = $region41
    $region40: #{forward.1} parent=1 // pred_region
      %s94 = ssub.s32 16, 16
      %95 = vsyncadd [#allocation8], %s94
      %s97 = sshll.u32 [#allocation9], 4
      %s98 = int_to_ptr.vmem [resolvable:$true] %s97
      %100 = dma.hbm_to_vmem [thread:$0]  %s9, 16, %s98, [#allocation8]
    $region41: #{forward.1} parent=1 // pred_fallthru
      _
    // Predicated region
    $region42: #{forward.1} parent=1 // pred_check
      _
    $region43: #{forward.1} parent=1 // pred_check_branch
      %102 = sbr.rel (0) target = $region45
    $region44: #{forward.1} parent=1 // pred_region
      _
    $region45: #{forward.1} parent=1 // pred_fallthru
      _
    // Predicated region
    $region46: #{forward.1} parent=1 // pred_check
      _
    $region47: #{forward.1} parent=1 // pred_check_branch
      %104 = sbr.rel (0) target = $region49
    $region48: #{forward.1} parent=1 // pred_region
      %s106 = ssub.s32 16, 16
      %107 = vsyncadd [#allocation11], %s106
      %s109 = sshll.u32 [#allocation10], 4
      %s110 = int_to_ptr.vmem [resolvable:$true] %s109
      %112 = dma.hbm_to_vmem [thread:$0]  %s11, 16, %s110, [#allocation11]
    $region49: #{forward.1} parent=1 // pred_fallthru
      _
    // Predicated region
    $region50: #{forward.1} parent=1 // pred_check
      _
    $region51: #{forward.1} parent=1 // pred_check_branch
      %114 = sbr.rel (0) target = $region53
    $region52: #{forward.1} parent=1 // pred_region
      _
    $region53: #{forward.1} parent=1 // pred_fallthru
      _
    // Predicated region
    $region54: #{forward.1} parent=1 // pred_check
      _
    $region55: #{forward.1} parent=1 // pred_check_branch
      %116 = sbr.rel (0) target = $region57
    $region56: #{forward.1} parent=1 // pred_region
      %s118 = ssub.s32 32, 32
      %119 = vsyncadd [#allocation11], %s118
      %s121 = sshll.u32 [#allocation12], 4
      %s122 = int_to_ptr.vmem [resolvable:$true] %s121
      %124 = dma.hbm_to_vmem [thread:$0]  %s13, 32, %s122, [#allocation11]
    $region57: #{forward.1} parent=1 // pred_fallthru
      _
    // Predicated region
    $region58: #{forward.1} parent=1 // pred_check
      _
    $region59: #{forward.1} parent=1 // pred_check_branch
      %126 = sbr.rel (0) target = $region61
    $region60: #{forward.1} parent=1 // pred_region
      %s128 = ssub.s32 2048, 2048
      %129 = vsyncadd [#allocation14], %s128
      %s130 = sshll.u32 [#allocation13], 4
      %s131 = int_to_ptr.vmem [resolvable:$true] %s130
      %136 = dma.hbm_to_vmem [thread:$0]  %s14, 2048, %s131, [#allocation14], 64, 64, 4
    $region61: #{forward.1} parent=1 // pred_fallthru
      _
    // Predicated region
    $region62: #{forward.1} parent=1 // pred_check
      _
    $region63: #{forward.1} parent=1 // pred_check_branch
      %138 = sbr.rel (0) target = $region65
    $region64: #{forward.1} parent=1 // pred_region
      %s140 = ssub.s32 16, 16
      %141 = vsyncadd [#allocation14], %s140
      %s143 = sshll.u32 [#allocation15], 4
      %s144 = int_to_ptr.vmem [resolvable:$true] %s143
      %146 = dma.hbm_to_vmem [thread:$0]  %s15, 16, %s144, [#allocation14]
    $region65: #{forward.1} parent=1 // pred_fallthru
      _
    // Predicated region
    $region66: #{forward.1} parent=1 // pred_check
      _
    $region67: #{forward.1} parent=1 // pred_check_branch
      %148 = sbr.rel (0) target = $region69
    $region68: #{forward.1} parent=1 // pred_region
      %s150 = ssub.s32 1024, 1024
      %151 = vsyncadd [#allocation17], %s150
      %s152 = sshll.u32 [#allocation16], 4
      %s153 = int_to_ptr.vmem [resolvable:$true] %s152
      %158 = dma.hbm_to_vmem [thread:$0]  %s16, 1024, %s153, [#allocation17], 64, 64, 4
    $region69: #{forward.1} parent=1 // pred_fallthru
      _
    // Predicated region
    $region70: #{forward.1} parent=1 // pred_check
      _
    $region71: #{forward.1} parent=1 // pred_check_branch
      %160 = sbr.rel (0) target = $region73
    $region72: #{forward.1} parent=1 // pred_region
      %s162 = ssub.s32 16, 16
      %163 = vsyncadd [#allocation17], %s162
      %s165 = sshll.u32 [#allocation18], 4
      %s166 = int_to_ptr.vmem [resolvable:$true] %s165
      %168 = dma.hbm_to_vmem [thread:$0]  %s17, 16, %s166, [#allocation17]
    $region73: #{forward.1} parent=1 // pred_fallthru
      _
    // Predicated region
    $region74: #{forward.1} parent=1 // pred_check
      _
    $region75: #{forward.1} parent=1 // pred_check_branch
      %170 = sbr.rel (0) target = $region77
    $region76: #{forward.1} parent=1 // pred_region
      %s172 = ssub.s32 2048, 2048
      %173 = vsyncadd [#allocation20], %s172
      %s174 = sshll.u32 [#allocation19], 4
      %s175 = int_to_ptr.vmem [resolvable:$true] %s174
      %180 = dma.hbm_to_vmem [thread:$0]  %s18, 2048, %s175, [#allocation20], 128, 128, 8
    $region77: #{forward.1} parent=1 // pred_fallthru
      _
    // Predicated region
    $region78: #{forward.1} parent=1 // pred_check
      _
    $region79: #{forward.1} parent=1 // pred_check_branch
      %182 = sbr.rel (0) target = $region81
    $region80: #{forward.1} parent=1 // pred_region
      %s184 = ssub.s32 2048, 2048
      %185 = vsyncadd [#allocation20], %s184
      %s186 = sshll.u32 [#allocation21], 4
      %s187 = int_to_ptr.vmem [resolvable:$true] %s186
      %192 = dma.hbm_to_vmem [thread:$0]  %s19, 2048, %s187, [#allocation20], 128, 128, 8
    $region81: #{forward.1} parent=1 // pred_fallthru
      _
    // Predicated region
    $region82: #{forward.1} parent=1 // pred_check
      _
    $region83: #{forward.1} parent=1 // pred_check_branch
      %194 = sbr.rel (0) target = $region85
    $region84: #{forward.1} parent=1 // pred_region
      %s196 = ssub.s32 32, 32
      %197 = vsyncadd [#allocation23], %s196
      %s199 = sshll.u32 [#allocation22], 4
      %s200 = int_to_ptr.vmem [resolvable:$true] %s199
      %202 = dma.hbm_to_vmem [thread:$0]  %s20, 32, %s200, [#allocation23]
    $region85: #{forward.1} parent=1 // pred_fallthru
      _
    // Predicated region
    $region86: #{forward.1} parent=1 // pred_check
      _
    $region87: #{forward.1} parent=1 // pred_check_branch
      %204 = sbr.rel (0) target = $region89
    $region88: #{forward.1} parent=1 // pred_region
      %s206 = ssub.s32 2048, 2048
      %207 = vsyncadd [#allocation23], %s206
      %s208 = sshll.u32 [#allocation24], 4
      %s209 = int_to_ptr.vmem [resolvable:$true] %s208
      %214 = dma.hbm_to_vmem [thread:$0]  %s21, 2048, %s209, [#allocation23], 64, 64, 4
    $region89: #{forward.1} parent=1 // pred_fallthru
      _
    // Predicated region
    $region90: #{forward.1} parent=1 // pred_check
      _
    $region91: #{forward.1} parent=1 // pred_check_branch
      %216 = sbr.rel (0) target = $region93
    $region92: #{forward.1} parent=1 // pred_region
      %s218 = ssub.s32 16, 16
      %219 = vsyncadd [#allocation26], %s218
      %s221 = sshll.u32 [#allocation25], 4
      %s222 = int_to_ptr.vmem [resolvable:$true] %s221
      %224 = dma.hbm_to_vmem [thread:$0]  %s22, 16, %s222, [#allocation26]
    $region93: #{forward.1} parent=1 // pred_fallthru
      _
    // Predicated region
    $region94: #{forward.1} parent=1 // pred_check
      _
    $region95: #{forward.1} parent=1 // pred_check_branch
      %226 = sbr.rel (0) target = $region97
    $region96: #{forward.1} parent=1 // pred_region
      %227 = dma.done [#allocation3], 17920
    $region97: #{forward.1} parent=1 // pred_fallthru
      _
    // Predicated region
    $region98: #{forward.1} parent=1 // pred_check
      _
    $region99: #{forward.1} parent=1 // pred_check_branch
      %229 = sbr.rel (0) target = $region101
    $region100: #{forward.1} parent=1 // pred_region
      %230 = dma.done [#allocation5], 28672
    $region101: #{forward.1} parent=1 // pred_fallthru
      _
    // Predicated region
    $region102: #{forward.1} parent=1 // pred_check
      _
    $region103: #{forward.1} parent=1 // pred_check_branch
      %232 = sbr.rel (0) target = $region105
    $region104: #{forward.1} parent=1 // pred_region
      %233 = dma.done [#allocation5], 64
    $region105: #{forward.1} parent=1 // pred_fallthru
      _
    // Predicated region
    $region106: #{forward.1} parent=1 // pred_check
      _
    $region107: #{forward.1} parent=1 // pred_check_branch
      %235 = sbr.rel (0) target = $region109
    $region108: #{forward.1} parent=1 // pred_region
      %236 = dma.done [#allocation8], 16
    $region109: #{forward.1} parent=1 // pred_fallthru
      _
    // Predicated region
    $region110: #{forward.1} parent=1 // pred_check
      _
    $region111: #{forward.1} parent=1 // pred_check_branch
      %238 = sbr.rel (0) target = $region113
    $region112: #{forward.1} parent=1 // pred_region
      %239 = dma.done [#allocation8], 16
    $region113: #{forward.1} parent=1 // pred_fallthru
      _
    // Predicated region
    $region114: #{forward.1} parent=1 // pred_check
      _
    $region115: #{forward.1} parent=1 // pred_check_branch
      %241 = sbr.rel (0) target = $region117
    $region116: #{forward.1} parent=1 // pred_region
      %242 = dma.done [#allocation11], 16
    $region117: #{forward.1} parent=1 // pred_fallthru
      _
    // Predicated region
    $region118: #{forward.1} parent=1 // pred_check
      _
    $region119: #{forward.1} parent=1 // pred_check_branch
      %244 = sbr.rel (0) target = $region121
    $region120: #{forward.1} parent=1 // pred_region
      %245 = dma.done [#allocation11], 32
    $region121: #{forward.1} parent=1 // pred_fallthru
      _
    // Predicated region
    $region122: #{forward.1} parent=1 // pred_check
      _
    $region123: #{forward.1} parent=1 // pred_check_branch
      %247 = sbr.rel (0) target = $region125
    $region124: #{forward.1} parent=1 // pred_region
      %248 = dma.done [#allocation14], 2048
    $region125: #{forward.1} parent=1 // pred_fallthru
      _
    // Predicated region
    $region126: #{forward.1} parent=1 // pred_check
      _
    $region127: #{forward.1} parent=1 // pred_check_branch
      %250 = sbr.rel (0) target = $region129
    $region128: #{forward.1} parent=1 // pred_region
      %251 = dma.done [#allocation14], 16
    $region129: #{forward.1} parent=1 // pred_fallthru
      _
    // Predicated region
    $region130: #{forward.1} parent=1 // pred_check
      _
    $region131: #{forward.1} parent=1 // pred_check_branch
      %253 = sbr.rel (0) target = $region133
    $region132: #{forward.1} parent=1 // pred_region
      %254 = dma.done [#allocation17], 1024
    $region133: #{forward.1} parent=1 // pred_fallthru
      _
    // Predicated region
    $region134: #{forward.1} parent=1 // pred_check
      _
    $region135: #{forward.1} parent=1 // pred_check_branch
      %256 = sbr.rel (0) target = $region137
    $region136: #{forward.1} parent=1 // pred_region
      %257 = dma.done [#allocation17], 16
    $region137: #{forward.1} parent=1 // pred_fallthru
      _
    // Predicated region
    $region138: #{forward.1} parent=1 // pred_check
      _
    $region139: #{forward.1} parent=1 // pred_check_branch
      %259 = sbr.rel (0) target = $region141
    $region140: #{forward.1} parent=1 // pred_region
      %260 = dma.done [#allocation20], 2048
    $region141: #{forward.1} parent=1 // pred_fallthru
      _
    // Predicated region
    $region142: #{forward.1} parent=1 // pred_check
      _
    $region143: #{forward.1} parent=1 // pred_check_branch
      %262 = sbr.rel (0) target = $region145
    $region144: #{forward.1} parent=1 // pred_region
      %263 = dma.done [#allocation20], 2048
    $region145: #{forward.1} parent=1 // pred_fallthru
      _
    // Predicated region
    $region146: #{forward.1} parent=1 // pred_check
      _
    $region147: #{forward.1} parent=1 // pred_check_branch
      %265 = sbr.rel (0) target = $region149
    $region148: #{forward.1} parent=1 // pred_region
      %266 = dma.done [#allocation23], 32
    $region149: #{forward.1} parent=1 // pred_fallthru
      _
    // Predicated region
    $region150: #{forward.1} parent=1 // pred_check
      _
    $region151: #{forward.1} parent=1 // pred_check_branch
      %268 = sbr.rel (0) target = $region153
    $region152: #{forward.1} parent=1 // pred_region
      %269 = dma.done [#allocation23], 2048
    $region153: #{forward.1} parent=1 // pred_fallthru
      _
    // Predicated region
    $region154: #{forward.1} parent=1 // pred_check
      _
    $region155: #{forward.1} parent=1 // pred_check_branch
      %271 = sbr.rel (0) target = $region157
    $region156: #{forward.1} parent=1 // pred_region
      %272 = dma.done [#allocation26], 16
    $region157: #{forward.1} parent=1 // pred_fallthru
      _
    %v274 = vld [vmem:[%s0] sm:$0x3f]
    %v276 = vcombine.high %v274, %v274
    %v278 = vunpack.c.l.s4 1983009808
    %v279 = vunpack.c.0.s8 %v278
    %v280 = vlaneseq
    %v281 = vshrl.u32 %v280, 7
    %v282 = vsub.s32 %v279, %v281
    %v283 = vrot.slane %v274, %v282
    %v285 = vunpack.c.l.s4 1983009808
    %v286 = vunpack.c.0.s8 %v285
    %v287 = vlaneseq
    %v288 = vshrl.u32 %v287, 7
    %v289 = vsub.s32 %v286, %v288
    %v290 = vrot.slane %v276, %v289
    %v291 = vcombine.high %v283, %v283
    %v295 = vpack.c.bf16 %v283, %v283
    %v296 = vpack.c.bf16 %v291, %v291
    %v297 = vpack.c.bf16 %v290, %v290
    %v298 = vld [vmem:[#allocation2] sm:$0xff]
    %v299 = vld [vmem:[#allocation2 + $0x8] sm:$0xff]
    %v300 = vld [vmem:[#allocation2 + $0x10] sm:$0xff]
    %v301 = vld [vmem:[#allocation2 + $0x18] sm:$0xf]
    %v302 = vld [vmem:[#allocation2 + $0x1c] sm:$0xff]
    %v303 = vld [vmem:[#allocation2 + $0x24] sm:$0xff]
    %v304 = vld [vmem:[#allocation2 + $0x2c] sm:$0xff]
    %v305 = vld [vmem:[#allocation2 + $0x34] sm:$0xf]
    %v306 = vld [vmem:[#allocation2 + $0x38] sm:$0xff]
    %v307 = vld [vmem:[#allocation2 + $0x40] sm:$0xff]
    %v308 = vld [vmem:[#allocation2 + $0x48] sm:$0xff]
    %v309 = vld [vmem:[#allocation2 + $0x50] sm:$0xf]
    %v310 = vld [vmem:[#allocation2 + $0x54] sm:$0xff]
    %v311 = vld [vmem:[#allocation2 + $0x5c] sm:$0xff]
    %v312 = vld [vmem:[#allocation2 + $0x64] sm:$0xff]
    %v313 = vld [vmem:[#allocation2 + $0x6c] sm:$0xf]
    %v314 = vld [vmem:[#allocation2 + $0x70] sm:$0xff]
    %v315 = vld [vmem:[#allocation2 + $0x78] sm:$0xff]
    %v316 = vld [vmem:[#allocation2 + $0x80] sm:$0xff]
    %v317 = vld [vmem:[#allocation2 + $0x88] sm:$0xf]
    %v318 = vld [vmem:[#allocation2 + $0x8c] sm:$0xff]
    %v319 = vld [vmem:[#allocation2 + $0x94] sm:$0xff]
    %v320 = vld [vmem:[#allocation2 + $0x9c] sm:$0xff]
    %v321 = vld [vmem:[#allocation2 + $0xa4] sm:$0xf]
    %v322 = vld [vmem:[#allocation2 + $0xa8] sm:$0xff]
    %v323 = vld [vmem:[#allocation2 + $0xb0] sm:$0xff]
    %v324 = vld [vmem:[#allocation2 + $0xb8] sm:$0xff]
    %v325 = vld [vmem:[#allocation2 + $0xc0] sm:$0xf]
    %v326 = vld [vmem:[#allocation2 + $0xc4] sm:$0xff]
    %v327 = vld [vmem:[#allocation2 + $0xcc] sm:$0xff]
    %v328 = vld [vmem:[#allocation2 + $0xd4] sm:$0xff]
    %v329 = vld [vmem:[#allocation2 + $0xdc] sm:$0xf]
    %v330 = vld [vmem:[#allocation2 + $0xe0] sm:$0xff]
    %v331 = vld [vmem:[#allocation2 + $0xe8] sm:$0xff]
    %v332 = vld [vmem:[#allocation2 + $0xf0] sm:$0xff]
    %v333 = vld [vmem:[#allocation2 + $0xf8] sm:$0xf]
    %v334 = vld [vmem:[#allocation2 + $0xfc] sm:$0xff]
    %v335 = vld [vmem:[#allocation2 + $0x104] sm:$0xff]
    %v336 = vld [vmem:[#allocation2 + $0x10c] sm:$0xff]
    %v337 = vld [vmem:[#allocation2 + $0x114] sm:$0xf]
    %v338 = vld [vmem:[#allocation2 + $0x118] sm:$0xff]
    %v339 = vld [vmem:[#allocation2 + $0x120] sm:$0xff]
    %v340 = vld [vmem:[#allocation2 + $0x128] sm:$0xff]
    %v341 = vld [vmem:[#allocation2 + $0x130] sm:$0xf]
    %v342 = vld [vmem:[#allocation2 + $0x134] sm:$0xff]
    %v343 = vld [vmem:[#allocation2 + $0x13c] sm:$0xff]
    %v344 = vld [vmem:[#allocation2 + $0x144] sm:$0xff]
    %v345 = vld [vmem:[#allocation2 + $0x14c] sm:$0xf]
    %v346 = vld [vmem:[#allocation2 + $0x150] sm:$0xff]
    %v347 = vld [vmem:[#allocation2 + $0x158] sm:$0xff]
    %v348 = vld [vmem:[#allocation2 + $0x160] sm:$0xff]
    %v349 = vld [vmem:[#allocation2 + $0x168] sm:$0xf]
    %v350 = vld [vmem:[#allocation2 + $0x16c] sm:$0xff]
    %v351 = vld [vmem:[#allocation2 + $0x174] sm:$0xff]
    %v352 = vld [vmem:[#allocation2 + $0x17c] sm:$0xff]
    %v353 = vld [vmem:[#allocation2 + $0x184] sm:$0xf]
    %v354 = vld [vmem:[#allocation2 + $0x188] sm:$0xff]
    %v355 = vld [vmem:[#allocation2 + $0x190] sm:$0xff]
    %v356 = vld [vmem:[#allocation2 + $0x198] sm:$0xff]
    %v357 = vld [vmem:[#allocation2 + $0x1a0] sm:$0xf]
    %v358 = vld [vmem:[#allocation2 + $0x1a4] sm:$0xff]
    %v359 = vld [vmem:[#allocation2 + $0x1ac] sm:$0xff]
    %v360 = vld [vmem:[#allocation2 + $0x1b4] sm:$0xff]
    %v361 = vld [vmem:[#allocation2 + $0x1bc] sm:$0xf]
    %v362 = vld [vmem:[#allocation2 + $0x1c0] sm:$0xff]
    %v363 = vld [vmem:[#allocation2 + $0x1c8] sm:$0xff]
    %v364 = vld [vmem:[#allocation2 + $0x1d0] sm:$0xff]
    %v365 = vld [vmem:[#allocation2 + $0x1d8] sm:$0xf]
    %v366 = vld [vmem:[#allocation2 + $0x1dc] sm:$0xff]
    %v367 = vld [vmem:[#allocation2 + $0x1e4] sm:$0xff]
    %v368 = vld [vmem:[#allocation2 + $0x1ec] sm:$0xff]
    %v369 = vld [vmem:[#allocation2 + $0x1f4] sm:$0xf]
    %v370 = vld [vmem:[#allocation2 + $0x1f8] sm:$0xff]
    %v371 = vld [vmem:[#allocation2 + $0x200] sm:$0xff]
    %v372 = vld [vmem:[#allocation2 + $0x208] sm:$0xff]
    %v373 = vld [vmem:[#allocation2 + $0x210] sm:$0xf]
    %v374 = vld [vmem:[#allocation2 + $0x214] sm:$0xff]
    %v375 = vld [vmem:[#allocation2 + $0x21c] sm:$0xff]
    %v376 = vld [vmem:[#allocation2 + $0x224] sm:$0xff]
    %v377 = vld [vmem:[#allocation2 + $0x22c] sm:$0xf]
    %v378 = vld [vmem:[#allocation2 + $0x230] sm:$0xff]
    %v379 = vld [vmem:[#allocation2 + $0x238] sm:$0xff]
    %v380 = vld [vmem:[#allocation2 + $0x240] sm:$0xff]
    %v381 = vld [vmem:[#allocation2 + $0x248] sm:$0xf]
    %v382 = vld [vmem:[#allocation2 + $0x24c] sm:$0xff]
    %v383 = vld [vmem:[#allocation2 + $0x254] sm:$0xff]
    %v384 = vld [vmem:[#allocation2 + $0x25c] sm:$0xff]
    %v385 = vld [vmem:[#allocation2 + $0x264] sm:$0xf]
    %v386 = vld [vmem:[#allocation2 + $0x268] sm:$0xff]
    %v387 = vld [vmem:[#allocation2 + $0x270] sm:$0xff]
    %v388 = vld [vmem:[#allocation2 + $0x278] sm:$0xff]
    %v389 = vld [vmem:[#allocation2 + $0x280] sm:$0xf]
    %v390 = vld [vmem:[#allocation2 + $0x284] sm:$0xff]
    %v391 = vld [vmem:[#allocation2 + $0x28c] sm:$0xff]
    %v392 = vld [vmem:[#allocation2 + $0x294] sm:$0xff]
    %v393 = vld [vmem:[#allocation2 + $0x29c] sm:$0xf]
    %v394 = vld [vmem:[#allocation2 + $0x2a0] sm:$0xff]
    %v395 = vld [vmem:[#allocation2 + $0x2a8] sm:$0xff]
    %v396 = vld [vmem:[#allocation2 + $0x2b0] sm:$0xff]
    %v397 = vld [vmem:[#allocation2 + $0x2b8] sm:$0xf]
    %v398 = vld [vmem:[#allocation2 + $0x2bc] sm:$0xff]
    %v399 = vld [vmem:[#allocation2 + $0x2c4] sm:$0xff]
    %v400 = vld [vmem:[#allocation2 + $0x2cc] sm:$0xff]
    %v401 = vld [vmem:[#allocation2 + $0x2d4] sm:$0xf]
    %v402 = vld [vmem:[#allocation2 + $0x2d8] sm:$0xff]
    %v403 = vld [vmem:[#allocation2 + $0x2e0] sm:$0xff]
    %v404 = vld [vmem:[#allocation2 + $0x2e8] sm:$0xff]
    %v405 = vld [vmem:[#allocation2 + $0x2f0] sm:$0xf]
    %v406 = vld [vmem:[#allocation2 + $0x2f4] sm:$0xff]
    %v407 = vld [vmem:[#allocation2 + $0x2fc] sm:$0xff]
    %v408 = vld [vmem:[#allocation2 + $0x304] sm:$0xff]
    %v409 = vld [vmem:[#allocation2 + $0x30c] sm:$0xf]
    %v410 = vld [vmem:[#allocation2 + $0x310] sm:$0xff]
    %v411 = vld [vmem:[#allocation2 + $0x318] sm:$0xff]
    %v412 = vld [vmem:[#allocation2 + $0x320] sm:$0xff]
    %v413 = vld [vmem:[#allocation2 + $0x328] sm:$0xf]
    %v414 = vld [vmem:[#allocation2 + $0x32c] sm:$0xff]
    %v415 = vld [vmem:[#allocation2 + $0x334] sm:$0xff]
    %v416 = vld [vmem:[#allocation2 + $0x33c] sm:$0xff]
    %v417 = vld [vmem:[#allocation2 + $0x344] sm:$0xf]
    %v418 = vld [vmem:[#allocation2 + $0x348] sm:$0xff]
    %v419 = vld [vmem:[#allocation2 + $0x350] sm:$0xff]
    %v420 = vld [vmem:[#allocation2 + $0x358] sm:$0xff]
    %v421 = vld [vmem:[#allocation2 + $0x360] sm:$0xf]
    %v422 = vld [vmem:[#allocation2 + $0x364] sm:$0xff]
    %v423 = vld [vmem:[#allocation2 + $0x36c] sm:$0xff]
    %v424 = vld [vmem:[#allocation2 + $0x374] sm:$0xff]
    %v425 = vld [vmem:[#allocation2 + $0x37c] sm:$0xf]
    %v426 = vld [vmem:[#allocation2 + $0x380] sm:$0xff]
    %v427 = vld [vmem:[#allocation2 + $0x388] sm:$0xff]
    %v428 = vld [vmem:[#allocation2 + $0x390] sm:$0xff]
    %v429 = vld [vmem:[#allocation2 + $0x398] sm:$0xf]
    %v430 = vld [vmem:[#allocation2 + $0x39c] sm:$0xff]
    %v431 = vld [vmem:[#allocation2 + $0x3a4] sm:$0xff]
    %v432 = vld [vmem:[#allocation2 + $0x3ac] sm:$0xff]
    %v433 = vld [vmem:[#allocation2 + $0x3b4] sm:$0xf]
    %v434 = vld [vmem:[#allocation2 + $0x3b8] sm:$0xff]
    %v435 = vld [vmem:[#allocation2 + $0x3c0] sm:$0xff]
    %v436 = vld [vmem:[#allocation2 + $0x3c8] sm:$0xff]
    %v437 = vld [vmem:[#allocation2 + $0x3d0] sm:$0xf]
    %v438 = vld [vmem:[#allocation2 + $0x3d4] sm:$0xff]
    %v439 = vld [vmem:[#allocation2 + $0x3dc] sm:$0xff]
    %v440 = vld [vmem:[#allocation2 + $0x3e4] sm:$0xff]
    %v441 = vld [vmem:[#allocation2 + $0x3ec] sm:$0xf]
    %v442 = vld [vmem:[#allocation2 + $0x3f0] sm:$0xff]
    %v443 = vld [vmem:[#allocation2 + $0x3f8] sm:$0xff]
    %v444 = vld [vmem:[#allocation2 + $0x400] sm:$0xff]
    %v445 = vld [vmem:[#allocation2 + $0x408] sm:$0xf]
    %v446 = vld [vmem:[#allocation2 + $0x40c] sm:$0xff]
    %v447 = vld [vmem:[#allocation2 + $0x414] sm:$0xff]
    %v448 = vld [vmem:[#allocation2 + $0x41c] sm:$0xff]
    %v449 = vld [vmem:[#allocation2 + $0x424] sm:$0xf]
    %v450 = vld [vmem:[#allocation2 + $0x428] sm:$0xff]
    %v451 = vld [vmem:[#allocation2 + $0x430] sm:$0xff]
    %v452 = vld [vmem:[#allocation2 + $0x438] sm:$0xff]
    %v453 = vld [vmem:[#allocation2 + $0x440] sm:$0xf]
    %v454 = vld [vmem:[#allocation2 + $0x444] sm:$0xff]
    %v455 = vld [vmem:[#allocation2 + $0x44c] sm:$0xff]
    %v456 = vld [vmem:[#allocation2 + $0x454] sm:$0xff]
    %v457 = vld [vmem:[#allocation2 + $0x45c] sm:$0xf]
    %v458 = vld [vmem:[%s3] sm:$0xff]
    %v460 = vlaneseq
    %v461 = vshrl.u32 %v460, 7
    %v462 = vsub.s32 0, %v461
    %v463 = vrot.slane %v458, %v462
    %v464 = vlaneseq
    %v465 = vshrl.u32 %v464, 7
    %v466 = vsub.s32 1, %v465
    %v467 = vrot.slane %v458, %v466
    %v468 = vlaneseq
    %v469 = vshrl.u32 %v468, 7
    %v470 = vsub.s32 2, %v469
    %v471 = vrot.slane %v458, %v470
    %v472 = vlaneseq
    %v473 = vshrl.u32 %v472, 7
    %v474 = vsub.s32 3, %v473
    %v475 = vrot.slane %v458, %v474
    %v476 = vlaneseq
    %v477 = vshrl.u32 %v476, 7
    %v478 = vsub.s32 4, %v477
    %v479 = vrot.slane %v458, %v478
    %v480 = vlaneseq
    %v481 = vshrl.u32 %v480, 7
    %v482 = vsub.s32 5, %v481
    %v483 = vrot.slane %v458, %v482
    %v484 = vlaneseq
    %v485 = vshrl.u32 %v484, 7
    %v486 = vsub.s32 6, %v485
    %v487 = vrot.slane %v458, %v486
    %v655 = vunpack.c.l.b16 %v298
    %v656 = vunpack.c.h.b16 %v298
    %v657 = vunpack.c.l.b16 %v299
    %v658 = vunpack.c.h.b16 %v299
    %v659 = vunpack.c.l.b16 %v300
    %v660 = vunpack.c.h.b16 %v300
    %v661 = vunpack.c.l.b16 %v301
    %v662 = vunpack.c.l.b16 %v302
    %v663 = vunpack.c.h.b16 %v302
    %v664 = vunpack.c.l.b16 %v303
    %v665 = vunpack.c.h.b16 %v303
    %v666 = vunpack.c.l.b16 %v304
    %v667 = vunpack.c.h.b16 %v304
    %v668 = vunpack.c.l.b16 %v305
    %v669 = vunpack.c.l.b16 %v306
    %v670 = vunpack.c.h.b16 %v306
    %v671 = vunpack.c.l.b16 %v307
    %v672 = vunpack.c.h.b16 %v307
    %v673 = vunpack.c.l.b16 %v308
    %v674 = vunpack.c.h.b16 %v308
    %v675 = vunpack.c.l.b16 %v309
    %v676 = vunpack.c.l.b16 %v310
    %v677 = vunpack.c.h.b16 %v310
    %v678 = vunpack.c.l.b16 %v311
    %v679 = vunpack.c.h.b16 %v311
    %v680 = vunpack.c.l.b16 %v312
    %v681 = vunpack.c.h.b16 %v312
    %v682 = vunpack.c.l.b16 %v313
    %v683 = vunpack.c.l.b16 %v314
    %v684 = vunpack.c.h.b16 %v314
    %v685 = vunpack.c.l.b16 %v315
    %v686 = vunpack.c.h.b16 %v315
    %v687 = vunpack.c.l.b16 %v316
    %v688 = vunpack.c.h.b16 %v316
    %v689 = vunpack.c.l.b16 %v317
    %v690 = vunpack.c.l.b16 %v318
    %v691 = vunpack.c.h.b16 %v318
    %v692 = vunpack.c.l.b16 %v319
    %v693 = vunpack.c.h.b16 %v319
    %v694 = vunpack.c.l.b16 %v320
    %v695 = vunpack.c.h.b16 %v320
    %v696 = vunpack.c.l.b16 %v321
    %v697 = vunpack.c.l.b16 %v322
    %v698 = vunpack.c.h.b16 %v322
    %v699 = vunpack.c.l.b16 %v323
    %v700 = vunpack.c.h.b16 %v323
    %v701 = vunpack.c.l.b16 %v324
    %v702 = vunpack.c.h.b16 %v324
    %v703 = vunpack.c.l.b16 %v325
    %v704 = vunpack.c.l.b16 %v326
    %v705 = vunpack.c.h.b16 %v326
    %v706 = vunpack.c.l.b16 %v327
    %v707 = vunpack.c.h.b16 %v327
    %v708 = vunpack.c.l.b16 %v328
    %v709 = vunpack.c.h.b16 %v328
    %v710 = vunpack.c.l.b16 %v329
    %v711 = vunpack.c.l.b16 %v330
    %v712 = vunpack.c.h.b16 %v330
    %v713 = vunpack.c.l.b16 %v331
    %v714 = vunpack.c.h.b16 %v331
    %v715 = vunpack.c.l.b16 %v332
    %v716 = vunpack.c.h.b16 %v332
    %v717 = vunpack.c.l.b16 %v333
    %v718 = vunpack.c.l.b16 %v334
    %v719 = vunpack.c.h.b16 %v334
    %v720 = vunpack.c.l.b16 %v335
    %v721 = vunpack.c.h.b16 %v335
    %v722 = vunpack.c.l.b16 %v336
    %v723 = vunpack.c.h.b16 %v336
    %v724 = vunpack.c.l.b16 %v337
    %v725 = vunpack.c.l.b16 %v338
    %v726 = vunpack.c.h.b16 %v338
    %v727 = vunpack.c.l.b16 %v339
    %v728 = vunpack.c.h.b16 %v339
    %v729 = vunpack.c.l.b16 %v340
    %v730 = vunpack.c.h.b16 %v340
    %v731 = vunpack.c.l.b16 %v341
    %v732 = vunpack.c.l.b16 %v342
    %v733 = vunpack.c.h.b16 %v342
    %v734 = vunpack.c.l.b16 %v343
    %v735 = vunpack.c.h.b16 %v343
    %v736 = vunpack.c.l.b16 %v344
    %v737 = vunpack.c.h.b16 %v344
    %v738 = vunpack.c.l.b16 %v345
    %v739 = vunpack.c.l.b16 %v346
    %v740 = vunpack.c.h.b16 %v346
    %v741 = vunpack.c.l.b16 %v347
    %v742 = vunpack.c.h.b16 %v347
    %v743 = vunpack.c.l.b16 %v348
    %v744 = vunpack.c.h.b16 %v348
    %v745 = vunpack.c.l.b16 %v349
    %v746 = vunpack.c.l.b16 %v350
    %v747 = vunpack.c.h.b16 %v350
    %v748 = vunpack.c.l.b16 %v351
    %v749 = vunpack.c.h.b16 %v351
    %v750 = vunpack.c.l.b16 %v352
    %v751 = vunpack.c.h.b16 %v352
    %v752 = vunpack.c.l.b16 %v353
    %v753 = vunpack.c.l.b16 %v354
    %v754 = vunpack.c.h.b16 %v354
    %v755 = vunpack.c.l.b16 %v355
    %v756 = vunpack.c.h.b16 %v355
    %v757 = vunpack.c.l.b16 %v356
    %v758 = vunpack.c.h.b16 %v356
    %v759 = vunpack.c.l.b16 %v357
    %v760 = vunpack.c.l.b16 %v358
    %v761 = vunpack.c.h.b16 %v358
    %v762 = vunpack.c.l.b16 %v359
    %v763 = vunpack.c.h.b16 %v359
    %v764 = vunpack.c.l.b16 %v360
    %v765 = vunpack.c.h.b16 %v360
    %v766 = vunpack.c.l.b16 %v361
    %v767 = vunpack.c.l.b16 %v362
    %v768 = vunpack.c.h.b16 %v362
    %v769 = vunpack.c.l.b16 %v363
    %v770 = vunpack.c.h.b16 %v363
    %v771 = vunpack.c.l.b16 %v364
    %v772 = vunpack.c.h.b16 %v364
    %v773 = vunpack.c.l.b16 %v365
    %v774 = vunpack.c.l.b16 %v366
    %v775 = vunpack.c.h.b16 %v366
    %v776 = vunpack.c.l.b16 %v367
    %v777 = vunpack.c.h.b16 %v367
    %v778 = vunpack.c.l.b16 %v368
    %v779 = vunpack.c.h.b16 %v368
    %v780 = vunpack.c.l.b16 %v369
    %v781 = vunpack.c.l.b16 %v370
    %v782 = vunpack.c.h.b16 %v370
    %v783 = vunpack.c.l.b16 %v371
    %v784 = vunpack.c.h.b16 %v371
    %v785 = vunpack.c.l.b16 %v372
    %v786 = vunpack.c.h.b16 %v372
    %v787 = vunpack.c.l.b16 %v373
    %v788 = vunpack.c.l.b16 %v374
    %v789 = vunpack.c.h.b16 %v374
    %v790 = vunpack.c.l.b16 %v375
    %v791 = vunpack.c.h.b16 %v375
    %v792 = vunpack.c.l.b16 %v376
    %v793 = vunpack.c.h.b16 %v376
    %v794 = vunpack.c.l.b16 %v377
    %v795 = vunpack.c.l.b16 %v378
    %v796 = vunpack.c.h.b16 %v378
    %v797 = vunpack.c.l.b16 %v379
    %v798 = vunpack.c.h.b16 %v379
    %v799 = vunpack.c.l.b16 %v380
    %v800 = vunpack.c.h.b16 %v380
    %v801 = vunpack.c.l.b16 %v381
    %v802 = vunpack.c.l.b16 %v382
    %v803 = vunpack.c.h.b16 %v382
    %v804 = vunpack.c.l.b16 %v383
    %v805 = vunpack.c.h.b16 %v383
    %v806 = vunpack.c.l.b16 %v384
    %v807 = vunpack.c.h.b16 %v384
    %v808 = vunpack.c.l.b16 %v385
    %v809 = vunpack.c.l.b16 %v386
    %v810 = vunpack.c.h.b16 %v386
    %v811 = vunpack.c.l.b16 %v387
    %v812 = vunpack.c.h.b16 %v387
    %v813 = vunpack.c.l.b16 %v388
    %v814 = vunpack.c.h.b16 %v388
    %v815 = vunpack.c.l.b16 %v389
    %v816 = vunpack.c.l.b16 %v390
    %v817 = vunpack.c.h.b16 %v390
    %v818 = vunpack.c.l.b16 %v391
    %v819 = vunpack.c.h.b16 %v391
    %v820 = vunpack.c.l.b16 %v392
    %v821 = vunpack.c.h.b16 %v392
    %v822 = vunpack.c.l.b16 %v393
    %v823 = vunpack.c.l.b16 %v394
    %v824 = vunpack.c.h.b16 %v394
    %v825 = vunpack.c.l.b16 %v395
    %v826 = vunpack.c.h.b16 %v395
    %v827 = vunpack.c.l.b16 %v396
    %v828 = vunpack.c.h.b16 %v396
    %v829 = vunpack.c.l.b16 %v397
    %v830 = vunpack.c.l.b16 %v398
    %v831 = vunpack.c.h.b16 %v398
    %v832 = vunpack.c.l.b16 %v399
    %v833 = vunpack.c.h.b16 %v399
    %v834 = vunpack.c.l.b16 %v400
    %v835 = vunpack.c.h.b16 %v400
    %v836 = vunpack.c.l.b16 %v401
    %v837 = vunpack.c.l.b16 %v402
    %v838 = vunpack.c.h.b16 %v402
    %v839 = vunpack.c.l.b16 %v403
    %v840 = vunpack.c.h.b16 %v403
    %v841 = vunpack.c.l.b16 %v404
    %v842 = vunpack.c.h.b16 %v404
    %v843 = vunpack.c.l.b16 %v405
    %v844 = vunpack.c.l.b16 %v406
    %v845 = vunpack.c.h.b16 %v406
    %v846 = vunpack.c.l.b16 %v407
    %v847 = vunpack.c.h.b16 %v407
    %v848 = vunpack.c.l.b16 %v408
    %v849 = vunpack.c.h.b16 %v408
    %v850 = vunpack.c.l.b16 %v409
    %v851 = vunpack.c.l.b16 %v410
    %v852 = vunpack.c.h.b16 %v410
    %v853 = vunpack.c.l.b16 %v411
    %v854 = vunpack.c.h.b16 %v411
    %v855 = vunpack.c.l.b16 %v412
    %v856 = vunpack.c.h.b16 %v412
    %v857 = vunpack.c.l.b16 %v413
    %v858 = vunpack.c.l.b16 %v414
    %v859 = vunpack.c.h.b16 %v414
    %v860 = vunpack.c.l.b16 %v415
    %v861 = vunpack.c.h.b16 %v415
    %v862 = vunpack.c.l.b16 %v416
    %v863 = vunpack.c.h.b16 %v416
    %v864 = vunpack.c.l.b16 %v417
    %v865 = vunpack.c.l.b16 %v418
    %v866 = vunpack.c.h.b16 %v418
    %v867 = vunpack.c.l.b16 %v419
    %v868 = vunpack.c.h.b16 %v419
    %v869 = vunpack.c.l.b16 %v420
    %v870 = vunpack.c.h.b16 %v420
    %v871 = vunpack.c.l.b16 %v421
    %v872 = vunpack.c.l.b16 %v422
    %v873 = vunpack.c.h.b16 %v422
    %v874 = vunpack.c.l.b16 %v423
    %v875 = vunpack.c.h.b16 %v423
    %v876 = vunpack.c.l.b16 %v424
    %v877 = vunpack.c.h.b16 %v424
    %v878 = vunpack.c.l.b16 %v425
    %v879 = vunpack.c.l.b16 %v426
    %v880 = vunpack.c.h.b16 %v426
    %v881 = vunpack.c.l.b16 %v427
    %v882 = vunpack.c.h.b16 %v427
    %v883 = vunpack.c.l.b16 %v428
    %v884 = vunpack.c.h.b16 %v428
    %v885 = vunpack.c.l.b16 %v429
    %v886 = vunpack.c.l.b16 %v430
    %v887 = vunpack.c.h.b16 %v430
    %v888 = vunpack.c.l.b16 %v431
    %v889 = vunpack.c.h.b16 %v431
    %v890 = vunpack.c.l.b16 %v432
    %v891 = vunpack.c.h.b16 %v432
    %v892 = vunpack.c.l.b16 %v433
    %v893 = vunpack.c.l.b16 %v434
    %v894 = vunpack.c.h.b16 %v434
    %v895 = vunpack.c.l.b16 %v435
    %v896 = vunpack.c.h.b16 %v435
    %v897 = vunpack.c.l.b16 %v436
    %v898 = vunpack.c.h.b16 %v436
    %v899 = vunpack.c.l.b16 %v437
    %v900 = vunpack.c.l.b16 %v438
    %v901 = vunpack.c.h.b16 %v438
    %v902 = vunpack.c.l.b16 %v439
    %v903 = vunpack.c.h.b16 %v439
    %v904 = vunpack.c.l.b16 %v440
    %v905 = vunpack.c.h.b16 %v440
    %v906 = vunpack.c.l.b16 %v441
    %v907 = vunpack.c.l.b16 %v442
    %v908 = vunpack.c.h.b16 %v442
    %v909 = vunpack.c.l.b16 %v443
    %v910 = vunpack.c.h.b16 %v443
    %v911 = vunpack.c.l.b16 %v444
    %v912 = vunpack.c.h.b16 %v444
    %v913 = vunpack.c.l.b16 %v445
    %v914 = vunpack.c.l.b16 %v446
    %v915 = vunpack.c.h.b16 %v446
    %v916 = vunpack.c.l.b16 %v447
    %v917 = vunpack.c.h.b16 %v447
    %v918 = vunpack.c.l.b16 %v448
    %v919 = vunpack.c.h.b16 %v448
    %v920 = vunpack.c.l.b16 %v449
    %v921 = vunpack.c.l.b16 %v450
    %v922 = vunpack.c.h.b16 %v450
    %v923 = vunpack.c.l.b16 %v451
    %v924 = vunpack.c.h.b16 %v451
    %v925 = vunpack.c.l.b16 %v452
    %v926 = vunpack.c.h.b16 %v452
    %v927 = vunpack.c.l.b16 %v453
    %v928 = vunpack.c.l.b16 %v454
    %v929 = vunpack.c.h.b16 %v454
    %v930 = vunpack.c.l.b16 %v455
    %v931 = vunpack.c.h.b16 %v455
    %v932 = vunpack.c.l.b16 %v456
    %v933 = vunpack.c.h.b16 %v456
    %v934 = vunpack.c.l.b16 %v457
    %v935 = vpack.c.b16 %v662, %v655
    %v936 = vpack.c.b16 %v663, %v656
    %v937 = vpack.c.b16 %v664, %v657
    %v938 = vpack.c.b16 %v665, %v658
    %v939 = vpack.c.b16 %v666, %v659
    %v940 = vpack.c.b16 %v667, %v660
    %v941 = vpack.c.b16 %v668, %v661
    %v942 = vpack.c.b16 %v676, %v669
    %v943 = vpack.c.b16 %v677, %v670
    %v944 = vpack.c.b16 %v678, %v671
    %v945 = vpack.c.b16 %v679, %v672
    %v946 = vpack.c.b16 %v680, %v673
    %v947 = vpack.c.b16 %v681, %v674
    %v948 = vpack.c.b16 %v682, %v675
    %v949 = vpack.c.b16 %v690, %v683
    %v950 = vpack.c.b16 %v691, %v684
    %v951 = vpack.c.b16 %v692, %v685
    %v952 = vpack.c.b16 %v693, %v686
    %v953 = vpack.c.b16 %v694, %v687
    %v954 = vpack.c.b16 %v695, %v688
    %v955 = vpack.c.b16 %v696, %v689
    %v956 = vpack.c.b16 %v704, %v697
    %v957 = vpack.c.b16 %v705, %v698
    %v958 = vpack.c.b16 %v706, %v699
    %v959 = vpack.c.b16 %v707, %v700
    %v960 = vpack.c.b16 %v708, %v701
    %v961 = vpack.c.b16 %v709, %v702
    %v962 = vpack.c.b16 %v710, %v703
    %v963 = vpack.c.b16 %v718, %v711
    %v964 = vpack.c.b16 %v719, %v712
    %v965 = vpack.c.b16 %v720, %v713
    %v966 = vpack.c.b16 %v721, %v714
    %v967 = vpack.c.b16 %v722, %v715
    %v968 = vpack.c.b16 %v723, %v716
    %v969 = vpack.c.b16 %v724, %v717
    %v970 = vpack.c.b16 %v732, %v725
    %v971 = vpack.c.b16 %v733, %v726
    %v972 = vpack.c.b16 %v734, %v727
    %v973 = vpack.c.b16 %v735, %v728
    %v974 = vpack.c.b16 %v736, %v729
    %v975 = vpack.c.b16 %v737, %v730
    %v976 = vpack.c.b16 %v738, %v731
    %v977 = vpack.c.b16 %v746, %v739
    %v978 = vpack.c.b16 %v747, %v740
    %v979 = vpack.c.b16 %v748, %v741
    %v980 = vpack.c.b16 %v749, %v742
    %v981 = vpack.c.b16 %v750, %v743
    %v982 = vpack.c.b16 %v751, %v744
    %v983 = vpack.c.b16 %v752, %v745
    %v984 = vpack.c.b16 %v760, %v753
    %v985 = vpack.c.b16 %v761, %v754
    %v986 = vpack.c.b16 %v762, %v755
    %v987 = vpack.c.b16 %v763, %v756
    %v988 = vpack.c.b16 %v764, %v757
    %v989 = vpack.c.b16 %v765, %v758
    %v990 = vpack.c.b16 %v766, %v759
    %v991 = vpack.c.b16 %v774, %v767
    %v992 = vpack.c.b16 %v775, %v768
    %v993 = vpack.c.b16 %v776, %v769
    %v994 = vpack.c.b16 %v777, %v770
    %v995 = vpack.c.b16 %v778, %v771
    %v996 = vpack.c.b16 %v779, %v772
    %v997 = vpack.c.b16 %v780, %v773
    %v998 = vpack.c.b16 %v788, %v781
    %v999 = vpack.c.b16 %v789, %v782
    %v1000 = vpack.c.b16 %v790, %v783
    %v1001 = vpack.c.b16 %v791, %v784
    %v1002 = vpack.c.b16 %v792, %v785
    %v1003 = vpack.c.b16 %v793, %v786
    %v1004 = vpack.c.b16 %v794, %v787
    %v1005 = vpack.c.b16 %v802, %v795
    %v1006 = vpack.c.b16 %v803, %v796
    %v1007 = vpack.c.b16 %v804, %v797
    %v1008 = vpack.c.b16 %v805, %v798
    %v1009 = vpack.c.b16 %v806, %v799
    %v1010 = vpack.c.b16 %v807, %v800
    %v1011 = vpack.c.b16 %v808, %v801
    %v1012 = vpack.c.b16 %v816, %v809
    %v1013 = vpack.c.b16 %v817, %v810
    %v1014 = vpack.c.b16 %v818, %v811
    %v1015 = vpack.c.b16 %v819, %v812
    %v1016 = vpack.c.b16 %v820, %v813
    %v1017 = vpack.c.b16 %v821, %v814
    %v1018 = vpack.c.b16 %v822, %v815
    %v1019 = vpack.c.b16 %v830, %v823
    %v1020 = vpack.c.b16 %v831, %v824
    %v1021 = vpack.c.b16 %v832, %v825
    %v1022 = vpack.c.b16 %v833, %v826
    %v1023 = vpack.c.b16 %v834, %v827
    %v1024 = vpack.c.b16 %v835, %v828
    %v1025 = vpack.c.b16 %v836, %v829
    %v1026 = vpack.c.b16 %v844, %v837
    %v1027 = vpack.c.b16 %v845, %v838
    %v1028 = vpack.c.b16 %v846, %v839
    %v1029 = vpack.c.b16 %v847, %v840
    %v1030 = vpack.c.b16 %v848, %v841
    %v1031 = vpack.c.b16 %v849, %v842
    %v1032 = vpack.c.b16 %v850, %v843
    %v1033 = vpack.c.b16 %v858, %v851
    %v1034 = vpack.c.b16 %v859, %v852
    %v1035 = vpack.c.b16 %v860, %v853
    %v1036 = vpack.c.b16 %v861, %v854
    %v1037 = vpack.c.b16 %v862, %v855
    %v1038 = vpack.c.b16 %v863, %v856
    %v1039 = vpack.c.b16 %v864, %v857
    %v1040 = vpack.c.b16 %v872, %v865
    %v1041 = vpack.c.b16 %v873, %v866
    %v1042 = vpack.c.b16 %v874, %v867
    %v1043 = vpack.c.b16 %v875, %v868
    %v1044 = vpack.c.b16 %v876, %v869
    %v1045 = vpack.c.b16 %v877, %v870
    %v1046 = vpack.c.b16 %v878, %v871
    %v1047 = vpack.c.b16 %v886, %v879
    %v1048 = vpack.c.b16 %v887, %v880
    %v1049 = vpack.c.b16 %v888, %v881
    %v1050 = vpack.c.b16 %v889, %v882
    %v1051 = vpack.c.b16 %v890, %v883
    %v1052 = vpack.c.b16 %v891, %v884
    %v1053 = vpack.c.b16 %v892, %v885
    %v1054 = vpack.c.b16 %v900, %v893
    %v1055 = vpack.c.b16 %v901, %v894
    %v1056 = vpack.c.b16 %v902, %v895
    %v1057 = vpack.c.b16 %v903, %v896
    %v1058 = vpack.c.b16 %v904, %v897
    %v1059 = vpack.c.b16 %v905, %v898
    %v1060 = vpack.c.b16 %v906, %v899
    %v1061 = vpack.c.b16 %v914, %v907
    %v1062 = vpack.c.b16 %v915, %v908
    %v1063 = vpack.c.b16 %v916, %v909
    %v1064 = vpack.c.b16 %v917, %v910
    %v1065 = vpack.c.b16 %v918, %v911
    %v1066 = vpack.c.b16 %v919, %v912
    %v1067 = vpack.c.b16 %v920, %v913
    %v1068 = vpack.c.b16 %v928, %v921
    %v1069 = vpack.c.b16 %v929, %v922
    %v1070 = vpack.c.b16 %v930, %v923
    %v1071 = vpack.c.b16 %v931, %v924
    %v1072 = vpack.c.b16 %v932, %v925
    %v1073 = vpack.c.b16 %v933, %v926
    %v1074 = vpack.c.b16 %v934, %v927
    %vm1215 = vcmask 523264
    %v1217 = vsel %vm1215, %v297, 0
    %1219 = vmatprep.subr.bf16.mxu0 %v936
    %1220 = vmatpush1.bf16.msra.mxu0 %v935
    %1221 = vmatprep.subr.bf16.mxu0 %v943
    %1222 = vmatpush1.bf16.msra.mxu0 %v942
    %1223 = vmatprep.subr.bf16.mxu0 %v950
    %1224 = vmatpush1.bf16.msra.mxu0 %v949
    %1225 = vmatprep.subr.bf16.mxu0 %v957
    %1226 = vmatpush1.bf16.msra.mxu0 %v956
    %1227 = vmatprep.subr.bf16.mxu0 %v964
    %1228 = vmatpush1.bf16.msra.mxu0 %v963
    %1229 = vmatprep.subr.bf16.mxu0 %v971
    %1230 = vmatpush1.bf16.msra.mxu0 %v970
    %1231 = vmatprep.subr.bf16.mxu0 %v978
    %1232 = vmatpush1.bf16.msra.mxu0 %v977
    %1233 = vmatprep.subr.bf16.mxu0 %v985
    %1234 = vmatpush1.bf16.msra.mxu0 %v984
    %1235 = vmatprep.subr.bf16.mxu0 %v992
    %1236 = vmatpush1.bf16.msra.mxu0 %v991
    %1237 = vmatprep.subr.bf16.mxu0 %v999
    %1238 = vmatpush1.bf16.msra.mxu0 %v998
    %1239 = vmatprep.subr.bf16.mxu0 %v1006
    %1240 = vmatpush1.bf16.msra.mxu0 %v1005
    %1241 = vmatprep.subr.bf16.mxu0 %v1013
    %1242 = vmatpush1.bf16.msra.mxu0 %v1012
    %1243 = vmatprep.subr.bf16.mxu0 %v1020
    %1244 = vmatpush1.bf16.msra.mxu0 %v1019
    %1245 = vmatprep.subr.bf16.mxu0 %v1027
    %1246 = vmatpush1.bf16.msra.mxu0 %v1026
    %1247 = vmatprep.subr.bf16.mxu0 %v1034
    %1248 = vmatpush1.bf16.msra.mxu0 %v1033
    %1249 = vmatprep.subr.bf16.mxu0 %v1041
    %1250 = vmatpush1.bf16.msra.mxu0 %v1040
    %1251 = vmatprep.mubr.bf16.mxu0 %v296
    %1252 = vmatmul.mubr.bf16.gmra.mrb[0].mxu0 %v295
    %v1253 = vpop.f32.mrb[0].mxu0
    %v1254 = vadd.f32 %v463, %v1253
    %v1255 = vpop.f32.mrb[0].mxu0
    %v1256 = vadd.f32 %v467, %v1255
    %v1257 = vpop.f32.mrb[0].mxu0
    %v1258 = vpop.f32.mrb[0].mxu0
    %1259 = vdwg.mxu0
    %1260 = vmatprep.subr.bf16.mxu0 %v1048
    %1261 = vmatpush1.bf16.msra.mxu0 %v1047
    %1262 = vmatprep.subr.bf16.mxu0 %v1055
    %1263 = vmatpush1.bf16.msra.mxu0 %v1054
    %1264 = vmatprep.subr.bf16.mxu0 %v1062
    %1265 = vmatpush1.bf16.msra.mxu0 %v1061
    %1266 = vmatprep.subr.bf16.mxu0 %v1069
    %1267 = vmatpush1.bf16.msra.mxu0 %v1068
    %1268 = vmatprep.subr.bf16.mxu0 0
    %1269 = vmatpush1.bf16.msra.mxu0 0
    %1270 = vmatprep.subr.bf16.mxu0 0
    %1271 = vmatpush1.bf16.msra.mxu0 0
    %1272 = vmatprep.subr.bf16.mxu0 0
    %1273 = vmatpush1.bf16.msra.mxu0 0
    %1274 = vmatprep.subr.bf16.mxu0 0
    %1275 = vmatpush1.bf16.msra.mxu0 0
    %1276 = vmatprep.subr.bf16.mxu0 0
    %1277 = vmatpush1.bf16.msra.mxu0 0
    %1278 = vmatprep.subr.bf16.mxu0 0
    %1279 = vmatpush1.bf16.msra.mxu0 0
    %1280 = vmatprep.subr.bf16.mxu0 0
    %1281 = vmatpush1.bf16.msra.mxu0 0
    %1282 = vmatprep.subr.bf16.mxu0 0
    %1283 = vmatpush1.bf16.msra.mxu0 0
    %1284 = vmatprep.subr.bf16.mxu0 0
    %1285 = vmatpush1.bf16.msra.mxu0 0
    %1286 = vmatprep.subr.bf16.mxu0 0
    %1287 = vmatpush1.bf16.msra.mxu0 0
    %1288 = vmatprep.subr.bf16.mxu0 0
    %1289 = vmatpush1.bf16.msra.mxu0 0
    %1290 = vmatprep.subr.bf16.mxu0 0
    %1291 = vmatpush1.bf16.msra.mxu0 0
    %1292 = vmatprep.mubr.bf16.mxu0 0
    %1293 = vmatmul.mubr.bf16.gmra.mrb[0].mxu0 %v1217
    %v1294 = vpop.f32.mrb[0].mxu0
    %v1295 = vadd.f32 %v1254, %v1294
    %v1296 = vpop.f32.mrb[0].mxu0
    %v1297 = vadd.f32 %v1256, %v1296
    %v1298 = vpop.f32.mrb[0].mxu0
    %v1299 = vpop.f32.mrb[0].mxu0
    %1300 = vdwg.mxu0
    %1301 = vmatprep.subr.bf16.mxu0 %v938
    %1302 = vmatpush1.bf16.msra.mxu0 %v937
    %1303 = vmatprep.subr.bf16.mxu0 %v945
    %1304 = vmatpush1.bf16.msra.mxu0 %v944
    %1305 = vmatprep.subr.bf16.mxu0 %v952
    %1306 = vmatpush1.bf16.msra.mxu0 %v951
    %1307 = vmatprep.subr.bf16.mxu0 %v959
    %1308 = vmatpush1.bf16.msra.mxu0 %v958
    %1309 = vmatprep.subr.bf16.mxu0 %v966
    %1310 = vmatpush1.bf16.msra.mxu0 %v965
    %1311 = vmatprep.subr.bf16.mxu0 %v973
    %1312 = vmatpush1.bf16.msra.mxu0 %v972
    %1313 = vmatprep.subr.bf16.mxu0 %v980
    %1314 = vmatpush1.bf16.msra.mxu0 %v979
    %1315 = vmatprep.subr.bf16.mxu0 %v987
    %1316 = vmatpush1.bf16.msra.mxu0 %v986
    %1317 = vmatprep.subr.bf16.mxu0 %v994
    %1318 = vmatpush1.bf16.msra.mxu0 %v993
    %1319 = vmatprep.subr.bf16.mxu0 %v1001
    %1320 = vmatpush1.bf16.msra.mxu0 %v1000
    %1321 = vmatprep.subr.bf16.mxu0 %v1008
    %1322 = vmatpush1.bf16.msra.mxu0 %v1007
    %1323 = vmatprep.subr.bf16.mxu0 %v1015
    %1324 = vmatpush1.bf16.msra.mxu0 %v1014
    %1325 = vmatprep.subr.bf16.mxu0 %v1022
    %1326 = vmatpush1.bf16.msra.mxu0 %v1021
    %1327 = vmatprep.subr.bf16.mxu0 %v1029
    %1328 = vmatpush1.bf16.msra.mxu0 %v1028
    %1329 = vmatprep.subr.bf16.mxu0 %v1036
    %1330 = vmatpush1.bf16.msra.mxu0 %v1035
    %1331 = vmatprep.subr.bf16.mxu0 %v1043
    %1332 = vmatpush1.bf16.msra.mxu0 %v1042
    %1333 = vmatprep.mubr.bf16.mxu0 %v296
    %1334 = vmatmul.mubr.bf16.gmra.mrb[0].mxu0 %v295
    %v1335 = vpop.f32.mrb[0].mxu0
    %v1336 = vadd.f32 %v471, %v1335
    %v1337 = vpop.f32.mrb[0].mxu0
    %v1338 = vadd.f32 %v475, %v1337
    %v1339 = vpop.f32.mrb[0].mxu0
    %v1340 = vpop.f32.mrb[0].mxu0
    %1341 = vdwg.mxu0
    %1342 = vmatprep.subr.bf16.mxu0 %v1050
    %1343 = vmatpush1.bf16.msra.mxu0 %v1049
    %1344 = vmatprep.subr.bf16.mxu0 %v1057
    %1345 = vmatpush1.bf16.msra.mxu0 %v1056
    %1346 = vmatprep.subr.bf16.mxu0 %v1064
    %1347 = vmatpush1.bf16.msra.mxu0 %v1063
    %1348 = vmatprep.subr.bf16.mxu0 %v1071
    %1349 = vmatpush1.bf16.msra.mxu0 %v1070
    %1350 = vmatprep.subr.bf16.mxu0 0
    %1351 = vmatpush1.bf16.msra.mxu0 0
    %1352 = vmatprep.subr.bf16.mxu0 0
    %1353 = vmatpush1.bf16.msra.mxu0 0
    %1354 = vmatprep.subr.bf16.mxu0 0
    %1355 = vmatpush1.bf16.msra.mxu0 0
    %1356 = vmatprep.subr.bf16.mxu0 0
    %1357 = vmatpush1.bf16.msra.mxu0 0
    %1358 = vmatprep.subr.bf16.mxu0 0
    %1359 = vmatpush1.bf16.msra.mxu0 0
    %1360 = vmatprep.subr.bf16.mxu0 0
    %1361 = vmatpush1.bf16.msra.mxu0 0
    %1362 = vmatprep.subr.bf16.mxu0 0
    %1363 = vmatpush1.bf16.msra.mxu0 0
    %1364 = vmatprep.subr.bf16.mxu0 0
    %1365 = vmatpush1.bf16.msra.mxu0 0
    %1366 = vmatprep.subr.bf16.mxu0 0
    %1367 = vmatpush1.bf16.msra.mxu0 0
    %1368 = vmatprep.subr.bf16.mxu0 0
    %1369 = vmatpush1.bf16.msra.mxu0 0
    %1370 = vmatprep.subr.bf16.mxu0 0
    %1371 = vmatpush1.bf16.msra.mxu0 0
    %1372 = vmatprep.subr.bf16.mxu0 0
    %1373 = vmatpush1.bf16.msra.mxu0 0
    %1374 = vmatprep.mubr.bf16.mxu0 0
    %1375 = vmatmul.mubr.bf16.gmra.mrb[0].mxu0 %v1217
    %v1376 = vpop.f32.mrb[0].mxu0
    %v1377 = vadd.f32 %v1336, %v1376
    %v1378 = vpop.f32.mrb[0].mxu0
    %v1379 = vadd.f32 %v1338, %v1378
    %v1380 = vpop.f32.mrb[0].mxu0
    %v1381 = vpop.f32.mrb[0].mxu0
    %1382 = vdwg.mxu0
    %1383 = vmatprep.subr.bf16.mxu0 %v940
    %1384 = vmatpush1.bf16.msra.mxu0 %v939
    %1385 = vmatprep.subr.bf16.mxu0 %v947
    %1386 = vmatpush1.bf16.msra.mxu0 %v946
    %1387 = vmatprep.subr.bf16.mxu0 %v954
    %1388 = vmatpush1.bf16.msra.mxu0 %v953
    %1389 = vmatprep.subr.bf16.mxu0 %v961
    %1390 = vmatpush1.bf16.msra.mxu0 %v960
    %1391 = vmatprep.subr.bf16.mxu0 %v968
    %1392 = vmatpush1.bf16.msra.mxu0 %v967
    %1393 = vmatprep.subr.bf16.mxu0 %v975
    %1394 = vmatpush1.bf16.msra.mxu0 %v974
    %1395 = vmatprep.subr.bf16.mxu0 %v982
    %1396 = vmatpush1.bf16.msra.mxu0 %v981
    %1397 = vmatprep.subr.bf16.mxu0 %v989
    %1398 = vmatpush1.bf16.msra.mxu0 %v988
    %1399 = vmatprep.subr.bf16.mxu0 %v996
    %1400 = vmatpush1.bf16.msra.mxu0 %v995
    %1401 = vmatprep.subr.bf16.mxu0 %v1003
    %1402 = vmatpush1.bf16.msra.mxu0 %v1002
    %1403 = vmatprep.subr.bf16.mxu0 %v1010
    %1404 = vmatpush1.bf16.msra.mxu0 %v1009
    %1405 = vmatprep.subr.bf16.mxu0 %v1017
    %1406 = vmatpush1.bf16.msra.mxu0 %v1016
    %1407 = vmatprep.subr.bf16.mxu0 %v1024
    %1408 = vmatpush1.bf16.msra.mxu0 %v1023
    %1409 = vmatprep.subr.bf16.mxu0 %v1031
    %1410 = vmatpush1.bf16.msra.mxu0 %v1030
    %1411 = vmatprep.subr.bf16.mxu0 %v1038
    %1412 = vmatpush1.bf16.msra.mxu0 %v1037
    %1413 = vmatprep.subr.bf16.mxu0 %v1045
    %1414 = vmatpush1.bf16.msra.mxu0 %v1044
    %1415 = vmatprep.mubr.bf16.mxu0 %v296
    %1416 = vmatmul.mubr.bf16.gmra.mrb[0].mxu0 %v295
    %v1417 = vpop.f32.mrb[0].mxu0
    %v1418 = vadd.f32 %v479, %v1417
    %v1419 = vpop.f32.mrb[0].mxu0
    %v1420 = vadd.f32 %v483, %v1419
    %v1421 = vpop.f32.mrb[0].mxu0
    %v1422 = vpop.f32.mrb[0].mxu0
    %1423 = vdwg.mxu0
    %1424 = vmatprep.subr.bf16.mxu0 %v1052
    %1425 = vmatpush1.bf16.msra.mxu0 %v1051
    %1426 = vmatprep.subr.bf16.mxu0 %v1059
    %1427 = vmatpush1.bf16.msra.mxu0 %v1058
    %1428 = vmatprep.subr.bf16.mxu0 %v1066
    %1429 = vmatpush1.bf16.msra.mxu0 %v1065
    %1430 = vmatprep.subr.bf16.mxu0 %v1073
    %1431 = vmatpush1.bf16.msra.mxu0 %v1072
    %1432 = vmatprep.subr.bf16.mxu0 0
    %1433 = vmatpush1.bf16.msra.mxu0 0
    %1434 = vmatprep.subr.bf16.mxu0 0
    %1435 = vmatpush1.bf16.msra.mxu0 0
    %1436 = vmatprep.subr.bf16.mxu0 0
    %1437 = vmatpush1.bf16.msra.mxu0 0
    %1438 = vmatprep.subr.bf16.mxu0 0
    %1439 = vmatpush1.bf16.msra.mxu0 0
    %1440 = vmatprep.subr.bf16.mxu0 0
    %1441 = vmatpush1.bf16.msra.mxu0 0
    %1442 = vmatprep.subr.bf16.mxu0 0
    %1443 = vmatpush1.bf16.msra.mxu0 0
    %1444 = vmatprep.subr.bf16.mxu0 0
    %1445 = vmatpush1.bf16.msra.mxu0 0
    %1446 = vmatprep.subr.bf16.mxu0 0
    %1447 = vmatpush1.bf16.msra.mxu0 0
    %1448 = vmatprep.subr.bf16.mxu0 0
    %1449 = vmatpush1.bf16.msra.mxu0 0
    %1450 = vmatprep.subr.bf16.mxu0 0
    %1451 = vmatpush1.bf16.msra.mxu0 0
    %1452 = vmatprep.subr.bf16.mxu0 0
    %1453 = vmatpush1.bf16.msra.mxu0 0
    %1454 = vmatprep.subr.bf16.mxu0 0
    %1455 = vmatpush1.bf16.msra.mxu0 0
    %1456 = vmatprep.mubr.bf16.mxu0 0
    %1457 = vmatmul.mubr.bf16.gmra.mrb[0].mxu0 %v1217
    %v1458 = vpop.f32.mrb[0].mxu0
    %v1459 = vadd.f32 %v1418, %v1458
    %v1460 = vpop.f32.mrb[0].mxu0
    %v1461 = vadd.f32 %v1420, %v1460
    %v1462 = vpop.f32.mrb[0].mxu0
    %v1463 = vpop.f32.mrb[0].mxu0
    %1464 = vdwg.mxu0
    %1465 = vmatprep.subr.bf16.mxu0 0
    %1466 = vmatpush1.bf16.msra.mxu0 %v941
    %1467 = vmatprep.subr.bf16.mxu0 0
    %1468 = vmatpush1.bf16.msra.mxu0 %v948
    %1469 = vmatprep.subr.bf16.mxu0 0
    %1470 = vmatpush1.bf16.msra.mxu0 %v955
    %1471 = vmatprep.subr.bf16.mxu0 0
    %1472 = vmatpush1.bf16.msra.mxu0 %v962
    %1473 = vmatprep.subr.bf16.mxu0 0
    %1474 = vmatpush1.bf16.msra.mxu0 %v969
    %1475 = vmatprep.subr.bf16.mxu0 0
    %1476 = vmatpush1.bf16.msra.mxu0 %v976
    %1477 = vmatprep.subr.bf16.mxu0 0
    %1478 = vmatpush1.bf16.msra.mxu0 %v983
    %1479 = vmatprep.subr.bf16.mxu0 0
    %1480 = vmatpush1.bf16.msra.mxu0 %v990
    %1481 = vmatprep.subr.bf16.mxu0 0
    %1482 = vmatpush1.bf16.msra.mxu0 %v997
    %1483 = vmatprep.subr.bf16.mxu0 0
    %1484 = vmatpush1.bf16.msra.mxu0 %v1004
    %1485 = vmatprep.subr.bf16.mxu0 0
    %1486 = vmatpush1.bf16.msra.mxu0 %v1011
    %1487 = vmatprep.subr.bf16.mxu0 0
    %1488 = vmatpush1.bf16.msra.mxu0 %v1018
    %1489 = vmatprep.subr.bf16.mxu0 0
    %1490 = vmatpush1.bf16.msra.mxu0 %v1025
    %1491 = vmatprep.subr.bf16.mxu0 0
    %1492 = vmatpush1.bf16.msra.mxu0 %v1032
    %1493 = vmatprep.subr.bf16.mxu0 0
    %1494 = vmatpush1.bf16.msra.mxu0 %v1039
    %1495 = vmatprep.subr.bf16.mxu0 0
    %1496 = vmatpush1.bf16.msra.mxu0 %v1046
    %1497 = vmatprep.mubr.bf16.mxu0 %v296
    %1498 = vmatmul.mubr.bf16.gmra.mrb[0].mxu0 %v295
    %v1499 = vpop.f32.mrb[0].mxu0
    %v1500 = vadd.f32 %v487, %v1499
    %v1501 = vpop.f32.mrb[0].mxu0
    %v1502 = vpop.f32.mrb[0].mxu0
    %v1503 = vpop.f32.mrb[0].mxu0
    %1504 = vdwg.mxu0
    %1505 = vmatprep.subr.bf16.mxu0 0
    %1506 = vmatpush1.bf16.msra.mxu0 %v1053
    %1507 = vmatprep.subr.bf16.mxu0 0
    %1508 = vmatpush1.bf16.msra.mxu0 %v1060
    %1509 = vmatprep.subr.bf16.mxu0 0
    %1510 = vmatpush1.bf16.msra.mxu0 %v1067
    %1511 = vmatprep.subr.bf16.mxu0 0
    %1512 = vmatpush1.bf16.msra.mxu0 %v1074
    %1513 = vmatprep.subr.bf16.mxu0 0
    %1514 = vmatpush1.bf16.msra.mxu0 0
    %1515 = vmatprep.subr.bf16.mxu0 0
    %1516 = vmatpush1.bf16.msra.mxu0 0
    %1517 = vmatprep.subr.bf16.mxu0 0
    %1518 = vmatpush1.bf16.msra.mxu0 0
    %1519 = vmatprep.subr.bf16.mxu0 0
    %1520 = vmatpush1.bf16.msra.mxu0 0
    %1521 = vmatprep.subr.bf16.mxu0 0
    %1522 = vmatpush1.bf16.msra.mxu0 0
    %1523 = vmatprep.subr.bf16.mxu0 0
    %1524 = vmatpush1.bf16.msra.mxu0 0
    %1525 = vmatprep.subr.bf16.mxu0 0
    %1526 = vmatpush1.bf16.msra.mxu0 0
    %1527 = vmatprep.subr.bf16.mxu0 0
    %1528 = vmatpush1.bf16.msra.mxu0 0
    %1529 = vmatprep.subr.bf16.mxu0 0
    %1530 = vmatpush1.bf16.msra.mxu0 0
    %1531 = vmatprep.subr.bf16.mxu0 0
    %1532 = vmatpush1.bf16.msra.mxu0 0
    %1533 = vmatprep.subr.bf16.mxu0 0
    %1534 = vmatpush1.bf16.msra.mxu0 0
    %1535 = vmatprep.subr.bf16.mxu0 0
    %1536 = vmatpush1.bf16.msra.mxu0 0
    %1537 = vmatprep.mubr.bf16.mxu0 0
    %1538 = vmatmul.mubr.bf16.gmra.mrb[0].mxu0 %v1217
    %v1539 = vpop.f32.mrb[0].mxu0
    %v1540 = vadd.f32 %v1500, %v1539
    %v1541 = vpop.f32.mrb[0].mxu0
    %v1542 = vpop.f32.mrb[0].mxu0
    %v1543 = vpop.f32.mrb[0].mxu0
    %1544 = vdwg.mxu0
    %v1545 = vmax.f32 %v1295, 0.0
    %v1546 = vmax.f32 %v1297, 0.0
    %v1547 = vmax.f32 %v1377, 0.0
    %v1548 = vmax.f32 %v1379, 0.0
    %v1549 = vmax.f32 %v1459, 0.0
    %v1550 = vmax.f32 %v1461, 0.0
    %v1551 = vmax.f32 %v1540, 0.0
    %v1552 = vpack.c.bf16 %v1545, %v1545
    %v1553 = vpack.c.bf16 %v1546, %v1546
    %v1554 = vpack.c.bf16 %v1547, %v1547
    %v1555 = vpack.c.bf16 %v1548, %v1548
    %v1556 = vpack.c.bf16 %v1549, %v1549
    %v1557 = vpack.c.bf16 %v1550, %v1550
    %v1558 = vpack.c.bf16 %v1551, %v1551
    %v1559 = vld [vmem:[#allocation4] sm:$0xff]
    %v1560 = vld [vmem:[#allocation4 + $0x8] sm:$0xff]
    %v1561 = vld [vmem:[#allocation4 + $0x10] sm:$0xff]
    %v1562 = vld [vmem:[#allocation4 + $0x18] sm:$0xff]
    %v1563 = vld [vmem:[#allocation4 + $0x20] sm:$0xff]
    %v1564 = vld [vmem:[#allocation4 + $0x28] sm:$0xff]
    %v1565 = vld [vmem:[#allocation4 + $0x30] sm:$0xff]
    %v1566 = vld [vmem:[#allocation4 + $0x38] sm:$0xff]
    %v1567 = vld [vmem:[#allocation4 + $0x40] sm:$0xff]
    %v1568 = vld [vmem:[#allocation4 + $0x48] sm:$0xff]
    %v1569 = vld [vmem:[#allocation4 + $0x50] sm:$0xff]
    %v1570 = vld [vmem:[#allocation4 + $0x58] sm:$0xff]
    %v1571 = vld [vmem:[#allocation4 + $0x60] sm:$0xff]
    %v1572 = vld [vmem:[#allocation4 + $0x68] sm:$0xff]
    %v1573 = vld [vmem:[#allocation4 + $0x70] sm:$0xff]
    %v1574 = vld [vmem:[#allocation4 + $0x78] sm:$0xff]
    %v1575 = vld [vmem:[#allocation4 + $0x80] sm:$0xff]
    %v1576 = vld [vmem:[#allocation4 + $0x88] sm:$0xff]
    %v1577 = vld [vmem:[#allocation4 + $0x90] sm:$0xff]
    %v1578 = vld [vmem:[#allocation4 + $0x98] sm:$0xff]
    %v1579 = vld [vmem:[#allocation4 + $0xa0] sm:$0xff]
    %v1580 = vld [vmem:[#allocation4 + $0xa8] sm:$0xff]
    %v1581 = vld [vmem:[#allocation4 + $0xb0] sm:$0xff]
    %v1582 = vld [vmem:[#allocation4 + $0xb8] sm:$0xff]
    %v1583 = vld [vmem:[#allocation4 + $0xc0] sm:$0xff]
    %v1584 = vld [vmem:[#allocation4 + $0xc8] sm:$0xff]
    %v1585 = vld [vmem:[#allocation4 + $0xd0] sm:$0xff]
    %v1586 = vld [vmem:[#allocation4 + $0xd8] sm:$0xff]
    %v1587 = vld [vmem:[#allocation4 + $0xe0] sm:$0xff]
    %v1588 = vld [vmem:[#allocation4 + $0xe8] sm:$0xff]
    %v1589 = vld [vmem:[#allocation4 + $0xf0] sm:$0xff]
    %v1590 = vld [vmem:[#allocation4 + $0xf8] sm:$0xff]
    %v1591 = vld [vmem:[#allocation4 + $0x100] sm:$0xff]
    %v1592 = vld [vmem:[#allocation4 + $0x108] sm:$0xff]
    %v1593 = vld [vmem:[#allocation4 + $0x110] sm:$0xff]
    %v1594 = vld [vmem:[#allocation4 + $0x118] sm:$0xff]
    %v1595 = vld [vmem:[#allocation4 + $0x120] sm:$0xff]
    %v1596 = vld [vmem:[#allocation4 + $0x128] sm:$0xff]
    %v1597 = vld [vmem:[#allocation4 + $0x130] sm:$0xff]
    %v1598 = vld [vmem:[#allocation4 + $0x138] sm:$0xff]
    %v1599 = vld [vmem:[#allocation4 + $0x140] sm:$0xff]
    %v1600 = vld [vmem:[#allocation4 + $0x148] sm:$0xff]
    %v1601 = vld [vmem:[#allocation4 + $0x150] sm:$0xff]
    %v1602 = vld [vmem:[#allocation4 + $0x158] sm:$0xff]
    %v1603 = vld [vmem:[#allocation4 + $0x160] sm:$0xff]
    %v1604 = vld [vmem:[#allocation4 + $0x168] sm:$0xff]
    %v1605 = vld [vmem:[#allocation4 + $0x170] sm:$0xff]
    %v1606 = vld [vmem:[#allocation4 + $0x178] sm:$0xff]
    %v1607 = vld [vmem:[#allocation4 + $0x180] sm:$0xff]
    %v1608 = vld [vmem:[#allocation4 + $0x188] sm:$0xff]
    %v1609 = vld [vmem:[#allocation4 + $0x190] sm:$0xff]
    %v1610 = vld [vmem:[#allocation4 + $0x198] sm:$0xff]
    %v1611 = vld [vmem:[#allocation4 + $0x1a0] sm:$0xff]
    %v1612 = vld [vmem:[#allocation4 + $0x1a8] sm:$0xff]
    %v1613 = vld [vmem:[#allocation4 + $0x1b0] sm:$0xff]
    %v1614 = vld [vmem:[#allocation4 + $0x1b8] sm:$0xff]
    %v1615 = vld [vmem:[#allocation4 + $0x1c0] sm:$0xff]
    %v1616 = vld [vmem:[#allocation4 + $0x1c8] sm:$0xff]
    %v1617 = vld [vmem:[#allocation4 + $0x1d0] sm:$0xff]
    %v1618 = vld [vmem:[#allocation4 + $0x1d8] sm:$0xff]
    %v1619 = vld [vmem:[#allocation4 + $0x1e0] sm:$0xff]
    %v1620 = vld [vmem:[#allocation4 + $0x1e8] sm:$0xff]
    %v1621 = vld [vmem:[#allocation4 + $0x1f0] sm:$0xff]
    %v1622 = vld [vmem:[#allocation4 + $0x1f8] sm:$0xff]
    %v1623 = vld [vmem:[#allocation4 + $0x200] sm:$0xff]
    %v1624 = vld [vmem:[#allocation4 + $0x208] sm:$0xff]
    %v1625 = vld [vmem:[#allocation4 + $0x210] sm:$0xff]
    %v1626 = vld [vmem:[#allocation4 + $0x218] sm:$0xff]
    %v1627 = vld [vmem:[#allocation4 + $0x220] sm:$0xff]
    %v1628 = vld [vmem:[#allocation4 + $0x228] sm:$0xff]
    %v1629 = vld [vmem:[#allocation4 + $0x230] sm:$0xff]
    %v1630 = vld [vmem:[#allocation4 + $0x238] sm:$0xff]
    %v1631 = vld [vmem:[#allocation4 + $0x240] sm:$0xff]
    %v1632 = vld [vmem:[#allocation4 + $0x248] sm:$0xff]
    %v1633 = vld [vmem:[#allocation4 + $0x250] sm:$0xff]
    %v1634 = vld [vmem:[#allocation4 + $0x258] sm:$0xff]
    %v1635 = vld [vmem:[#allocation4 + $0x260] sm:$0xff]
    %v1636 = vld [vmem:[#allocation4 + $0x268] sm:$0xff]
    %v1637 = vld [vmem:[#allocation4 + $0x270] sm:$0xff]
    %v1638 = vld [vmem:[#allocation4 + $0x278] sm:$0xff]
    %v1639 = vld [vmem:[#allocation4 + $0x280] sm:$0xff]
    %v1640 = vld [vmem:[#allocation4 + $0x288] sm:$0xff]
    %v1641 = vld [vmem:[#allocation4 + $0x290] sm:$0xff]
    %v1642 = vld [vmem:[#allocation4 + $0x298] sm:$0xff]
    %v1643 = vld [vmem:[#allocation4 + $0x2a0] sm:$0xff]
    %v1644 = vld [vmem:[#allocation4 + $0x2a8] sm:$0xff]
    %v1645 = vld [vmem:[#allocation4 + $0x2b0] sm:$0xff]
    %v1646 = vld [vmem:[#allocation4 + $0x2b8] sm:$0xff]
    %v1647 = vld [vmem:[#allocation4 + $0x2c0] sm:$0xff]
    %v1648 = vld [vmem:[#allocation4 + $0x2c8] sm:$0xff]
    %v1649 = vld [vmem:[#allocation4 + $0x2d0] sm:$0xff]
    %v1650 = vld [vmem:[#allocation4 + $0x2d8] sm:$0xff]
    %v1651 = vld [vmem:[#allocation4 + $0x2e0] sm:$0xff]
    %v1652 = vld [vmem:[#allocation4 + $0x2e8] sm:$0xff]
    %v1653 = vld [vmem:[#allocation4 + $0x2f0] sm:$0xff]
    %v1654 = vld [vmem:[#allocation4 + $0x2f8] sm:$0xff]
    %v1655 = vld [vmem:[#allocation4 + $0x300] sm:$0xff]
    %v1656 = vld [vmem:[#allocation4 + $0x308] sm:$0xff]
    %v1657 = vld [vmem:[#allocation4 + $0x310] sm:$0xff]
    %v1658 = vld [vmem:[#allocation4 + $0x318] sm:$0xff]
    %v1659 = vld [vmem:[#allocation4 + $0x320] sm:$0xff]
    %v1660 = vld [vmem:[#allocation4 + $0x328] sm:$0xff]
    %v1661 = vld [vmem:[#allocation4 + $0x330] sm:$0xff]
    %v1662 = vld [vmem:[#allocation4 + $0x338] sm:$0xff]
    %v1663 = vld [vmem:[#allocation4 + $0x340] sm:$0xff]
    %v1664 = vld [vmem:[#allocation4 + $0x348] sm:$0xff]
    %v1665 = vld [vmem:[#allocation4 + $0x350] sm:$0xff]
    %v1666 = vld [vmem:[#allocation4 + $0x358] sm:$0xff]
    %v1667 = vld [vmem:[#allocation4 + $0x360] sm:$0xff]
    %v1668 = vld [vmem:[#allocation4 + $0x368] sm:$0xff]
    %v1669 = vld [vmem:[#allocation4 + $0x370] sm:$0xff]
    %v1670 = vld [vmem:[#allocation4 + $0x378] sm:$0xff]
    %v1671 = vld [vmem:[#allocation4 + $0x380] sm:$0xff]
    %v1672 = vld [vmem:[#allocation4 + $0x388] sm:$0xff]
    %v1673 = vld [vmem:[#allocation4 + $0x390] sm:$0xff]
    %v1674 = vld [vmem:[#allocation4 + $0x398] sm:$0xff]
    %v1675 = vld [vmem:[#allocation4 + $0x3a0] sm:$0xff]
    %v1676 = vld [vmem:[#allocation4 + $0x3a8] sm:$0xff]
    %v1677 = vld [vmem:[#allocation4 + $0x3b0] sm:$0xff]
    %v1678 = vld [vmem:[#allocation4 + $0x3b8] sm:$0xff]
    %v1679 = vld [vmem:[#allocation4 + $0x3c0] sm:$0xff]
    %v1680 = vld [vmem:[#allocation4 + $0x3c8] sm:$0xff]
    %v1681 = vld [vmem:[#allocation4 + $0x3d0] sm:$0xff]
    %v1682 = vld [vmem:[#allocation4 + $0x3d8] sm:$0xff]
    %v1683 = vld [vmem:[#allocation4 + $0x3e0] sm:$0xff]
    %v1684 = vld [vmem:[#allocation4 + $0x3e8] sm:$0xff]
    %v1685 = vld [vmem:[#allocation4 + $0x3f0] sm:$0xff]
    %v1686 = vld [vmem:[#allocation4 + $0x3f8] sm:$0xff]
    %v1687 = vld [vmem:[#allocation4 + $0x400] sm:$0xff]
    %v1688 = vld [vmem:[#allocation4 + $0x408] sm:$0xff]
    %v1689 = vld [vmem:[#allocation4 + $0x410] sm:$0xff]
    %v1690 = vld [vmem:[#allocation4 + $0x418] sm:$0xff]
    %v1691 = vld [vmem:[#allocation4 + $0x420] sm:$0xff]
    %v1692 = vld [vmem:[#allocation4 + $0x428] sm:$0xff]
    %v1693 = vld [vmem:[#allocation4 + $0x430] sm:$0xff]
    %v1694 = vld [vmem:[#allocation4 + $0x438] sm:$0xff]
    %v1695 = vld [vmem:[#allocation4 + $0x440] sm:$0xff]
    %v1696 = vld [vmem:[#allocation4 + $0x448] sm:$0xff]
    %v1697 = vld [vmem:[#allocation4 + $0x450] sm:$0xff]
    %v1698 = vld [vmem:[#allocation4 + $0x458] sm:$0xff]
    %v1699 = vld [vmem:[#allocation4 + $0x460] sm:$0xff]
    %v1700 = vld [vmem:[#allocation4 + $0x468] sm:$0xff]
    %v1701 = vld [vmem:[#allocation4 + $0x470] sm:$0xff]
    %v1702 = vld [vmem:[#allocation4 + $0x478] sm:$0xff]
    %v1703 = vld [vmem:[#allocation4 + $0x480] sm:$0xff]
    %v1704 = vld [vmem:[#allocation4 + $0x488] sm:$0xff]
    %v1705 = vld [vmem:[#allocation4 + $0x490] sm:$0xff]
    %v1706 = vld [vmem:[#allocation4 + $0x498] sm:$0xff]
    %v1707 = vld [vmem:[#allocation4 + $0x4a0] sm:$0xff]
    %v1708 = vld [vmem:[#allocation4 + $0x4a8] sm:$0xff]
    %v1709 = vld [vmem:[#allocation4 + $0x4b0] sm:$0xff]
    %v1710 = vld [vmem:[#allocation4 + $0x4b8] sm:$0xff]
    %v1711 = vld [vmem:[#allocation4 + $0x4c0] sm:$0xff]
    %v1712 = vld [vmem:[#allocation4 + $0x4c8] sm:$0xff]
    %v1713 = vld [vmem:[#allocation4 + $0x4d0] sm:$0xff]
    %v1714 = vld [vmem:[#allocation4 + $0x4d8] sm:$0xff]
    %v1715 = vld [vmem:[#allocation4 + $0x4e0] sm:$0xff]
    %v1716 = vld [vmem:[#allocation4 + $0x4e8] sm:$0xff]
    %v1717 = vld [vmem:[#allocation4 + $0x4f0] sm:$0xff]
    %v1718 = vld [vmem:[#allocation4 + $0x4f8] sm:$0xff]
    %v1719 = vld [vmem:[#allocation4 + $0x500] sm:$0xff]
    %v1720 = vld [vmem:[#allocation4 + $0x508] sm:$0xff]
    %v1721 = vld [vmem:[#allocation4 + $0x510] sm:$0xff]
    %v1722 = vld [vmem:[#allocation4 + $0x518] sm:$0xff]
    %v1723 = vld [vmem:[#allocation4 + $0x520] sm:$0xff]
    %v1724 = vld [vmem:[#allocation4 + $0x528] sm:$0xff]
    %v1725 = vld [vmem:[#allocation4 + $0x530] sm:$0xff]
    %v1726 = vld [vmem:[#allocation4 + $0x538] sm:$0xff]
    %v1727 = vld [vmem:[#allocation4 + $0x540] sm:$0xff]
    %v1728 = vld [vmem:[#allocation4 + $0x548] sm:$0xff]
    %v1729 = vld [vmem:[#allocation4 + $0x550] sm:$0xff]
    %v1730 = vld [vmem:[#allocation4 + $0x558] sm:$0xff]
    %v1731 = vld [vmem:[#allocation4 + $0x560] sm:$0xff]
    %v1732 = vld [vmem:[#allocation4 + $0x568] sm:$0xff]
    %v1733 = vld [vmem:[#allocation4 + $0x570] sm:$0xff]
    %v1734 = vld [vmem:[#allocation4 + $0x578] sm:$0xff]
    %v1735 = vld [vmem:[#allocation4 + $0x580] sm:$0xff]
    %v1736 = vld [vmem:[#allocation4 + $0x588] sm:$0xff]
    %v1737 = vld [vmem:[#allocation4 + $0x590] sm:$0xff]
    %v1738 = vld [vmem:[#allocation4 + $0x598] sm:$0xff]
    %v1739 = vld [vmem:[#allocation4 + $0x5a0] sm:$0xff]
    %v1740 = vld [vmem:[#allocation4 + $0x5a8] sm:$0xff]
    %v1741 = vld [vmem:[#allocation4 + $0x5b0] sm:$0xff]
    %v1742 = vld [vmem:[#allocation4 + $0x5b8] sm:$0xff]
    %v1743 = vld [vmem:[#allocation4 + $0x5c0] sm:$0xff]
    %v1744 = vld [vmem:[#allocation4 + $0x5c8] sm:$0xff]
    %v1745 = vld [vmem:[#allocation4 + $0x5d0] sm:$0xff]
    %v1746 = vld [vmem:[#allocation4 + $0x5d8] sm:$0xff]
    %v1747 = vld [vmem:[#allocation4 + $0x5e0] sm:$0xff]
    %v1748 = vld [vmem:[#allocation4 + $0x5e8] sm:$0xff]
    %v1749 = vld [vmem:[#allocation4 + $0x5f0] sm:$0xff]
    %v1750 = vld [vmem:[#allocation4 + $0x5f8] sm:$0xff]
    %v1751 = vld [vmem:[#allocation4 + $0x600] sm:$0xff]
    %v1752 = vld [vmem:[#allocation4 + $0x608] sm:$0xff]
    %v1753 = vld [vmem:[#allocation4 + $0x610] sm:$0xff]
    %v1754 = vld [vmem:[#allocation4 + $0x618] sm:$0xff]
    %v1755 = vld [vmem:[#allocation4 + $0x620] sm:$0xff]
    %v1756 = vld [vmem:[#allocation4 + $0x628] sm:$0xff]
    %v1757 = vld [vmem:[#allocation4 + $0x630] sm:$0xff]
    %v1758 = vld [vmem:[#allocation4 + $0x638] sm:$0xff]
    %v1759 = vld [vmem:[#allocation4 + $0x640] sm:$0xff]
    %v1760 = vld [vmem:[#allocation4 + $0x648] sm:$0xff]
    %v1761 = vld [vmem:[#allocation4 + $0x650] sm:$0xff]
    %v1762 = vld [vmem:[#allocation4 + $0x658] sm:$0xff]
    %v1763 = vld [vmem:[#allocation4 + $0x660] sm:$0xff]
    %v1764 = vld [vmem:[#allocation4 + $0x668] sm:$0xff]
    %v1765 = vld [vmem:[#allocation4 + $0x670] sm:$0xff]
    %v1766 = vld [vmem:[#allocation4 + $0x678] sm:$0xff]
    %v1767 = vld [vmem:[#allocation4 + $0x680] sm:$0xff]
    %v1768 = vld [vmem:[#allocation4 + $0x688] sm:$0xff]
    %v1769 = vld [vmem:[#allocation4 + $0x690] sm:$0xff]
    %v1770 = vld [vmem:[#allocation4 + $0x698] sm:$0xff]
    %v1771 = vld [vmem:[#allocation4 + $0x6a0] sm:$0xff]
    %v1772 = vld [vmem:[#allocation4 + $0x6a8] sm:$0xff]
    %v1773 = vld [vmem:[#allocation4 + $0x6b0] sm:$0xff]
    %v1774 = vld [vmem:[#allocation4 + $0x6b8] sm:$0xff]
    %v1775 = vld [vmem:[#allocation4 + $0x6c0] sm:$0xff]
    %v1776 = vld [vmem:[#allocation4 + $0x6c8] sm:$0xff]
    %v1777 = vld [vmem:[#allocation4 + $0x6d0] sm:$0xff]
    %v1778 = vld [vmem:[#allocation4 + $0x6d8] sm:$0xff]
    %v1779 = vld [vmem:[#allocation4 + $0x6e0] sm:$0xff]
    %v1780 = vld [vmem:[#allocation4 + $0x6e8] sm:$0xff]
    %v1781 = vld [vmem:[#allocation4 + $0x6f0] sm:$0xff]
    %v1782 = vld [vmem:[#allocation4 + $0x6f8] sm:$0xff]
    %v1783 = vld [vmem:[#allocation6] sm:$0xf]
    %v1785 = vlaneseq
    %v1786 = vshrl.u32 %v1785, 7
    %v1787 = vsub.s32 0, %v1786
    %v1788 = vrot.slane %v1783, %v1787
    %v1789 = vlaneseq
    %v1790 = vshrl.u32 %v1789, 7
    %v1791 = vsub.s32 1, %v1790
    %v1792 = vrot.slane %v1783, %v1791
    %v1793 = vlaneseq
    %v1794 = vshrl.u32 %v1793, 7
    %v1795 = vsub.s32 2, %v1794
    %v1796 = vrot.slane %v1783, %v1795
    %v1797 = vlaneseq
    %v1798 = vshrl.u32 %v1797, 7
    %v1799 = vsub.s32 3, %v1798
    %v1800 = vrot.slane %v1783, %v1799
    %v2029 = vunpack.c.l.b16 %v1559
    %v2030 = vunpack.c.h.b16 %v1559
    %v2031 = vunpack.c.l.b16 %v1560
    %v2032 = vunpack.c.h.b16 %v1560
    %v2033 = vunpack.c.l.b16 %v1561
    %v2034 = vunpack.c.h.b16 %v1561
    %v2035 = vunpack.c.l.b16 %v1562
    %v2036 = vunpack.c.h.b16 %v1562
    %v2037 = vunpack.c.l.b16 %v1563
    %v2038 = vunpack.c.h.b16 %v1563
    %v2039 = vunpack.c.l.b16 %v1564
    %v2040 = vunpack.c.h.b16 %v1564
    %v2041 = vunpack.c.l.b16 %v1565
    %v2042 = vunpack.c.h.b16 %v1565
    %v2043 = vunpack.c.l.b16 %v1566
    %v2044 = vunpack.c.h.b16 %v1566
    %v2045 = vunpack.c.l.b16 %v1567
    %v2046 = vunpack.c.h.b16 %v1567
    %v2047 = vunpack.c.l.b16 %v1568
    %v2048 = vunpack.c.h.b16 %v1568
    %v2049 = vunpack.c.l.b16 %v1569
    %v2050 = vunpack.c.h.b16 %v1569
    %v2051 = vunpack.c.l.b16 %v1570
    %v2052 = vunpack.c.h.b16 %v1570
    %v2053 = vunpack.c.l.b16 %v1571
    %v2054 = vunpack.c.h.b16 %v1571
    %v2055 = vunpack.c.l.b16 %v1572
    %v2056 = vunpack.c.h.b16 %v1572
    %v2057 = vunpack.c.l.b16 %v1573
    %v2058 = vunpack.c.h.b16 %v1573
    %v2059 = vunpack.c.l.b16 %v1574
    %v2060 = vunpack.c.h.b16 %v1574
    %v2061 = vunpack.c.l.b16 %v1575
    %v2062 = vunpack.c.h.b16 %v1575
    %v2063 = vunpack.c.l.b16 %v1576
    %v2064 = vunpack.c.h.b16 %v1576
    %v2065 = vunpack.c.l.b16 %v1577
    %v2066 = vunpack.c.h.b16 %v1577
    %v2067 = vunpack.c.l.b16 %v1578
    %v2068 = vunpack.c.h.b16 %v1578
    %v2069 = vunpack.c.l.b16 %v1579
    %v2070 = vunpack.c.h.b16 %v1579
    %v2071 = vunpack.c.l.b16 %v1580
    %v2072 = vunpack.c.h.b16 %v1580
    %v2073 = vunpack.c.l.b16 %v1581
    %v2074 = vunpack.c.h.b16 %v1581
    %v2075 = vunpack.c.l.b16 %v1582
    %v2076 = vunpack.c.h.b16 %v1582
    %v2077 = vunpack.c.l.b16 %v1583
    %v2078 = vunpack.c.h.b16 %v1583
    %v2079 = vunpack.c.l.b16 %v1584
    %v2080 = vunpack.c.h.b16 %v1584
    %v2081 = vunpack.c.l.b16 %v1585
    %v2082 = vunpack.c.h.b16 %v1585
    %v2083 = vunpack.c.l.b16 %v1586
    %v2084 = vunpack.c.h.b16 %v1586
    %v2085 = vunpack.c.l.b16 %v1587
    %v2086 = vunpack.c.h.b16 %v1587
    %v2087 = vunpack.c.l.b16 %v1588
    %v2088 = vunpack.c.h.b16 %v1588
    %v2089 = vunpack.c.l.b16 %v1589
    %v2090 = vunpack.c.h.b16 %v1589
    %v2091 = vunpack.c.l.b16 %v1590
    %v2092 = vunpack.c.h.b16 %v1590
    %v2093 = vunpack.c.l.b16 %v1591
    %v2094 = vunpack.c.h.b16 %v1591
    %v2095 = vunpack.c.l.b16 %v1592
    %v2096 = vunpack.c.h.b16 %v1592
    %v2097 = vunpack.c.l.b16 %v1593
    %v2098 = vunpack.c.h.b16 %v1593
    %v2099 = vunpack.c.l.b16 %v1594
    %v2100 = vunpack.c.h.b16 %v1594
    %v2101 = vunpack.c.l.b16 %v1595
    %v2102 = vunpack.c.h.b16 %v1595
    %v2103 = vunpack.c.l.b16 %v1596
    %v2104 = vunpack.c.h.b16 %v1596
    %v2105 = vunpack.c.l.b16 %v1597
    %v2106 = vunpack.c.h.b16 %v1597
    %v2107 = vunpack.c.l.b16 %v1598
    %v2108 = vunpack.c.h.b16 %v1598
    %v2109 = vunpack.c.l.b16 %v1599
    %v2110 = vunpack.c.h.b16 %v1599
    %v2111 = vunpack.c.l.b16 %v1600
    %v2112 = vunpack.c.h.b16 %v1600
    %v2113 = vunpack.c.l.b16 %v1601
    %v2114 = vunpack.c.h.b16 %v1601
    %v2115 = vunpack.c.l.b16 %v1602
    %v2116 = vunpack.c.h.b16 %v1602
    %v2117 = vunpack.c.l.b16 %v1603
    %v2118 = vunpack.c.h.b16 %v1603
    %v2119 = vunpack.c.l.b16 %v1604
    %v2120 = vunpack.c.h.b16 %v1604
    %v2121 = vunpack.c.l.b16 %v1605
    %v2122 = vunpack.c.h.b16 %v1605
    %v2123 = vunpack.c.l.b16 %v1606
    %v2124 = vunpack.c.h.b16 %v1606
    %v2125 = vunpack.c.l.b16 %v1607
    %v2126 = vunpack.c.h.b16 %v1607
    %v2127 = vunpack.c.l.b16 %v1608
    %v2128 = vunpack.c.h.b16 %v1608
    %v2129 = vunpack.c.l.b16 %v1609
    %v2130 = vunpack.c.h.b16 %v1609
    %v2131 = vunpack.c.l.b16 %v1610
    %v2132 = vunpack.c.h.b16 %v1610
    %v2133 = vunpack.c.l.b16 %v1611
    %v2134 = vunpack.c.h.b16 %v1611
    %v2135 = vunpack.c.l.b16 %v1612
    %v2136 = vunpack.c.h.b16 %v1612
    %v2137 = vunpack.c.l.b16 %v1613
    %v2138 = vunpack.c.h.b16 %v1613
    %v2139 = vunpack.c.l.b16 %v1614
    %v2140 = vunpack.c.h.b16 %v1614
    %v2141 = vunpack.c.l.b16 %v1615
    %v2142 = vunpack.c.h.b16 %v1615
    %v2143 = vunpack.c.l.b16 %v1616
    %v2144 = vunpack.c.h.b16 %v1616
    %v2145 = vunpack.c.l.b16 %v1617
    %v2146 = vunpack.c.h.b16 %v1617
    %v2147 = vunpack.c.l.b16 %v1618
    %v2148 = vunpack.c.h.b16 %v1618
    %v2149 = vunpack.c.l.b16 %v1619
    %v2150 = vunpack.c.h.b16 %v1619
    %v2151 = vunpack.c.l.b16 %v1620
    %v2152 = vunpack.c.h.b16 %v1620
    %v2153 = vunpack.c.l.b16 %v1621
    %v2154 = vunpack.c.h.b16 %v1621
    %v2155 = vunpack.c.l.b16 %v1622
    %v2156 = vunpack.c.h.b16 %v1622
    %v2157 = vunpack.c.l.b16 %v1623
    %v2158 = vunpack.c.h.b16 %v1623
    %v2159 = vunpack.c.l.b16 %v1624
    %v2160 = vunpack.c.h.b16 %v1624
    %v2161 = vunpack.c.l.b16 %v1625
    %v2162 = vunpack.c.h.b16 %v1625
    %v2163 = vunpack.c.l.b16 %v1626
    %v2164 = vunpack.c.h.b16 %v1626
    %v2165 = vunpack.c.l.b16 %v1627
    %v2166 = vunpack.c.h.b16 %v1627
    %v2167 = vunpack.c.l.b16 %v1628
    %v2168 = vunpack.c.h.b16 %v1628
    %v2169 = vunpack.c.l.b16 %v1629
    %v2170 = vunpack.c.h.b16 %v1629
    %v2171 = vunpack.c.l.b16 %v1630
    %v2172 = vunpack.c.h.b16 %v1630
    %v2173 = vunpack.c.l.b16 %v1631
    %v2174 = vunpack.c.h.b16 %v1631
    %v2175 = vunpack.c.l.b16 %v1632
    %v2176 = vunpack.c.h.b16 %v1632
    %v2177 = vunpack.c.l.b16 %v1633
    %v2178 = vunpack.c.h.b16 %v1633
    %v2179 = vunpack.c.l.b16 %v1634
    %v2180 = vunpack.c.h.b16 %v1634
    %v2181 = vunpack.c.l.b16 %v1635
    %v2182 = vunpack.c.h.b16 %v1635
    %v2183 = vunpack.c.l.b16 %v1636
    %v2184 = vunpack.c.h.b16 %v1636
    %v2185 = vunpack.c.l.b16 %v1637
    %v2186 = vunpack.c.h.b16 %v1637
    %v2187 = vunpack.c.l.b16 %v1638
    %v2188 = vunpack.c.h.b16 %v1638
    %v2189 = vunpack.c.l.b16 %v1639
    %v2190 = vunpack.c.h.b16 %v1639
    %v2191 = vunpack.c.l.b16 %v1640
    %v2192 = vunpack.c.h.b16 %v1640
    %v2193 = vunpack.c.l.b16 %v1641
    %v2194 = vunpack.c.h.b16 %v1641
    %v2195 = vunpack.c.l.b16 %v1642
    %v2196 = vunpack.c.h.b16 %v1642
    %v2197 = vunpack.c.l.b16 %v1643
    %v2198 = vunpack.c.h.b16 %v1643
    %v2199 = vunpack.c.l.b16 %v1644
    %v2200 = vunpack.c.h.b16 %v1644
    %v2201 = vunpack.c.l.b16 %v1645
    %v2202 = vunpack.c.h.b16 %v1645
    %v2203 = vunpack.c.l.b16 %v1646
    %v2204 = vunpack.c.h.b16 %v1646
    %v2205 = vunpack.c.l.b16 %v1647
    %v2206 = vunpack.c.h.b16 %v1647
    %v2207 = vunpack.c.l.b16 %v1648
    %v2208 = vunpack.c.h.b16 %v1648
    %v2209 = vunpack.c.l.b16 %v1649
    %v2210 = vunpack.c.h.b16 %v1649
    %v2211 = vunpack.c.l.b16 %v1650
    %v2212 = vunpack.c.h.b16 %v1650
    %v2213 = vunpack.c.l.b16 %v1651
    %v2214 = vunpack.c.h.b16 %v1651
    %v2215 = vunpack.c.l.b16 %v1652
    %v2216 = vunpack.c.h.b16 %v1652
    %v2217 = vunpack.c.l.b16 %v1653
    %v2218 = vunpack.c.h.b16 %v1653
    %v2219 = vunpack.c.l.b16 %v1654
    %v2220 = vunpack.c.h.b16 %v1654
    %v2221 = vunpack.c.l.b16 %v1655
    %v2222 = vunpack.c.h.b16 %v1655
    %v2223 = vunpack.c.l.b16 %v1656
    %v2224 = vunpack.c.h.b16 %v1656
    %v2225 = vunpack.c.l.b16 %v1657
    %v2226 = vunpack.c.h.b16 %v1657
    %v2227 = vunpack.c.l.b16 %v1658
    %v2228 = vunpack.c.h.b16 %v1658
    %v2229 = vunpack.c.l.b16 %v1659
    %v2230 = vunpack.c.h.b16 %v1659
    %v2231 = vunpack.c.l.b16 %v1660
    %v2232 = vunpack.c.h.b16 %v1660
    %v2233 = vunpack.c.l.b16 %v1661
    %v2234 = vunpack.c.h.b16 %v1661
    %v2235 = vunpack.c.l.b16 %v1662
    %v2236 = vunpack.c.h.b16 %v1662
    %v2237 = vunpack.c.l.b16 %v1663
    %v2238 = vunpack.c.h.b16 %v1663
    %v2239 = vunpack.c.l.b16 %v1664
    %v2240 = vunpack.c.h.b16 %v1664
    %v2241 = vunpack.c.l.b16 %v1665
    %v2242 = vunpack.c.h.b16 %v1665
    %v2243 = vunpack.c.l.b16 %v1666
    %v2244 = vunpack.c.h.b16 %v1666
    %v2245 = vunpack.c.l.b16 %v1667
    %v2246 = vunpack.c.h.b16 %v1667
    %v2247 = vunpack.c.l.b16 %v1668
    %v2248 = vunpack.c.h.b16 %v1668
    %v2249 = vunpack.c.l.b16 %v1669
    %v2250 = vunpack.c.h.b16 %v1669
    %v2251 = vunpack.c.l.b16 %v1670
    %v2252 = vunpack.c.h.b16 %v1670
    %v2253 = vunpack.c.l.b16 %v1671
    %v2254 = vunpack.c.h.b16 %v1671
    %v2255 = vunpack.c.l.b16 %v1672
    %v2256 = vunpack.c.h.b16 %v1672
    %v2257 = vunpack.c.l.b16 %v1673
    %v2258 = vunpack.c.h.b16 %v1673
    %v2259 = vunpack.c.l.b16 %v1674
    %v2260 = vunpack.c.h.b16 %v1674
    %v2261 = vunpack.c.l.b16 %v1675
    %v2262 = vunpack.c.h.b16 %v1675
    %v2263 = vunpack.c.l.b16 %v1676
    %v2264 = vunpack.c.h.b16 %v1676
    %v2265 = vunpack.c.l.b16 %v1677
    %v2266 = vunpack.c.h.b16 %v1677
    %v2267 = vunpack.c.l.b16 %v1678
    %v2268 = vunpack.c.h.b16 %v1678
    %v2269 = vunpack.c.l.b16 %v1679
    %v2270 = vunpack.c.h.b16 %v1679
    %v2271 = vunpack.c.l.b16 %v1680
    %v2272 = vunpack.c.h.b16 %v1680
    %v2273 = vunpack.c.l.b16 %v1681
    %v2274 = vunpack.c.h.b16 %v1681
    %v2275 = vunpack.c.l.b16 %v1682
    %v2276 = vunpack.c.h.b16 %v1682
    %v2277 = vunpack.c.l.b16 %v1683
    %v2278 = vunpack.c.h.b16 %v1683
    %v2279 = vunpack.c.l.b16 %v1684
    %v2280 = vunpack.c.h.b16 %v1684
    %v2281 = vunpack.c.l.b16 %v1685
    %v2282 = vunpack.c.h.b16 %v1685
    %v2283 = vunpack.c.l.b16 %v1686
    %v2284 = vunpack.c.h.b16 %v1686
    %v2285 = vunpack.c.l.b16 %v1687
    %v2286 = vunpack.c.h.b16 %v1687
    %v2287 = vunpack.c.l.b16 %v1688
    %v2288 = vunpack.c.h.b16 %v1688
    %v2289 = vunpack.c.l.b16 %v1689
    %v2290 = vunpack.c.h.b16 %v1689
    %v2291 = vunpack.c.l.b16 %v1690
    %v2292 = vunpack.c.h.b16 %v1690
    %v2293 = vunpack.c.l.b16 %v1691
    %v2294 = vunpack.c.h.b16 %v1691
    %v2295 = vunpack.c.l.b16 %v1692
    %v2296 = vunpack.c.h.b16 %v1692
    %v2297 = vunpack.c.l.b16 %v1693
    %v2298 = vunpack.c.h.b16 %v1693
    %v2299 = vunpack.c.l.b16 %v1694
    %v2300 = vunpack.c.h.b16 %v1694
    %v2301 = vunpack.c.l.b16 %v1695
    %v2302 = vunpack.c.h.b16 %v1695
    %v2303 = vunpack.c.l.b16 %v1696
    %v2304 = vunpack.c.h.b16 %v1696
    %v2305 = vunpack.c.l.b16 %v1697
    %v2306 = vunpack.c.h.b16 %v1697
    %v2307 = vunpack.c.l.b16 %v1698
    %v2308 = vunpack.c.h.b16 %v1698
    %v2309 = vunpack.c.l.b16 %v1699
    %v2310 = vunpack.c.h.b16 %v1699
    %v2311 = vunpack.c.l.b16 %v1700
    %v2312 = vunpack.c.h.b16 %v1700
    %v2313 = vunpack.c.l.b16 %v1701
    %v2314 = vunpack.c.h.b16 %v1701
    %v2315 = vunpack.c.l.b16 %v1702
    %v2316 = vunpack.c.h.b16 %v1702
    %v2317 = vunpack.c.l.b16 %v1703
    %v2318 = vunpack.c.h.b16 %v1703
    %v2319 = vunpack.c.l.b16 %v1704
    %v2320 = vunpack.c.h.b16 %v1704
    %v2321 = vunpack.c.l.b16 %v1705
    %v2322 = vunpack.c.h.b16 %v1705
    %v2323 = vunpack.c.l.b16 %v1706
    %v2324 = vunpack.c.h.b16 %v1706
    %v2325 = vunpack.c.l.b16 %v1707
    %v2326 = vunpack.c.h.b16 %v1707
    %v2327 = vunpack.c.l.b16 %v1708
    %v2328 = vunpack.c.h.b16 %v1708
    %v2329 = vunpack.c.l.b16 %v1709
    %v2330 = vunpack.c.h.b16 %v1709
    %v2331 = vunpack.c.l.b16 %v1710
    %v2332 = vunpack.c.h.b16 %v1710
    %v2333 = vunpack.c.l.b16 %v1711
    %v2334 = vunpack.c.h.b16 %v1711
    %v2335 = vunpack.c.l.b16 %v1712
    %v2336 = vunpack.c.h.b16 %v1712
    %v2337 = vunpack.c.l.b16 %v1713
    %v2338 = vunpack.c.h.b16 %v1713
    %v2339 = vunpack.c.l.b16 %v1714
    %v2340 = vunpack.c.h.b16 %v1714
    %v2341 = vunpack.c.l.b16 %v1715
    %v2342 = vunpack.c.h.b16 %v1715
    %v2343 = vunpack.c.l.b16 %v1716
    %v2344 = vunpack.c.h.b16 %v1716
    %v2345 = vunpack.c.l.b16 %v1717
    %v2346 = vunpack.c.h.b16 %v1717
    %v2347 = vunpack.c.l.b16 %v1718
    %v2348 = vunpack.c.h.b16 %v1718
    %v2349 = vunpack.c.l.b16 %v1719
    %v2350 = vunpack.c.h.b16 %v1719
    %v2351 = vunpack.c.l.b16 %v1720
    %v2352 = vunpack.c.h.b16 %v1720
    %v2353 = vunpack.c.l.b16 %v1721
    %v2354 = vunpack.c.h.b16 %v1721
    %v2355 = vunpack.c.l.b16 %v1722
    %v2356 = vunpack.c.h.b16 %v1722
    %v2357 = vunpack.c.l.b16 %v1723
    %v2358 = vunpack.c.h.b16 %v1723
    %v2359 = vunpack.c.l.b16 %v1724
    %v2360 = vunpack.c.h.b16 %v1724
    %v2361 = vunpack.c.l.b16 %v1725
    %v2362 = vunpack.c.h.b16 %v1725
    %v2363 = vunpack.c.l.b16 %v1726
    %v2364 = vunpack.c.h.b16 %v1726
    %v2365 = vunpack.c.l.b16 %v1727
    %v2366 = vunpack.c.h.b16 %v1727
    %v2367 = vunpack.c.l.b16 %v1728
    %v2368 = vunpack.c.h.b16 %v1728
    %v2369 = vunpack.c.l.b16 %v1729
    %v2370 = vunpack.c.h.b16 %v1729
    %v2371 = vunpack.c.l.b16 %v1730
    %v2372 = vunpack.c.h.b16 %v1730
    %v2373 = vunpack.c.l.b16 %v1731
    %v2374 = vunpack.c.h.b16 %v1731
    %v2375 = vunpack.c.l.b16 %v1732
    %v2376 = vunpack.c.h.b16 %v1732
    %v2377 = vunpack.c.l.b16 %v1733
    %v2378 = vunpack.c.h.b16 %v1733
    %v2379 = vunpack.c.l.b16 %v1734
    %v2380 = vunpack.c.h.b16 %v1734
    %v2381 = vunpack.c.l.b16 %v1735
    %v2382 = vunpack.c.h.b16 %v1735
    %v2383 = vunpack.c.l.b16 %v1736
    %v2384 = vunpack.c.h.b16 %v1736
    %v2385 = vunpack.c.l.b16 %v1737
    %v2386 = vunpack.c.h.b16 %v1737
    %v2387 = vunpack.c.l.b16 %v1738
    %v2388 = vunpack.c.h.b16 %v1738
    %v2389 = vunpack.c.l.b16 %v1739
    %v2390 = vunpack.c.h.b16 %v1739
    %v2391 = vunpack.c.l.b16 %v1740
    %v2392 = vunpack.c.h.b16 %v1740
    %v2393 = vunpack.c.l.b16 %v1741
    %v2394 = vunpack.c.h.b16 %v1741
    %v2395 = vunpack.c.l.b16 %v1742
    %v2396 = vunpack.c.h.b16 %v1742
    %v2397 = vunpack.c.l.b16 %v1743
    %v2398 = vunpack.c.h.b16 %v1743
    %v2399 = vunpack.c.l.b16 %v1744
    %v2400 = vunpack.c.h.b16 %v1744
    %v2401 = vunpack.c.l.b16 %v1745
    %v2402 = vunpack.c.h.b16 %v1745
    %v2403 = vunpack.c.l.b16 %v1746
    %v2404 = vunpack.c.h.b16 %v1746
    %v2405 = vunpack.c.l.b16 %v1747
    %v2406 = vunpack.c.h.b16 %v1747
    %v2407 = vunpack.c.l.b16 %v1748
    %v2408 = vunpack.c.h.b16 %v1748
    %v2409 = vunpack.c.l.b16 %v1749
    %v2410 = vunpack.c.h.b16 %v1749
    %v2411 = vunpack.c.l.b16 %v1750
    %v2412 = vunpack.c.h.b16 %v1750
    %v2413 = vunpack.c.l.b16 %v1751
    %v2414 = vunpack.c.h.b16 %v1751
    %v2415 = vunpack.c.l.b16 %v1752
    %v2416 = vunpack.c.h.b16 %v1752
    %v2417 = vunpack.c.l.b16 %v1753
    %v2418 = vunpack.c.h.b16 %v1753
    %v2419 = vunpack.c.l.b16 %v1754
    %v2420 = vunpack.c.h.b16 %v1754
    %v2421 = vunpack.c.l.b16 %v1755
    %v2422 = vunpack.c.h.b16 %v1755
    %v2423 = vunpack.c.l.b16 %v1756
    %v2424 = vunpack.c.h.b16 %v1756
    %v2425 = vunpack.c.l.b16 %v1757
    %v2426 = vunpack.c.h.b16 %v1757
    %v2427 = vunpack.c.l.b16 %v1758
    %v2428 = vunpack.c.h.b16 %v1758
    %v2429 = vunpack.c.l.b16 %v1759
    %v2430 = vunpack.c.h.b16 %v1759
    %v2431 = vunpack.c.l.b16 %v1760
    %v2432 = vunpack.c.h.b16 %v1760
    %v2433 = vunpack.c.l.b16 %v1761
    %v2434 = vunpack.c.h.b16 %v1761
    %v2435 = vunpack.c.l.b16 %v1762
    %v2436 = vunpack.c.h.b16 %v1762
    %v2437 = vunpack.c.l.b16 %v1763
    %v2438 = vunpack.c.h.b16 %v1763
    %v2439 = vunpack.c.l.b16 %v1764
    %v2440 = vunpack.c.h.b16 %v1764
    %v2441 = vunpack.c.l.b16 %v1765
    %v2442 = vunpack.c.h.b16 %v1765
    %v2443 = vunpack.c.l.b16 %v1766
    %v2444 = vunpack.c.h.b16 %v1766
    %v2445 = vunpack.c.l.b16 %v1767
    %v2446 = vunpack.c.h.b16 %v1767
    %v2447 = vunpack.c.l.b16 %v1768
    %v2448 = vunpack.c.h.b16 %v1768
    %v2449 = vunpack.c.l.b16 %v1769
    %v2450 = vunpack.c.h.b16 %v1769
    %v2451 = vunpack.c.l.b16 %v1770
    %v2452 = vunpack.c.h.b16 %v1770
    %v2453 = vunpack.c.l.b16 %v1771
    %v2454 = vunpack.c.h.b16 %v1771
    %v2455 = vunpack.c.l.b16 %v1772
    %v2456 = vunpack.c.h.b16 %v1772
    %v2457 = vunpack.c.l.b16 %v1773
    %v2458 = vunpack.c.h.b16 %v1773
    %v2459 = vunpack.c.l.b16 %v1774
    %v2460 = vunpack.c.h.b16 %v1774
    %v2461 = vunpack.c.l.b16 %v1775
    %v2462 = vunpack.c.h.b16 %v1775
    %v2463 = vunpack.c.l.b16 %v1776
    %v2464 = vunpack.c.h.b16 %v1776
    %v2465 = vunpack.c.l.b16 %v1777
    %v2466 = vunpack.c.h.b16 %v1777
    %v2467 = vunpack.c.l.b16 %v1778
    %v2468 = vunpack.c.h.b16 %v1778
    %v2469 = vunpack.c.l.b16 %v1779
    %v2470 = vunpack.c.h.b16 %v1779
    %v2471 = vunpack.c.l.b16 %v1780
    %v2472 = vunpack.c.h.b16 %v1780
    %v2473 = vunpack.c.l.b16 %v1781
    %v2474 = vunpack.c.h.b16 %v1781
    %v2475 = vunpack.c.l.b16 %v1782
    %v2476 = vunpack.c.h.b16 %v1782
    %v2477 = vpack.c.b16 %v2033, %v2029
    %v2478 = vpack.c.b16 %v2034, %v2030
    %v2479 = vpack.c.b16 %v2035, %v2031
    %v2480 = vpack.c.b16 %v2036, %v2032
    %v2481 = vpack.c.b16 %v2041, %v2037
    %v2482 = vpack.c.b16 %v2042, %v2038
    %v2483 = vpack.c.b16 %v2043, %v2039
    %v2484 = vpack.c.b16 %v2044, %v2040
    %v2485 = vpack.c.b16 %v2049, %v2045
    %v2486 = vpack.c.b16 %v2050, %v2046
    %v2487 = vpack.c.b16 %v2051, %v2047
    %v2488 = vpack.c.b16 %v2052, %v2048
    %v2489 = vpack.c.b16 %v2057, %v2053
    %v2490 = vpack.c.b16 %v2058, %v2054
    %v2491 = vpack.c.b16 %v2059, %v2055
    %v2492 = vpack.c.b16 %v2060, %v2056
    %v2493 = vpack.c.b16 %v2065, %v2061
    %v2494 = vpack.c.b16 %v2066, %v2062
    %v2495 = vpack.c.b16 %v2067, %v2063
    %v2496 = vpack.c.b16 %v2068, %v2064
    %v2497 = vpack.c.b16 %v2073, %v2069
    %v2498 = vpack.c.b16 %v2074, %v2070
    %v2499 = vpack.c.b16 %v2075, %v2071
    %v2500 = vpack.c.b16 %v2076, %v2072
    %v2501 = vpack.c.b16 %v2081, %v2077
    %v2502 = vpack.c.b16 %v2082, %v2078
    %v2503 = vpack.c.b16 %v2083, %v2079
    %v2504 = vpack.c.b16 %v2084, %v2080
    %v2505 = vpack.c.b16 %v2089, %v2085
    %v2506 = vpack.c.b16 %v2090, %v2086
    %v2507 = vpack.c.b16 %v2091, %v2087
    %v2508 = vpack.c.b16 %v2092, %v2088
    %v2509 = vpack.c.b16 %v2097, %v2093
    %v2510 = vpack.c.b16 %v2098, %v2094
    %v2511 = vpack.c.b16 %v2099, %v2095
    %v2512 = vpack.c.b16 %v2100, %v2096
    %v2513 = vpack.c.b16 %v2105, %v2101
    %v2514 = vpack.c.b16 %v2106, %v2102
    %v2515 = vpack.c.b16 %v2107, %v2103
    %v2516 = vpack.c.b16 %v2108, %v2104
    %v2517 = vpack.c.b16 %v2113, %v2109
    %v2518 = vpack.c.b16 %v2114, %v2110
    %v2519 = vpack.c.b16 %v2115, %v2111
    %v2520 = vpack.c.b16 %v2116, %v2112
    %v2521 = vpack.c.b16 %v2121, %v2117
    %v2522 = vpack.c.b16 %v2122, %v2118
    %v2523 = vpack.c.b16 %v2123, %v2119
    %v2524 = vpack.c.b16 %v2124, %v2120
    %v2525 = vpack.c.b16 %v2129, %v2125
    %v2526 = vpack.c.b16 %v2130, %v2126
    %v2527 = vpack.c.b16 %v2131, %v2127
    %v2528 = vpack.c.b16 %v2132, %v2128
    %v2529 = vpack.c.b16 %v2137, %v2133
    %v2530 = vpack.c.b16 %v2138, %v2134
    %v2531 = vpack.c.b16 %v2139, %v2135
    %v2532 = vpack.c.b16 %v2140, %v2136
    %v2533 = vpack.c.b16 %v2145, %v2141
    %v2534 = vpack.c.b16 %v2146, %v2142
    %v2535 = vpack.c.b16 %v2147, %v2143
    %v2536 = vpack.c.b16 %v2148, %v2144
    %v2537 = vpack.c.b16 %v2153, %v2149
    %v2538 = vpack.c.b16 %v2154, %v2150
    %v2539 = vpack.c.b16 %v2155, %v2151
    %v2540 = vpack.c.b16 %v2156, %v2152
    %v2541 = vpack.c.b16 %v2161, %v2157
    %v2542 = vpack.c.b16 %v2162, %v2158
    %v2543 = vpack.c.b16 %v2163, %v2159
    %v2544 = vpack.c.b16 %v2164, %v2160
    %v2545 = vpack.c.b16 %v2169, %v2165
    %v2546 = vpack.c.b16 %v2170, %v2166
    %v2547 = vpack.c.b16 %v2171, %v2167
    %v2548 = vpack.c.b16 %v2172, %v2168
    %v2549 = vpack.c.b16 %v2177, %v2173
    %v2550 = vpack.c.b16 %v2178, %v2174
    %v2551 = vpack.c.b16 %v2179, %v2175
    %v2552 = vpack.c.b16 %v2180, %v2176
    %v2553 = vpack.c.b16 %v2185, %v2181
    %v2554 = vpack.c.b16 %v2186, %v2182
    %v2555 = vpack.c.b16 %v2187, %v2183
    %v2556 = vpack.c.b16 %v2188, %v2184
    %v2557 = vpack.c.b16 %v2193, %v2189
    %v2558 = vpack.c.b16 %v2194, %v2190
    %v2559 = vpack.c.b16 %v2195, %v2191
    %v2560 = vpack.c.b16 %v2196, %v2192
    %v2561 = vpack.c.b16 %v2201, %v2197
    %v2562 = vpack.c.b16 %v2202, %v2198
    %v2563 = vpack.c.b16 %v2203, %v2199
    %v2564 = vpack.c.b16 %v2204, %v2200
    %v2565 = vpack.c.b16 %v2209, %v2205
    %v2566 = vpack.c.b16 %v2210, %v2206
    %v2567 = vpack.c.b16 %v2211, %v2207
    %v2568 = vpack.c.b16 %v2212, %v2208
    %v2569 = vpack.c.b16 %v2217, %v2213
    %v2570 = vpack.c.b16 %v2218, %v2214
    %v2571 = vpack.c.b16 %v2219, %v2215
    %v2572 = vpack.c.b16 %v2220, %v2216
    %v2573 = vpack.c.b16 %v2225, %v2221
    %v2574 = vpack.c.b16 %v2226, %v2222
    %v2575 = vpack.c.b16 %v2227, %v2223
    %v2576 = vpack.c.b16 %v2228, %v2224
    %v2577 = vpack.c.b16 %v2233, %v2229
    %v2578 = vpack.c.b16 %v2234, %v2230
    %v2579 = vpack.c.b16 %v2235, %v2231
    %v2580 = vpack.c.b16 %v2236, %v2232
    %v2581 = vpack.c.b16 %v2241, %v2237
    %v2582 = vpack.c.b16 %v2242, %v2238
    %v2583 = vpack.c.b16 %v2243, %v2239
    %v2584 = vpack.c.b16 %v2244, %v2240
    %v2585 = vpack.c.b16 %v2249, %v2245
    %v2586 = vpack.c.b16 %v2250, %v2246
    %v2587 = vpack.c.b16 %v2251, %v2247
    %v2588 = vpack.c.b16 %v2252, %v2248
    %v2589 = vpack.c.b16 %v2257, %v2253
    %v2590 = vpack.c.b16 %v2258, %v2254
    %v2591 = vpack.c.b16 %v2259, %v2255
    %v2592 = vpack.c.b16 %v2260, %v2256
    %v2593 = vpack.c.b16 %v2265, %v2261
    %v2594 = vpack.c.b16 %v2266, %v2262
    %v2595 = vpack.c.b16 %v2267, %v2263
    %v2596 = vpack.c.b16 %v2268, %v2264
    %v2597 = vpack.c.b16 %v2273, %v2269
    %v2598 = vpack.c.b16 %v2274, %v2270
    %v2599 = vpack.c.b16 %v2275, %v2271
    %v2600 = vpack.c.b16 %v2276, %v2272
    %v2601 = vpack.c.b16 %v2281, %v2277
    %v2602 = vpack.c.b16 %v2282, %v2278
    %v2603 = vpack.c.b16 %v2283, %v2279
    %v2604 = vpack.c.b16 %v2284, %v2280
    %v2605 = vpack.c.b16 %v2289, %v2285
    %v2606 = vpack.c.b16 %v2290, %v2286
    %v2607 = vpack.c.b16 %v2291, %v2287
    %v2608 = vpack.c.b16 %v2292, %v2288
    %v2609 = vpack.c.b16 %v2297, %v2293
    %v2610 = vpack.c.b16 %v2298, %v2294
    %v2611 = vpack.c.b16 %v2299, %v2295
    %v2612 = vpack.c.b16 %v2300, %v2296
    %v2613 = vpack.c.b16 %v2305, %v2301
    %v2614 = vpack.c.b16 %v2306, %v2302
    %v2615 = vpack.c.b16 %v2307, %v2303
    %v2616 = vpack.c.b16 %v2308, %v2304
    %v2617 = vpack.c.b16 %v2313, %v2309
    %v2618 = vpack.c.b16 %v2314, %v2310
    %v2619 = vpack.c.b16 %v2315, %v2311
    %v2620 = vpack.c.b16 %v2316, %v2312
    %v2621 = vpack.c.b16 %v2321, %v2317
    %v2622 = vpack.c.b16 %v2322, %v2318
    %v2623 = vpack.c.b16 %v2323, %v2319
    %v2624 = vpack.c.b16 %v2324, %v2320
    %v2625 = vpack.c.b16 %v2329, %v2325
    %v2626 = vpack.c.b16 %v2330, %v2326
    %v2627 = vpack.c.b16 %v2331, %v2327
    %v2628 = vpack.c.b16 %v2332, %v2328
    %v2629 = vpack.c.b16 %v2337, %v2333
    %v2630 = vpack.c.b16 %v2338, %v2334
    %v2631 = vpack.c.b16 %v2339, %v2335
    %v2632 = vpack.c.b16 %v2340, %v2336
    %v2633 = vpack.c.b16 %v2345, %v2341
    %v2634 = vpack.c.b16 %v2346, %v2342
    %v2635 = vpack.c.b16 %v2347, %v2343
    %v2636 = vpack.c.b16 %v2348, %v2344
    %v2637 = vpack.c.b16 %v2353, %v2349
    %v2638 = vpack.c.b16 %v2354, %v2350
    %v2639 = vpack.c.b16 %v2355, %v2351
    %v2640 = vpack.c.b16 %v2356, %v2352
    %v2641 = vpack.c.b16 %v2361, %v2357
    %v2642 = vpack.c.b16 %v2362, %v2358
    %v2643 = vpack.c.b16 %v2363, %v2359
    %v2644 = vpack.c.b16 %v2364, %v2360
    %v2645 = vpack.c.b16 %v2369, %v2365
    %v2646 = vpack.c.b16 %v2370, %v2366
    %v2647 = vpack.c.b16 %v2371, %v2367
    %v2648 = vpack.c.b16 %v2372, %v2368
    %v2649 = vpack.c.b16 %v2377, %v2373
    %v2650 = vpack.c.b16 %v2378, %v2374
    %v2651 = vpack.c.b16 %v2379, %v2375
    %v2652 = vpack.c.b16 %v2380, %v2376
    %v2653 = vpack.c.b16 %v2385, %v2381
    %v2654 = vpack.c.b16 %v2386, %v2382
    %v2655 = vpack.c.b16 %v2387, %v2383
    %v2656 = vpack.c.b16 %v2388, %v2384
    %v2657 = vpack.c.b16 %v2393, %v2389
    %v2658 = vpack.c.b16 %v2394, %v2390
    %v2659 = vpack.c.b16 %v2395, %v2391
    %v2660 = vpack.c.b16 %v2396, %v2392
    %v2661 = vpack.c.b16 %v2401, %v2397
    %v2662 = vpack.c.b16 %v2402, %v2398
    %v2663 = vpack.c.b16 %v2403, %v2399
    %v2664 = vpack.c.b16 %v2404, %v2400
    %v2665 = vpack.c.b16 %v2409, %v2405
    %v2666 = vpack.c.b16 %v2410, %v2406
    %v2667 = vpack.c.b16 %v2411, %v2407
    %v2668 = vpack.c.b16 %v2412, %v2408
    %v2669 = vpack.c.b16 %v2417, %v2413
    %v2670 = vpack.c.b16 %v2418, %v2414
    %v2671 = vpack.c.b16 %v2419, %v2415
    %v2672 = vpack.c.b16 %v2420, %v2416
    %v2673 = vpack.c.b16 %v2425, %v2421
    %v2674 = vpack.c.b16 %v2426, %v2422
    %v2675 = vpack.c.b16 %v2427, %v2423
    %v2676 = vpack.c.b16 %v2428, %v2424
    %v2677 = vpack.c.b16 %v2433, %v2429
    %v2678 = vpack.c.b16 %v2434, %v2430
    %v2679 = vpack.c.b16 %v2435, %v2431
    %v2680 = vpack.c.b16 %v2436, %v2432
    %v2681 = vpack.c.b16 %v2441, %v2437
    %v2682 = vpack.c.b16 %v2442, %v2438
    %v2683 = vpack.c.b16 %v2443, %v2439
    %v2684 = vpack.c.b16 %v2444, %v2440
    %v2685 = vpack.c.b16 %v2449, %v2445
    %v2686 = vpack.c.b16 %v2450, %v2446
    %v2687 = vpack.c.b16 %v2451, %v2447
    %v2688 = vpack.c.b16 %v2452, %v2448
    %v2689 = vpack.c.b16 %v2457, %v2453
    %v2690 = vpack.c.b16 %v2458, %v2454
    %v2691 = vpack.c.b16 %v2459, %v2455
    %v2692 = vpack.c.b16 %v2460, %v2456
    %v2693 = vpack.c.b16 %v2465, %v2461
    %v2694 = vpack.c.b16 %v2466, %v2462
    %v2695 = vpack.c.b16 %v2467, %v2463
    %v2696 = vpack.c.b16 %v2468, %v2464
    %v2697 = vpack.c.b16 %v2473, %v2469
    %v2698 = vpack.c.b16 %v2474, %v2470
    %v2699 = vpack.c.b16 %v2475, %v2471
    %v2700 = vpack.c.b16 %v2476, %v2472
    %2925 = vmatprep.subr.bf16.mxu0 %v2478
    %2926 = vmatpush1.bf16.msra.mxu0 %v2477
    %2927 = vmatprep.subr.bf16.mxu0 %v2482
    %2928 = vmatpush1.bf16.msra.mxu0 %v2481
    %2929 = vmatprep.subr.bf16.mxu0 %v2486
    %2930 = vmatpush1.bf16.msra.mxu0 %v2485
    %2931 = vmatprep.subr.bf16.mxu0 %v2490
    %2932 = vmatpush1.bf16.msra.mxu0 %v2489
    %2933 = vmatprep.subr.bf16.mxu0 %v2494
    %2934 = vmatpush1.bf16.msra.mxu0 %v2493
    %2935 = vmatprep.subr.bf16.mxu0 %v2498
    %2936 = vmatpush1.bf16.msra.mxu0 %v2497
    %2937 = vmatprep.subr.bf16.mxu0 %v2502
    %2938 = vmatpush1.bf16.msra.mxu0 %v2501
    %2939 = vmatprep.subr.bf16.mxu0 %v2506
    %2940 = vmatpush1.bf16.msra.mxu0 %v2505
    %2941 = vmatprep.subr.bf16.mxu0 %v2510
    %2942 = vmatpush1.bf16.msra.mxu0 %v2509
    %2943 = vmatprep.subr.bf16.mxu0 %v2514
    %2944 = vmatpush1.bf16.msra.mxu0 %v2513
    %2945 = vmatprep.subr.bf16.mxu0 %v2518
    %2946 = vmatpush1.bf16.msra.mxu0 %v2517
    %2947 = vmatprep.subr.bf16.mxu0 %v2522
    %2948 = vmatpush1.bf16.msra.mxu0 %v2521
    %2949 = vmatprep.subr.bf16.mxu0 %v2526
    %2950 = vmatpush1.bf16.msra.mxu0 %v2525
    %2951 = vmatprep.subr.bf16.mxu0 %v2530
    %2952 = vmatpush1.bf16.msra.mxu0 %v2529
    %2953 = vmatprep.subr.bf16.mxu0 %v2534
    %2954 = vmatpush1.bf16.msra.mxu0 %v2533
    %2955 = vmatprep.subr.bf16.mxu0 %v2538
    %2956 = vmatpush1.bf16.msra.mxu0 %v2537
    %2957 = vmatprep.mubr.bf16.mxu0 %v1553
    %2958 = vmatmul.mubr.bf16.gmra.mrb[0].mxu0 %v1552
    %v2959 = vpop.f32.mrb[0].mxu0
    %v2960 = vadd.f32 %v1788, %v2959
    %v2961 = vpop.f32.mrb[0].mxu0
    %v2962 = vadd.f32 %v1792, %v2961
    %v2963 = vpop.f32.mrb[0].mxu0
    %v2964 = vpop.f32.mrb[0].mxu0
    %2965 = vdwg.mxu0
    %2966 = vmatprep.subr.bf16.mxu0 %v2542
    %2967 = vmatpush1.bf16.msra.mxu0 %v2541
    %2968 = vmatprep.subr.bf16.mxu0 %v2546
    %2969 = vmatpush1.bf16.msra.mxu0 %v2545
    %2970 = vmatprep.subr.bf16.mxu0 %v2550
    %2971 = vmatpush1.bf16.msra.mxu0 %v2549
    %2972 = vmatprep.subr.bf16.mxu0 %v2554
    %2973 = vmatpush1.bf16.msra.mxu0 %v2553
    %2974 = vmatprep.subr.bf16.mxu0 %v2558
    %2975 = vmatpush1.bf16.msra.mxu0 %v2557
    %2976 = vmatprep.subr.bf16.mxu0 %v2562
    %2977 = vmatpush1.bf16.msra.mxu0 %v2561
    %2978 = vmatprep.subr.bf16.mxu0 %v2566
    %2979 = vmatpush1.bf16.msra.mxu0 %v2565
    %2980 = vmatprep.subr.bf16.mxu0 %v2570
    %2981 = vmatpush1.bf16.msra.mxu0 %v2569
    %2982 = vmatprep.subr.bf16.mxu0 %v2574
    %2983 = vmatpush1.bf16.msra.mxu0 %v2573
    %2984 = vmatprep.subr.bf16.mxu0 %v2578
    %2985 = vmatpush1.bf16.msra.mxu0 %v2577
    %2986 = vmatprep.subr.bf16.mxu0 %v2582
    %2987 = vmatpush1.bf16.msra.mxu0 %v2581
    %2988 = vmatprep.subr.bf16.mxu0 %v2586
    %2989 = vmatpush1.bf16.msra.mxu0 %v2585
    %2990 = vmatprep.subr.bf16.mxu0 %v2590
    %2991 = vmatpush1.bf16.msra.mxu0 %v2589
    %2992 = vmatprep.subr.bf16.mxu0 %v2594
    %2993 = vmatpush1.bf16.msra.mxu0 %v2593
    %2994 = vmatprep.subr.bf16.mxu0 %v2598
    %2995 = vmatpush1.bf16.msra.mxu0 %v2597
    %2996 = vmatprep.subr.bf16.mxu0 %v2602
    %2997 = vmatpush1.bf16.msra.mxu0 %v2601
    %2998 = vmatprep.mubr.bf16.mxu0 %v1555
    %2999 = vmatmul.mubr.bf16.gmra.mrb[0].mxu0 %v1554
    %v3000 = vpop.f32.mrb[0].mxu0
    %v3001 = vadd.f32 %v2960, %v3000
    %v3002 = vpop.f32.mrb[0].mxu0
    %v3003 = vadd.f32 %v2962, %v3002
    %v3004 = vpop.f32.mrb[0].mxu0
    %v3005 = vpop.f32.mrb[0].mxu0
    %3006 = vdwg.mxu0
    %3007 = vmatprep.subr.bf16.mxu0 %v2606
    %3008 = vmatpush1.bf16.msra.mxu0 %v2605
    %3009 = vmatprep.subr.bf16.mxu0 %v2610
    %3010 = vmatpush1.bf16.msra.mxu0 %v2609
    %3011 = vmatprep.subr.bf16.mxu0 %v2614
    %3012 = vmatpush1.bf16.msra.mxu0 %v2613
    %3013 = vmatprep.subr.bf16.mxu0 %v2618
    %3014 = vmatpush1.bf16.msra.mxu0 %v2617
    %3015 = vmatprep.subr.bf16.mxu0 %v2622
    %3016 = vmatpush1.bf16.msra.mxu0 %v2621
    %3017 = vmatprep.subr.bf16.mxu0 %v2626
    %3018 = vmatpush1.bf16.msra.mxu0 %v2625
    %3019 = vmatprep.subr.bf16.mxu0 %v2630
    %3020 = vmatpush1.bf16.msra.mxu0 %v2629
    %3021 = vmatprep.subr.bf16.mxu0 %v2634
    %3022 = vmatpush1.bf16.msra.mxu0 %v2633
    %3023 = vmatprep.subr.bf16.mxu0 %v2638
    %3024 = vmatpush1.bf16.msra.mxu0 %v2637
    %3025 = vmatprep.subr.bf16.mxu0 %v2642
    %3026 = vmatpush1.bf16.msra.mxu0 %v2641
    %3027 = vmatprep.subr.bf16.mxu0 %v2646
    %3028 = vmatpush1.bf16.msra.mxu0 %v2645
    %3029 = vmatprep.subr.bf16.mxu0 %v2650
    %3030 = vmatpush1.bf16.msra.mxu0 %v2649
    %3031 = vmatprep.subr.bf16.mxu0 %v2654
    %3032 = vmatpush1.bf16.msra.mxu0 %v2653
    %3033 = vmatprep.subr.bf16.mxu0 %v2658
    %3034 = vmatpush1.bf16.msra.mxu0 %v2657
    %3035 = vmatprep.subr.bf16.mxu0 %v2662
    %3036 = vmatpush1.bf16.msra.mxu0 %v2661
    %3037 = vmatprep.subr.bf16.mxu0 %v2666
    %3038 = vmatpush1.bf16.msra.mxu0 %v2665
    %3039 = vmatprep.mubr.bf16.mxu0 %v1557
    %3040 = vmatmul.mubr.bf16.gmra.mrb[0].mxu0 %v1556
    %v3041 = vpop.f32.mrb[0].mxu0
    %v3042 = vadd.f32 %v3001, %v3041
    %v3043 = vpop.f32.mrb[0].mxu0
    %v3044 = vadd.f32 %v3003, %v3043
    %v3045 = vpop.f32.mrb[0].mxu0
    %v3046 = vpop.f32.mrb[0].mxu0
    %3047 = vdwg.mxu0
    %3048 = vmatprep.subr.bf16.mxu0 %v2670
    %3049 = vmatpush1.bf16.msra.mxu0 %v2669
    %3050 = vmatprep.subr.bf16.mxu0 %v2674
    %3051 = vmatpush1.bf16.msra.mxu0 %v2673
    %3052 = vmatprep.subr.bf16.mxu0 %v2678
    %3053 = vmatpush1.bf16.msra.mxu0 %v2677
    %3054 = vmatprep.subr.bf16.mxu0 %v2682
    %3055 = vmatpush1.bf16.msra.mxu0 %v2681
    %3056 = vmatprep.subr.bf16.mxu0 %v2686
    %3057 = vmatpush1.bf16.msra.mxu0 %v2685
    %3058 = vmatprep.subr.bf16.mxu0 %v2690
    %3059 = vmatpush1.bf16.msra.mxu0 %v2689
    %3060 = vmatprep.subr.bf16.mxu0 %v2694
    %3061 = vmatpush1.bf16.msra.mxu0 %v2693
    %3062 = vmatprep.subr.bf16.mxu0 %v2698
    %3063 = vmatpush1.bf16.msra.mxu0 %v2697
    %3064 = vmatprep.subr.bf16.mxu0 0
    %3065 = vmatpush1.bf16.msra.mxu0 0
    %3066 = vmatprep.subr.bf16.mxu0 0
    %3067 = vmatpush1.bf16.msra.mxu0 0
    %3068 = vmatprep.subr.bf16.mxu0 0
    %3069 = vmatpush1.bf16.msra.mxu0 0
    %3070 = vmatprep.subr.bf16.mxu0 0
    %3071 = vmatpush1.bf16.msra.mxu0 0
    %3072 = vmatprep.subr.bf16.mxu0 0
    %3073 = vmatpush1.bf16.msra.mxu0 0
    %3074 = vmatprep.subr.bf16.mxu0 0
    %3075 = vmatpush1.bf16.msra.mxu0 0
    %3076 = vmatprep.subr.bf16.mxu0 0
    %3077 = vmatpush1.bf16.msra.mxu0 0
    %3078 = vmatprep.subr.bf16.mxu0 0
    %3079 = vmatpush1.bf16.msra.mxu0 0
    %3080 = vmatprep.mubr.bf16.mxu0 0
    %3081 = vmatmul.mubr.bf16.gmra.mrb[0].mxu0 %v1558
    %v3082 = vpop.f32.mrb[0].mxu0
    %v3083 = vadd.f32 %v3042, %v3082
    %v3084 = vpop.f32.mrb[0].mxu0
    %v3085 = vadd.f32 %v3044, %v3084
    %v3086 = vpop.f32.mrb[0].mxu0
    %v3087 = vpop.f32.mrb[0].mxu0
    %3088 = vdwg.mxu0
    %3089 = vmatprep.subr.bf16.mxu0 %v2480
    %3090 = vmatpush1.bf16.msra.mxu0 %v2479
    %3091 = vmatprep.subr.bf16.mxu0 %v2484
    %3092 = vmatpush1.bf16.msra.mxu0 %v2483
    %3093 = vmatprep.subr.bf16.mxu0 %v2488
    %3094 = vmatpush1.bf16.msra.mxu0 %v2487
    %3095 = vmatprep.subr.bf16.mxu0 %v2492
    %3096 = vmatpush1.bf16.msra.mxu0 %v2491
    %3097 = vmatprep.subr.bf16.mxu0 %v2496
    %3098 = vmatpush1.bf16.msra.mxu0 %v2495
    %3099 = vmatprep.subr.bf16.mxu0 %v2500
    %3100 = vmatpush1.bf16.msra.mxu0 %v2499
    %3101 = vmatprep.subr.bf16.mxu0 %v2504
    %3102 = vmatpush1.bf16.msra.mxu0 %v2503
    %3103 = vmatprep.subr.bf16.mxu0 %v2508
    %3104 = vmatpush1.bf16.msra.mxu0 %v2507
    %3105 = vmatprep.subr.bf16.mxu0 %v2512
    %3106 = vmatpush1.bf16.msra.mxu0 %v2511
    %3107 = vmatprep.subr.bf16.mxu0 %v2516
    %3108 = vmatpush1.bf16.msra.mxu0 %v2515
    %3109 = vmatprep.subr.bf16.mxu0 %v2520
    %3110 = vmatpush1.bf16.msra.mxu0 %v2519
    %3111 = vmatprep.subr.bf16.mxu0 %v2524
    %3112 = vmatpush1.bf16.msra.mxu0 %v2523
    %3113 = vmatprep.subr.bf16.mxu0 %v2528
    %3114 = vmatpush1.bf16.msra.mxu0 %v2527
    %3115 = vmatprep.subr.bf16.mxu0 %v2532
    %3116 = vmatpush1.bf16.msra.mxu0 %v2531
    %3117 = vmatprep.subr.bf16.mxu0 %v2536
    %3118 = vmatpush1.bf16.msra.mxu0 %v2535
    %3119 = vmatprep.subr.bf16.mxu0 %v2540
    %3120 = vmatpush1.bf16.msra.mxu0 %v2539
    %3121 = vmatprep.mubr.bf16.mxu0 %v1553
    %3122 = vmatmul.mubr.bf16.gmra.mrb[0].mxu0 %v1552
    %v3123 = vpop.f32.mrb[0].mxu0
    %v3124 = vadd.f32 %v1796, %v3123
    %v3125 = vpop.f32.mrb[0].mxu0
    %v3126 = vadd.f32 %v1800, %v3125
    %v3127 = vpop.f32.mrb[0].mxu0
    %v3128 = vpop.f32.mrb[0].mxu0
    %3129 = vdwg.mxu0
    %3130 = vmatprep.subr.bf16.mxu0 %v2544
    %3131 = vmatpush1.bf16.msra.mxu0 %v2543
    %3132 = vmatprep.subr.bf16.mxu0 %v2548
    %3133 = vmatpush1.bf16.msra.mxu0 %v2547
    %3134 = vmatprep.subr.bf16.mxu0 %v2552
    %3135 = vmatpush1.bf16.msra.mxu0 %v2551
    %3136 = vmatprep.subr.bf16.mxu0 %v2556
    %3137 = vmatpush1.bf16.msra.mxu0 %v2555
    %3138 = vmatprep.subr.bf16.mxu0 %v2560
    %3139 = vmatpush1.bf16.msra.mxu0 %v2559
    %3140 = vmatprep.subr.bf16.mxu0 %v2564
    %3141 = vmatpush1.bf16.msra.mxu0 %v2563
    %3142 = vmatprep.subr.bf16.mxu0 %v2568
    %3143 = vmatpush1.bf16.msra.mxu0 %v2567
    %3144 = vmatprep.subr.bf16.mxu0 %v2572
    %3145 = vmatpush1.bf16.msra.mxu0 %v2571
    %3146 = vmatprep.subr.bf16.mxu0 %v2576
    %3147 = vmatpush1.bf16.msra.mxu0 %v2575
    %3148 = vmatprep.subr.bf16.mxu0 %v2580
    %3149 = vmatpush1.bf16.msra.mxu0 %v2579
    %3150 = vmatprep.subr.bf16.mxu0 %v2584
    %3151 = vmatpush1.bf16.msra.mxu0 %v2583
    %3152 = vmatprep.subr.bf16.mxu0 %v2588
    %3153 = vmatpush1.bf16.msra.mxu0 %v2587
    %3154 = vmatprep.subr.bf16.mxu0 %v2592
    %3155 = vmatpush1.bf16.msra.mxu0 %v2591
    %3156 = vmatprep.subr.bf16.mxu0 %v2596
    %3157 = vmatpush1.bf16.msra.mxu0 %v2595
    %3158 = vmatprep.subr.bf16.mxu0 %v2600
    %3159 = vmatpush1.bf16.msra.mxu0 %v2599
    %3160 = vmatprep.subr.bf16.mxu0 %v2604
    %3161 = vmatpush1.bf16.msra.mxu0 %v2603
    %3162 = vmatprep.mubr.bf16.mxu0 %v1555
    %3163 = vmatmul.mubr.bf16.gmra.mrb[0].mxu0 %v1554
    %v3164 = vpop.f32.mrb[0].mxu0
    %v3165 = vadd.f32 %v3124, %v3164
    %v3166 = vpop.f32.mrb[0].mxu0
    %v3167 = vadd.f32 %v3126, %v3166
    %v3168 = vpop.f32.mrb[0].mxu0
    %v3169 = vpop.f32.mrb[0].mxu0
    %3170 = vdwg.mxu0
    %3171 = vmatprep.subr.bf16.mxu0 %v2608
    %3172 = vmatpush1.bf16.msra.mxu0 %v2607
    %3173 = vmatprep.subr.bf16.mxu0 %v2612
    %3174 = vmatpush1.bf16.msra.mxu0 %v2611
    %3175 = vmatprep.subr.bf16.mxu0 %v2616
    %3176 = vmatpush1.bf16.msra.mxu0 %v2615
    %3177 = vmatprep.subr.bf16.mxu0 %v2620
    %3178 = vmatpush1.bf16.msra.mxu0 %v2619
    %3179 = vmatprep.subr.bf16.mxu0 %v2624
    %3180 = vmatpush1.bf16.msra.mxu0 %v2623
    %3181 = vmatprep.subr.bf16.mxu0 %v2628
    %3182 = vmatpush1.bf16.msra.mxu0 %v2627
    %3183 = vmatprep.subr.bf16.mxu0 %v2632
    %3184 = vmatpush1.bf16.msra.mxu0 %v2631
    %3185 = vmatprep.subr.bf16.mxu0 %v2636
    %3186 = vmatpush1.bf16.msra.mxu0 %v2635
    %3187 = vmatprep.subr.bf16.mxu0 %v2640
    %3188 = vmatpush1.bf16.msra.mxu0 %v2639
    %3189 = vmatprep.subr.bf16.mxu0 %v2644
    %3190 = vmatpush1.bf16.msra.mxu0 %v2643
    %3191 = vmatprep.subr.bf16.mxu0 %v2648
    %3192 = vmatpush1.bf16.msra.mxu0 %v2647
    %3193 = vmatprep.subr.bf16.mxu0 %v2652
    %3194 = vmatpush1.bf16.msra.mxu0 %v2651
    %3195 = vmatprep.subr.bf16.mxu0 %v2656
    %3196 = vmatpush1.bf16.msra.mxu0 %v2655
    %3197 = vmatprep.subr.bf16.mxu0 %v2660
    %3198 = vmatpush1.bf16.msra.mxu0 %v2659
    %3199 = vmatprep.subr.bf16.mxu0 %v2664
    %3200 = vmatpush1.bf16.msra.mxu0 %v2663
    %3201 = vmatprep.subr.bf16.mxu0 %v2668
    %3202 = vmatpush1.bf16.msra.mxu0 %v2667
    %3203 = vmatprep.mubr.bf16.mxu0 %v1557
    %3204 = vmatmul.mubr.bf16.gmra.mrb[0].mxu0 %v1556
    %v3205 = vpop.f32.mrb[0].mxu0
    %v3206 = vadd.f32 %v3165, %v3205
    %v3207 = vpop.f32.mrb[0].mxu0
    %v3208 = vadd.f32 %v3167, %v3207
    %v3209 = vpop.f32.mrb[0].mxu0
    %v3210 = vpop.f32.mrb[0].mxu0
    %3211 = vdwg.mxu0
    %3212 = vmatprep.subr.bf16.mxu0 %v2672
    %3213 = vmatpush1.bf16.msra.mxu0 %v2671
    %3214 = vmatprep.subr.bf16.mxu0 %v2676
    %3215 = vmatpush1.bf16.msra.mxu0 %v2675
    %3216 = vmatprep.subr.bf16.mxu0 %v2680
    %3217 = vmatpush1.bf16.msra.mxu0 %v2679
    %3218 = vmatprep.subr.bf16.mxu0 %v2684
    %3219 = vmatpush1.bf16.msra.mxu0 %v2683
    %3220 = vmatprep.subr.bf16.mxu0 %v2688
    %3221 = vmatpush1.bf16.msra.mxu0 %v2687
    %3222 = vmatprep.subr.bf16.mxu0 %v2692
    %3223 = vmatpush1.bf16.msra.mxu0 %v2691
    %3224 = vmatprep.subr.bf16.mxu0 %v2696
    %3225 = vmatpush1.bf16.msra.mxu0 %v2695
    %3226 = vmatprep.subr.bf16.mxu0 %v2700
    %3227 = vmatpush1.bf16.msra.mxu0 %v2699
    %3228 = vmatprep.subr.bf16.mxu0 0
    %3229 = vmatpush1.bf16.msra.mxu0 0
    %3230 = vmatprep.subr.bf16.mxu0 0
    %3231 = vmatpush1.bf16.msra.mxu0 0
    %3232 = vmatprep.subr.bf16.mxu0 0
    %3233 = vmatpush1.bf16.msra.mxu0 0
    %3234 = vmatprep.subr.bf16.mxu0 0
    %3235 = vmatpush1.bf16.msra.mxu0 0
    %3236 = vmatprep.subr.bf16.mxu0 0
    %3237 = vmatpush1.bf16.msra.mxu0 0
    %3238 = vmatprep.subr.bf16.mxu0 0
    %3239 = vmatpush1.bf16.msra.mxu0 0
    %3240 = vmatprep.subr.bf16.mxu0 0
    %3241 = vmatpush1.bf16.msra.mxu0 0
    %3242 = vmatprep.subr.bf16.mxu0 0
    %3243 = vmatpush1.bf16.msra.mxu0 0
    %3244 = vmatprep.mubr.bf16.mxu0 0
    %3245 = vmatmul.mubr.bf16.gmra.mrb[0].mxu0 %v1558
    %v3246 = vpop.f32.mrb[0].mxu0
    %v3247 = vadd.f32 %v3206, %v3246
    %v3248 = vpop.f32.mrb[0].mxu0
    %v3249 = vadd.f32 %v3208, %v3248
    %v3250 = vpop.f32.mrb[0].mxu0
    %v3251 = vpop.f32.mrb[0].mxu0
    %3252 = vdwg.mxu0
    %v3253 = vmax.f32 %v3083, 0.0
    %v3254 = vmax.f32 %v3085, 0.0
    %v3255 = vmax.f32 %v3247, 0.0
    %v3256 = vmax.f32 %v3249, 0.0
    %v3257 = vpack.c.bf16 %v3253, %v3253
    %v3258 = vpack.c.bf16 %v3254, %v3254
    %v3259 = vpack.c.bf16 %v3255, %v3255
    %v3260 = vpack.c.bf16 %v3256, %v3256
    %v3261 = vld [vmem:[%s6] sm:$0xf]
    %v3262 = vld [vmem:[%s6 + $0x4] sm:$0xf]
    %v3263 = vld [vmem:[%s6 + $0x8] sm:$0xf]
    %v3264 = vld [vmem:[%s6 + $0xc] sm:$0xf]
    %v3265 = vld [vmem:[%s6 + $0x10] sm:$0xf]
    %v3266 = vld [vmem:[%s6 + $0x14] sm:$0xf]
    %v3267 = vld [vmem:[%s6 + $0x18] sm:$0xf]
    %v3268 = vld [vmem:[%s6 + $0x1c] sm:$0xf]
    %v3269 = vld [vmem:[%s6 + $0x20] sm:$0xf]
    %v3270 = vld [vmem:[%s6 + $0x24] sm:$0xf]
    %v3271 = vld [vmem:[%s6 + $0x28] sm:$0xf]
    %v3272 = vld [vmem:[%s6 + $0x2c] sm:$0xf]
    %v3273 = vld [vmem:[%s6 + $0x30] sm:$0xf]
    %v3274 = vld [vmem:[%s6 + $0x34] sm:$0xf]
    %v3275 = vld [vmem:[%s6 + $0x38] sm:$0xf]
    %v3276 = vld [vmem:[%s6 + $0x3c] sm:$0xf]
    %v3277 = vld [vmem:[%s6 + $0x40] sm:$0xf]
    %v3278 = vld [vmem:[%s6 + $0x44] sm:$0xf]
    %v3279 = vld [vmem:[%s6 + $0x48] sm:$0xf]
    %v3280 = vld [vmem:[%s6 + $0x4c] sm:$0xf]
    %v3281 = vld [vmem:[%s6 + $0x50] sm:$0xf]
    %v3282 = vld [vmem:[%s6 + $0x54] sm:$0xf]
    %v3283 = vld [vmem:[%s6 + $0x58] sm:$0xf]
    %v3284 = vld [vmem:[%s6 + $0x5c] sm:$0xf]
    %v3285 = vld [vmem:[%s6 + $0x60] sm:$0xf]
    %v3286 = vld [vmem:[%s6 + $0x64] sm:$0xf]
    %v3287 = vld [vmem:[%s6 + $0x68] sm:$0xf]
    %v3288 = vld [vmem:[%s6 + $0x6c] sm:$0xf]
    %v3289 = vld [vmem:[%s6 + $0x70] sm:$0xf]
    %v3290 = vld [vmem:[%s6 + $0x74] sm:$0xf]
    %v3291 = vld [vmem:[%s6 + $0x78] sm:$0xf]
    %v3292 = vld [vmem:[%s6 + $0x7c] sm:$0xf]
    %v3293 = vld [vmem:[%s6 + $0x80] sm:$0xf]
    %v3294 = vld [vmem:[%s6 + $0x84] sm:$0xf]
    %v3295 = vld [vmem:[%s6 + $0x88] sm:$0xf]
    %v3296 = vld [vmem:[%s6 + $0x8c] sm:$0xf]
    %v3297 = vld [vmem:[%s6 + $0x90] sm:$0xf]
    %v3298 = vld [vmem:[%s6 + $0x94] sm:$0xf]
    %v3299 = vld [vmem:[%s6 + $0x98] sm:$0xf]
    %v3300 = vld [vmem:[%s6 + $0x9c] sm:$0xf]
    %v3301 = vld [vmem:[%s6 + $0xa0] sm:$0xf]
    %v3302 = vld [vmem:[%s6 + $0xa4] sm:$0xf]
    %v3303 = vld [vmem:[%s6 + $0xa8] sm:$0xf]
    %v3304 = vld [vmem:[%s6 + $0xac] sm:$0xf]
    %v3305 = vld [vmem:[%s6 + $0xb0] sm:$0xf]
    %v3306 = vld [vmem:[%s6 + $0xb4] sm:$0xf]
    %v3307 = vld [vmem:[%s6 + $0xb8] sm:$0xf]
    %v3308 = vld [vmem:[%s6 + $0xbc] sm:$0xf]
    %v3309 = vld [vmem:[%s6 + $0xc0] sm:$0xf]
    %v3310 = vld [vmem:[%s6 + $0xc4] sm:$0xf]
    %v3311 = vld [vmem:[%s6 + $0xc8] sm:$0xf]
    %v3312 = vld [vmem:[%s6 + $0xcc] sm:$0xf]
    %v3313 = vld [vmem:[%s6 + $0xd0] sm:$0xf]
    %v3314 = vld [vmem:[%s6 + $0xd4] sm:$0xf]
    %v3315 = vld [vmem:[%s6 + $0xd8] sm:$0xf]
    %v3316 = vld [vmem:[%s6 + $0xdc] sm:$0xf]
    %v3317 = vld [vmem:[%s6 + $0xe0] sm:$0xf]
    %v3318 = vld [vmem:[%s6 + $0xe4] sm:$0xf]
    %v3319 = vld [vmem:[%s6 + $0xe8] sm:$0xf]
    %v3320 = vld [vmem:[%s6 + $0xec] sm:$0xf]
    %v3321 = vld [vmem:[%s6 + $0xf0] sm:$0xf]
    %v3322 = vld [vmem:[%s6 + $0xf4] sm:$0xf]
    %v3323 = vld [vmem:[%s6 + $0xf8] sm:$0xf]
    %v3324 = vld [vmem:[%s6 + $0xfc] sm:$0xf]
    %v3325 = vld [vmem:[#allocation7] sm:$0x1]
    %v3327 = vlaneseq
    %v3328 = vshrl.u32 %v3327, 7
    %v3329 = vsub.s32 0, %v3328
    %v3330 = vrot.slane %v3325, %v3329
    %v3396 = vunpack.c.l.b16 %v3261
    %v3397 = vunpack.c.l.b16 %v3262
    %v3398 = vunpack.c.l.b16 %v3263
    %v3399 = vunpack.c.l.b16 %v3264
    %v3400 = vunpack.c.l.b16 %v3265
    %v3401 = vunpack.c.l.b16 %v3266
    %v3402 = vunpack.c.l.b16 %v3267
    %v3403 = vunpack.c.l.b16 %v3268
    %v3404 = vunpack.c.l.b16 %v3269
    %v3405 = vunpack.c.l.b16 %v3270
    %v3406 = vunpack.c.l.b16 %v3271
    %v3407 = vunpack.c.l.b16 %v3272
    %v3408 = vunpack.c.l.b16 %v3273
    %v3409 = vunpack.c.l.b16 %v3274
    %v3410 = vunpack.c.l.b16 %v3275
    %v3411 = vunpack.c.l.b16 %v3276
    %v3412 = vunpack.c.l.b16 %v3277
    %v3413 = vunpack.c.l.b16 %v3278
    %v3414 = vunpack.c.l.b16 %v3279
    %v3415 = vunpack.c.l.b16 %v3280
    %v3416 = vunpack.c.l.b16 %v3281
    %v3417 = vunpack.c.l.b16 %v3282
    %v3418 = vunpack.c.l.b16 %v3283
    %v3419 = vunpack.c.l.b16 %v3284
    %v3420 = vunpack.c.l.b16 %v3285
    %v3421 = vunpack.c.l.b16 %v3286
    %v3422 = vunpack.c.l.b16 %v3287
    %v3423 = vunpack.c.l.b16 %v3288
    %v3424 = vunpack.c.l.b16 %v3289
    %v3425 = vunpack.c.l.b16 %v3290
    %v3426 = vunpack.c.l.b16 %v3291
    %v3427 = vunpack.c.l.b16 %v3292
    %v3428 = vunpack.c.l.b16 %v3293
    %v3429 = vunpack.c.l.b16 %v3294
    %v3430 = vunpack.c.l.b16 %v3295
    %v3431 = vunpack.c.l.b16 %v3296
    %v3432 = vunpack.c.l.b16 %v3297
    %v3433 = vunpack.c.l.b16 %v3298
    %v3434 = vunpack.c.l.b16 %v3299
    %v3435 = vunpack.c.l.b16 %v3300
    %v3436 = vunpack.c.l.b16 %v3301
    %v3437 = vunpack.c.l.b16 %v3302
    %v3438 = vunpack.c.l.b16 %v3303
    %v3439 = vunpack.c.l.b16 %v3304
    %v3440 = vunpack.c.l.b16 %v3305
    %v3441 = vunpack.c.l.b16 %v3306
    %v3442 = vunpack.c.l.b16 %v3307
    %v3443 = vunpack.c.l.b16 %v3308
    %v3444 = vunpack.c.l.b16 %v3309
    %v3445 = vunpack.c.l.b16 %v3310
    %v3446 = vunpack.c.l.b16 %v3311
    %v3447 = vunpack.c.l.b16 %v3312
    %v3448 = vunpack.c.l.b16 %v3313
    %v3449 = vunpack.c.l.b16 %v3314
    %v3450 = vunpack.c.l.b16 %v3315
    %v3451 = vunpack.c.l.b16 %v3316
    %v3452 = vunpack.c.l.b16 %v3317
    %v3453 = vunpack.c.l.b16 %v3318
    %v3454 = vunpack.c.l.b16 %v3319
    %v3455 = vunpack.c.l.b16 %v3320
    %v3456 = vunpack.c.l.b16 %v3321
    %v3457 = vunpack.c.l.b16 %v3322
    %v3458 = vunpack.c.l.b16 %v3323
    %v3459 = vunpack.c.l.b16 %v3324
    %v3460 = vpack.c.b16 %v3397, %v3396
    %v3461 = vpack.c.b16 %v3399, %v3398
    %v3462 = vpack.c.b16 %v3401, %v3400
    %v3463 = vpack.c.b16 %v3403, %v3402
    %v3464 = vpack.c.b16 %v3405, %v3404
    %v3465 = vpack.c.b16 %v3407, %v3406
    %v3466 = vpack.c.b16 %v3409, %v3408
    %v3467 = vpack.c.b16 %v3411, %v3410
    %v3468 = vpack.c.b16 %v3413, %v3412
    %v3469 = vpack.c.b16 %v3415, %v3414
    %v3470 = vpack.c.b16 %v3417, %v3416
    %v3471 = vpack.c.b16 %v3419, %v3418
    %v3472 = vpack.c.b16 %v3421, %v3420
    %v3473 = vpack.c.b16 %v3423, %v3422
    %v3474 = vpack.c.b16 %v3425, %v3424
    %v3475 = vpack.c.b16 %v3427, %v3426
    %v3476 = vpack.c.b16 %v3429, %v3428
    %v3477 = vpack.c.b16 %v3431, %v3430
    %v3478 = vpack.c.b16 %v3433, %v3432
    %v3479 = vpack.c.b16 %v3435, %v3434
    %v3480 = vpack.c.b16 %v3437, %v3436
    %v3481 = vpack.c.b16 %v3439, %v3438
    %v3482 = vpack.c.b16 %v3441, %v3440
    %v3483 = vpack.c.b16 %v3443, %v3442
    %v3484 = vpack.c.b16 %v3445, %v3444
    %v3485 = vpack.c.b16 %v3447, %v3446
    %v3486 = vpack.c.b16 %v3449, %v3448
    %v3487 = vpack.c.b16 %v3451, %v3450
    %v3488 = vpack.c.b16 %v3453, %v3452
    %v3489 = vpack.c.b16 %v3455, %v3454
    %v3490 = vpack.c.b16 %v3457, %v3456
    %v3491 = vpack.c.b16 %v3459, %v3458
    %3524 = vmatprep.subr.bf16.mxu0 0
    %3525 = vmatpush1.bf16.msra.mxu0 %v3460
    %3526 = vmatprep.subr.bf16.mxu0 0
    %3527 = vmatpush1.bf16.msra.mxu0 %v3461
    %3528 = vmatprep.subr.bf16.mxu0 0
    %3529 = vmatpush1.bf16.msra.mxu0 %v3462
    %3530 = vmatprep.subr.bf16.mxu0 0
    %3531 = vmatpush1.bf16.msra.mxu0 %v3463
    %3532 = vmatprep.subr.bf16.mxu0 0
    %3533 = vmatpush1.bf16.msra.mxu0 %v3464
    %3534 = vmatprep.subr.bf16.mxu0 0
    %3535 = vmatpush1.bf16.msra.mxu0 %v3465
    %3536 = vmatprep.subr.bf16.mxu0 0
    %3537 = vmatpush1.bf16.msra.mxu0 %v3466
    %3538 = vmatprep.subr.bf16.mxu0 0
    %3539 = vmatpush1.bf16.msra.mxu0 %v3467
    %3540 = vmatprep.subr.bf16.mxu0 0
    %3541 = vmatpush1.bf16.msra.mxu0 %v3468
    %3542 = vmatprep.subr.bf16.mxu0 0
    %3543 = vmatpush1.bf16.msra.mxu0 %v3469
    %3544 = vmatprep.subr.bf16.mxu0 0
    %3545 = vmatpush1.bf16.msra.mxu0 %v3470
    %3546 = vmatprep.subr.bf16.mxu0 0
    %3547 = vmatpush1.bf16.msra.mxu0 %v3471
    %3548 = vmatprep.subr.bf16.mxu0 0
    %3549 = vmatpush1.bf16.msra.mxu0 %v3472
    %3550 = vmatprep.subr.bf16.mxu0 0
    %3551 = vmatpush1.bf16.msra.mxu0 %v3473
    %3552 = vmatprep.subr.bf16.mxu0 0
    %3553 = vmatpush1.bf16.msra.mxu0 %v3474
    %3554 = vmatprep.subr.bf16.mxu0 0
    %3555 = vmatpush1.bf16.msra.mxu0 %v3475
    %3556 = vmatprep.mubr.bf16.mxu0 %v3258
    %3557 = vmatmul.mubr.bf16.gmra.mrb[0].mxu0 %v3257
    %v3558 = vpop.f32.mrb[0].mxu0
    %v3559 = vadd.f32 %v3330, %v3558
    %v3560 = vpop.f32.mrb[0].mxu0
    %v3561 = vpop.f32.mrb[0].mxu0
    %v3562 = vpop.f32.mrb[0].mxu0
    %3563 = vdwg.mxu0
    %3564 = vmatprep.subr.bf16.mxu0 0
    %3565 = vmatpush1.bf16.msra.mxu0 %v3476
    %3566 = vmatprep.subr.bf16.mxu0 0
    %3567 = vmatpush1.bf16.msra.mxu0 %v3477
    %3568 = vmatprep.subr.bf16.mxu0 0
    %3569 = vmatpush1.bf16.msra.mxu0 %v3478
    %3570 = vmatprep.subr.bf16.mxu0 0
    %3571 = vmatpush1.bf16.msra.mxu0 %v3479
    %3572 = vmatprep.subr.bf16.mxu0 0
    %3573 = vmatpush1.bf16.msra.mxu0 %v3480
    %3574 = vmatprep.subr.bf16.mxu0 0
    %3575 = vmatpush1.bf16.msra.mxu0 %v3481
    %3576 = vmatprep.subr.bf16.mxu0 0
    %3577 = vmatpush1.bf16.msra.mxu0 %v3482
    %3578 = vmatprep.subr.bf16.mxu0 0
    %3579 = vmatpush1.bf16.msra.mxu0 %v3483
    %3580 = vmatprep.subr.bf16.mxu0 0
    %3581 = vmatpush1.bf16.msra.mxu0 %v3484
    %3582 = vmatprep.subr.bf16.mxu0 0
    %3583 = vmatpush1.bf16.msra.mxu0 %v3485
    %3584 = vmatprep.subr.bf16.mxu0 0
    %3585 = vmatpush1.bf16.msra.mxu0 %v3486
    %3586 = vmatprep.subr.bf16.mxu0 0
    %3587 = vmatpush1.bf16.msra.mxu0 %v3487
    %3588 = vmatprep.subr.bf16.mxu0 0
    %3589 = vmatpush1.bf16.msra.mxu0 %v3488
    %3590 = vmatprep.subr.bf16.mxu0 0
    %3591 = vmatpush1.bf16.msra.mxu0 %v3489
    %3592 = vmatprep.subr.bf16.mxu0 0
    %3593 = vmatpush1.bf16.msra.mxu0 %v3490
    %3594 = vmatprep.subr.bf16.mxu0 0
    %3595 = vmatpush1.bf16.msra.mxu0 %v3491
    %3596 = vmatprep.mubr.bf16.mxu0 %v3260
    %3597 = vmatmul.mubr.bf16.gmra.mrb[0].mxu0 %v3259
    %v3598 = vpop.f32.mrb[0].mxu0
    %v3599 = vadd.f32 %v3559, %v3598
    %v3600 = vpop.f32.mrb[0].mxu0
    %v3601 = vpop.f32.mrb[0].mxu0
    %v3602 = vpop.f32.mrb[0].mxu0
    %3603 = vdwg.mxu0
    %v3604 = vmax.f32 %v3599, 0.0
    %v3605 = vpack.c.bf16 %v3604, %v3604
    %v3606 = vld [vmem:[%s8] sm:$0xf]
    %v3607 = vld [vmem:[%s8 + $0x4] sm:$0xf]
    %v3608 = vld [vmem:[%s8 + $0x8] sm:$0xf]
    %v3609 = vld [vmem:[%s8 + $0xc] sm:$0xf]
    %v3610 = vld [vmem:[%s8 + $0x10] sm:$0xf]
    %v3611 = vld [vmem:[%s8 + $0x14] sm:$0xf]
    %v3612 = vld [vmem:[%s8 + $0x18] sm:$0xf]
    %v3613 = vld [vmem:[%s8 + $0x1c] sm:$0xf]
    %v3614 = vld [vmem:[%s8 + $0x20] sm:$0xf]
    %v3615 = vld [vmem:[%s8 + $0x24] sm:$0xf]
    %v3616 = vld [vmem:[%s8 + $0x28] sm:$0xf]
    %v3617 = vld [vmem:[%s8 + $0x2c] sm:$0xf]
    %v3618 = vld [vmem:[%s8 + $0x30] sm:$0xf]
    %v3619 = vld [vmem:[%s8 + $0x34] sm:$0xf]
    %v3620 = vld [vmem:[%s8 + $0x38] sm:$0xf]
    %v3621 = vld [vmem:[%s8 + $0x3c] sm:$0xf]
    %v3622 = vld [vmem:[#allocation9] sm:$0x1]
    %v3624 = vlaneseq
    %v3625 = vshrl.u32 %v3624, 7
    %v3626 = vsub.s32 0, %v3625
    %v3627 = vrot.slane %v3622, %v3626
    %v3645 = vunpack.c.l.b16 %v3606
    %v3646 = vunpack.c.l.b16 %v3607
    %v3647 = vunpack.c.l.b16 %v3608
    %v3648 = vunpack.c.l.b16 %v3609
    %v3649 = vunpack.c.l.b16 %v3610
    %v3650 = vunpack.c.l.b16 %v3611
    %v3651 = vunpack.c.l.b16 %v3612
    %v3652 = vunpack.c.l.b16 %v3613
    %v3653 = vunpack.c.l.b16 %v3614
    %v3654 = vunpack.c.l.b16 %v3615
    %v3655 = vunpack.c.l.b16 %v3616
    %v3656 = vunpack.c.l.b16 %v3617
    %v3657 = vunpack.c.l.b16 %v3618
    %v3658 = vunpack.c.l.b16 %v3619
    %v3659 = vunpack.c.l.b16 %v3620
    %v3660 = vunpack.c.l.b16 %v3621
    %v3661 = vpack.c.b16 %v3646, %v3645
    %v3662 = vpack.c.b16 %v3648, %v3647
    %v3663 = vpack.c.b16 %v3650, %v3649
    %v3664 = vpack.c.b16 %v3652, %v3651
    %v3665 = vpack.c.b16 %v3654, %v3653
    %v3666 = vpack.c.b16 %v3656, %v3655
    %v3667 = vpack.c.b16 %v3658, %v3657
    %v3668 = vpack.c.b16 %v3660, %v3659
    %3677 = vmatprep.subr.bf16.mxu0 0
    %3678 = vmatpush1.bf16.msra.mxu0 %v3661
    %3679 = vmatprep.subr.bf16.mxu0 0
    %3680 = vmatpush1.bf16.msra.mxu0 %v3662
    %3681 = vmatprep.subr.bf16.mxu0 0
    %3682 = vmatpush1.bf16.msra.mxu0 %v3663
    %3683 = vmatprep.subr.bf16.mxu0 0
    %3684 = vmatpush1.bf16.msra.mxu0 %v3664
    %3685 = vmatprep.subr.bf16.mxu0 0
    %3686 = vmatpush1.bf16.msra.mxu0 %v3665
    %3687 = vmatprep.subr.bf16.mxu0 0
    %3688 = vmatpush1.bf16.msra.mxu0 %v3666
    %3689 = vmatprep.subr.bf16.mxu0 0
    %3690 = vmatpush1.bf16.msra.mxu0 %v3667
    %3691 = vmatprep.subr.bf16.mxu0 0
    %3692 = vmatpush1.bf16.msra.mxu0 %v3668
    %3693 = vmatprep.subr.bf16.mxu0 0
    %3694 = vmatpush1.bf16.msra.mxu0 0
    %3695 = vmatprep.subr.bf16.mxu0 0
    %3696 = vmatpush1.bf16.msra.mxu0 0
    %3697 = vmatprep.subr.bf16.mxu0 0
    %3698 = vmatpush1.bf16.msra.mxu0 0
    %3699 = vmatprep.subr.bf16.mxu0 0
    %3700 = vmatpush1.bf16.msra.mxu0 0
    %3701 = vmatprep.subr.bf16.mxu0 0
    %3702 = vmatpush1.bf16.msra.mxu0 0
    %3703 = vmatprep.subr.bf16.mxu0 0
    %3704 = vmatpush1.bf16.msra.mxu0 0
    %3705 = vmatprep.subr.bf16.mxu0 0
    %3706 = vmatpush1.bf16.msra.mxu0 0
    %3707 = vmatprep.subr.bf16.mxu0 0
    %3708 = vmatpush1.bf16.msra.mxu0 0
    %3709 = vmatprep.mubr.bf16.mxu0 0
    %3710 = vmatmul.mubr.bf16.gmra.mrb[0].mxu0 %v3605
    %v3711 = vpop.f32.mrb[0].mxu0
    %v3712 = vadd.f32 %v3627, %v3711
    %v3713 = vpop.f32.mrb[0].mxu0
    %v3714 = vpop.f32.mrb[0].mxu0
    %v3715 = vpop.f32.mrb[0].mxu0
    %3716 = vdwg.mxu0
    %v3717 = vmax.f32 %v3712, 0.0
    %v3718 = vpack.c.bf16 %v3717, %v3717
    %v3719 = vld [vmem:[%s1] sm:$0x3]
    %v3720 = vpack.c.bf16 %v3719, %v3719
    %v3721 = vld [vmem:[%s10] sm:$0xf]
    %v3722 = vld [vmem:[%s10 + $0x4] sm:$0x1]
    %v3723 = vld [vmem:[#allocation10] sm:$0x1]
    %v3725 = vlaneseq
    %v3726 = vshrl.u32 %v3725, 7
    %v3727 = vsub.s32 0, %v3726
    %v3728 = vrot.slane %v3723, %v3727
    %v3732 = vunpack.c.l.b16 %v3721
    %v3733 = vunpack.c.l.b16 %v3722
    %v3734 = vpack.c.b16 %v3733, %v3732
    %vm3735 = vcmask 80896
    %v3737 = vsel %vm3735, %v3720, 0
    %vm3739 = vcmask 1044480
    %v3741 = vsel %vm3739, %v3734, 0
    %3743 = vmatprep.subr.bf16.mxu0 0
    %3744 = vmatpush1.bf16.msra.mxu0 %v3741
    %3745 = vmatprep.subr.bf16.mxu0 0
    %3746 = vmatpush1.bf16.msra.mxu0 0
    %3747 = vmatprep.subr.bf16.mxu0 0
    %3748 = vmatpush1.bf16.msra.mxu0 0
    %3749 = vmatprep.subr.bf16.mxu0 0
    %3750 = vmatpush1.bf16.msra.mxu0 0
    %3751 = vmatprep.subr.bf16.mxu0 0
    %3752 = vmatpush1.bf16.msra.mxu0 0
    %3753 = vmatprep.subr.bf16.mxu0 0
    %3754 = vmatpush1.bf16.msra.mxu0 0
    %3755 = vmatprep.subr.bf16.mxu0 0
    %3756 = vmatpush1.bf16.msra.mxu0 0
    %3757 = vmatprep.subr.bf16.mxu0 0
    %3758 = vmatpush1.bf16.msra.mxu0 0
    %3759 = vmatprep.subr.bf16.mxu0 0
    %3760 = vmatpush1.bf16.msra.mxu0 0
    %3761 = vmatprep.subr.bf16.mxu0 0
    %3762 = vmatpush1.bf16.msra.mxu0 0
    %3763 = vmatprep.subr.bf16.mxu0 0
    %3764 = vmatpush1.bf16.msra.mxu0 0
    %3765 = vmatprep.subr.bf16.mxu0 0
    %3766 = vmatpush1.bf16.msra.mxu0 0
    %3767 = vmatprep.subr.bf16.mxu0 0
    %3768 = vmatpush1.bf16.msra.mxu0 0
    %3769 = vmatprep.subr.bf16.mxu0 0
    %3770 = vmatpush1.bf16.msra.mxu0 0
    %3771 = vmatprep.subr.bf16.mxu0 0
    %3772 = vmatpush1.bf16.msra.mxu0 0
    %3773 = vmatprep.subr.bf16.mxu0 0
    %3774 = vmatpush1.bf16.msra.mxu0 0
    %3775 = vmatprep.mubr.bf16.mxu0 0
    %3776 = vmatmul.mubr.bf16.gmra.mrb[0].mxu0 %v3737
    %v3777 = vpop.f32.mrb[0].mxu0
    %v3778 = vadd.f32 %v3728, %v3777
    %v3779 = vpop.f32.mrb[0].mxu0
    %v3780 = vpop.f32.mrb[0].mxu0
    %v3781 = vpop.f32.mrb[0].mxu0
    %3782 = vdwg.mxu0
    %v3783 = vmax.f32 %v3778, 0.0
    %v3784 = vpack.c.bf16 %v3783, %v3783
    %v3785 = vld [vmem:[%s12] sm:$0xff]
    %v3786 = vld [vmem:[%s12 + $0x8] sm:$0xff]
    %v3787 = vld [vmem:[%s12 + $0x10] sm:$0xff]
    %v3788 = vld [vmem:[%s12 + $0x18] sm:$0xff]
    %v3789 = vld [vmem:[%s12 + $0x20] sm:$0xff]
    %v3790 = vld [vmem:[%s12 + $0x28] sm:$0xff]
    %v3791 = vld [vmem:[%s12 + $0x30] sm:$0xff]
    %v3792 = vld [vmem:[%s12 + $0x38] sm:$0xff]
    %v3793 = vld [vmem:[%s12 + $0x40] sm:$0xff]
    %v3794 = vld [vmem:[%s12 + $0x48] sm:$0xff]
    %v3795 = vld [vmem:[%s12 + $0x50] sm:$0xff]
    %v3796 = vld [vmem:[%s12 + $0x58] sm:$0xff]
    %v3797 = vld [vmem:[%s12 + $0x60] sm:$0xff]
    %v3798 = vld [vmem:[%s12 + $0x68] sm:$0xff]
    %v3799 = vld [vmem:[%s12 + $0x70] sm:$0xff]
    %v3800 = vld [vmem:[%s12 + $0x78] sm:$0xff]
    %v3801 = vld [vmem:[#allocation12] sm:$0x3]
    %v3803 = vlaneseq
    %v3804 = vshrl.u32 %v3803, 7
    %v3805 = vsub.s32 0, %v3804
    %v3806 = vrot.slane %v3801, %v3805
    %v3807 = vlaneseq
    %v3808 = vshrl.u32 %v3807, 7
    %v3809 = vsub.s32 1, %v3808
    %v3810 = vrot.slane %v3801, %v3809
    %v3829 = vunpack.c.l.b16 %v3785
    %v3830 = vunpack.c.h.b16 %v3785
    %v3831 = vunpack.c.l.b16 %v3786
    %v3832 = vunpack.c.h.b16 %v3786
    %v3833 = vunpack.c.l.b16 %v3787
    %v3834 = vunpack.c.h.b16 %v3787
    %v3835 = vunpack.c.l.b16 %v3788
    %v3836 = vunpack.c.h.b16 %v3788
    %v3837 = vunpack.c.l.b16 %v3789
    %v3838 = vunpack.c.h.b16 %v3789
    %v3839 = vunpack.c.l.b16 %v3790
    %v3840 = vunpack.c.h.b16 %v3790
    %v3841 = vunpack.c.l.b16 %v3791
    %v3842 = vunpack.c.h.b16 %v3791
    %v3843 = vunpack.c.l.b16 %v3792
    %v3844 = vunpack.c.h.b16 %v3792
    %v3845 = vunpack.c.l.b16 %v3793
    %v3846 = vunpack.c.h.b16 %v3793
    %v3847 = vunpack.c.l.b16 %v3794
    %v3848 = vunpack.c.h.b16 %v3794
    %v3849 = vunpack.c.l.b16 %v3795
    %v3850 = vunpack.c.h.b16 %v3795
    %v3851 = vunpack.c.l.b16 %v3796
    %v3852 = vunpack.c.h.b16 %v3796
    %v3853 = vunpack.c.l.b16 %v3797
    %v3854 = vunpack.c.h.b16 %v3797
    %v3855 = vunpack.c.l.b16 %v3798
    %v3856 = vunpack.c.h.b16 %v3798
    %v3857 = vunpack.c.l.b16 %v3799
    %v3858 = vunpack.c.h.b16 %v3799
    %v3859 = vunpack.c.l.b16 %v3800
    %v3860 = vunpack.c.h.b16 %v3800
    %v3861 = vpack.c.b16 %v3831, %v3829
    %v3862 = vpack.c.b16 %v3832, %v3830
    %v3863 = vpack.c.b16 %v3835, %v3833
    %v3864 = vpack.c.b16 %v3836, %v3834
    %v3865 = vpack.c.b16 %v3839, %v3837
    %v3866 = vpack.c.b16 %v3840, %v3838
    %v3867 = vpack.c.b16 %v3843, %v3841
    %v3868 = vpack.c.b16 %v3844, %v3842
    %v3869 = vpack.c.b16 %v3847, %v3845
    %v3870 = vpack.c.b16 %v3848, %v3846
    %v3871 = vpack.c.b16 %v3851, %v3849
    %v3872 = vpack.c.b16 %v3852, %v3850
    %v3873 = vpack.c.b16 %v3855, %v3853
    %v3874 = vpack.c.b16 %v3856, %v3854
    %v3875 = vpack.c.b16 %v3859, %v3857
    %v3876 = vpack.c.b16 %v3860, %v3858
    %3893 = vmatprep.subr.bf16.mxu0 %v3862
    %3894 = vmatpush1.bf16.msra.mxu0 %v3861
    %3895 = vmatprep.subr.bf16.mxu0 %v3864
    %3896 = vmatpush1.bf16.msra.mxu0 %v3863
    %3897 = vmatprep.subr.bf16.mxu0 %v3866
    %3898 = vmatpush1.bf16.msra.mxu0 %v3865
    %3899 = vmatprep.subr.bf16.mxu0 %v3868
    %3900 = vmatpush1.bf16.msra.mxu0 %v3867
    %3901 = vmatprep.subr.bf16.mxu0 %v3870
    %3902 = vmatpush1.bf16.msra.mxu0 %v3869
    %3903 = vmatprep.subr.bf16.mxu0 %v3872
    %3904 = vmatpush1.bf16.msra.mxu0 %v3871
    %3905 = vmatprep.subr.bf16.mxu0 %v3874
    %3906 = vmatpush1.bf16.msra.mxu0 %v3873
    %3907 = vmatprep.subr.bf16.mxu0 %v3876
    %3908 = vmatpush1.bf16.msra.mxu0 %v3875
    %3909 = vmatprep.subr.bf16.mxu0 0
    %3910 = vmatpush1.bf16.msra.mxu0 0
    %3911 = vmatprep.subr.bf16.mxu0 0
    %3912 = vmatpush1.bf16.msra.mxu0 0
    %3913 = vmatprep.subr.bf16.mxu0 0
    %3914 = vmatpush1.bf16.msra.mxu0 0
    %3915 = vmatprep.subr.bf16.mxu0 0
    %3916 = vmatpush1.bf16.msra.mxu0 0
    %3917 = vmatprep.subr.bf16.mxu0 0
    %3918 = vmatpush1.bf16.msra.mxu0 0
    %3919 = vmatprep.subr.bf16.mxu0 0
    %3920 = vmatpush1.bf16.msra.mxu0 0
    %3921 = vmatprep.subr.bf16.mxu0 0
    %3922 = vmatpush1.bf16.msra.mxu0 0
    %3923 = vmatprep.subr.bf16.mxu0 0
    %3924 = vmatpush1.bf16.msra.mxu0 0
    %3925 = vmatprep.mubr.bf16.mxu0 0
    %3926 = vmatmul.mubr.bf16.gmra.mrb[0].mxu0 %v3784
    %v3927 = vpop.f32.mrb[0].mxu0
    %v3928 = vadd.f32 %v3806, %v3927
    %v3929 = vpop.f32.mrb[0].mxu0
    %v3930 = vadd.f32 %v3810, %v3929
    %v3931 = vpop.f32.mrb[0].mxu0
    %v3932 = vpop.f32.mrb[0].mxu0
    %3933 = vdwg.mxu0
    %v3934 = vmax.f32 %v3928, 0.0
    %v3935 = vmax.f32 %v3930, 0.0
    %v3936 = vpack.c.bf16 %v3934, %v3934
    %v3937 = vpack.c.bf16 %v3935, %v3935
    %v3938 = vld [vmem:[#allocation13] sm:$0xf]
    %v3939 = vld [vmem:[#allocation13 + $0x4] sm:$0xf]
    %v3940 = vld [vmem:[#allocation13 + $0x8] sm:$0xf]
    %v3941 = vld [vmem:[#allocation13 + $0xc] sm:$0xf]
    %v3942 = vld [vmem:[#allocation13 + $0x10] sm:$0xf]
    %v3943 = vld [vmem:[#allocation13 + $0x14] sm:$0xf]
    %v3944 = vld [vmem:[#allocation13 + $0x18] sm:$0xf]
    %v3945 = vld [vmem:[#allocation13 + $0x1c] sm:$0xf]
    %v3946 = vld [vmem:[#allocation13 + $0x20] sm:$0xf]
    %v3947 = vld [vmem:[#allocation13 + $0x24] sm:$0xf]
    %v3948 = vld [vmem:[#allocation13 + $0x28] sm:$0xf]
    %v3949 = vld [vmem:[#allocation13 + $0x2c] sm:$0xf]
    %v3950 = vld [vmem:[#allocation13 + $0x30] sm:$0xf]
    %v3951 = vld [vmem:[#allocation13 + $0x34] sm:$0xf]
    %v3952 = vld [vmem:[#allocation13 + $0x38] sm:$0xf]
    %v3953 = vld [vmem:[#allocation13 + $0x3c] sm:$0xf]
    %v3954 = vld [vmem:[#allocation13 + $0x40] sm:$0xf]
    %v3955 = vld [vmem:[#allocation13 + $0x44] sm:$0xf]
    %v3956 = vld [vmem:[#allocation13 + $0x48] sm:$0xf]
    %v3957 = vld [vmem:[#allocation13 + $0x4c] sm:$0xf]
    %v3958 = vld [vmem:[#allocation13 + $0x50] sm:$0xf]
    %v3959 = vld [vmem:[#allocation13 + $0x54] sm:$0xf]
    %v3960 = vld [vmem:[#allocation13 + $0x58] sm:$0xf]
    %v3961 = vld [vmem:[#allocation13 + $0x5c] sm:$0xf]
    %v3962 = vld [vmem:[#allocation13 + $0x60] sm:$0xf]
    %v3963 = vld [vmem:[#allocation13 + $0x64] sm:$0xf]
    %v3964 = vld [vmem:[#allocation13 + $0x68] sm:$0xf]
    %v3965 = vld [vmem:[#allocation13 + $0x6c] sm:$0xf]
    %v3966 = vld [vmem:[#allocation13 + $0x70] sm:$0xf]
    %v3967 = vld [vmem:[#allocation13 + $0x74] sm:$0xf]
    %v3968 = vld [vmem:[#allocation13 + $0x78] sm:$0xf]
    %v3969 = vld [vmem:[#allocation13 + $0x7c] sm:$0xf]
    %v3970 = vld [vmem:[#allocation15] sm:$0x1]
    %v3972 = vlaneseq
    %v3973 = vshrl.u32 %v3972, 7
    %v3974 = vsub.s32 0, %v3973
    %v3975 = vrot.slane %v3970, %v3974
    %v4009 = vunpack.c.l.b16 %v3938
    %v4010 = vunpack.c.l.b16 %v3939
    %v4011 = vunpack.c.l.b16 %v3940
    %v4012 = vunpack.c.l.b16 %v3941
    %v4013 = vunpack.c.l.b16 %v3942
    %v4014 = vunpack.c.l.b16 %v3943
    %v4015 = vunpack.c.l.b16 %v3944
    %v4016 = vunpack.c.l.b16 %v3945
    %v4017 = vunpack.c.l.b16 %v3946
    %v4018 = vunpack.c.l.b16 %v3947
    %v4019 = vunpack.c.l.b16 %v3948
    %v4020 = vunpack.c.l.b16 %v3949
    %v4021 = vunpack.c.l.b16 %v3950
    %v4022 = vunpack.c.l.b16 %v3951
    %v4023 = vunpack.c.l.b16 %v3952
    %v4024 = vunpack.c.l.b16 %v3953
    %v4025 = vunpack.c.l.b16 %v3954
    %v4026 = vunpack.c.l.b16 %v3955
    %v4027 = vunpack.c.l.b16 %v3956
    %v4028 = vunpack.c.l.b16 %v3957
    %v4029 = vunpack.c.l.b16 %v3958
    %v4030 = vunpack.c.l.b16 %v3959
    %v4031 = vunpack.c.l.b16 %v3960
    %v4032 = vunpack.c.l.b16 %v3961
    %v4033 = vunpack.c.l.b16 %v3962
    %v4034 = vunpack.c.l.b16 %v3963
    %v4035 = vunpack.c.l.b16 %v3964
    %v4036 = vunpack.c.l.b16 %v3965
    %v4037 = vunpack.c.l.b16 %v3966
    %v4038 = vunpack.c.l.b16 %v3967
    %v4039 = vunpack.c.l.b16 %v3968
    %v4040 = vunpack.c.l.b16 %v3969
    %v4041 = vpack.c.b16 %v4010, %v4009
    %v4042 = vpack.c.b16 %v4012, %v4011
    %v4043 = vpack.c.b16 %v4014, %v4013
    %v4044 = vpack.c.b16 %v4016, %v4015
    %v4045 = vpack.c.b16 %v4018, %v4017
    %v4046 = vpack.c.b16 %v4020, %v4019
    %v4047 = vpack.c.b16 %v4022, %v4021
    %v4048 = vpack.c.b16 %v4024, %v4023
    %v4049 = vpack.c.b16 %v4026, %v4025
    %v4050 = vpack.c.b16 %v4028, %v4027
    %v4051 = vpack.c.b16 %v4030, %v4029
    %v4052 = vpack.c.b16 %v4032, %v4031
    %v4053 = vpack.c.b16 %v4034, %v4033
    %v4054 = vpack.c.b16 %v4036, %v4035
    %v4055 = vpack.c.b16 %v4038, %v4037
    %v4056 = vpack.c.b16 %v4040, %v4039
    %4073 = vmatprep.subr.bf16.mxu0 0
    %4074 = vmatpush1.bf16.msra.mxu0 %v4041
    %4075 = vmatprep.subr.bf16.mxu0 0
    %4076 = vmatpush1.bf16.msra.mxu0 %v4042
    %4077 = vmatprep.subr.bf16.mxu0 0
    %4078 = vmatpush1.bf16.msra.mxu0 %v4043
    %4079 = vmatprep.subr.bf16.mxu0 0
    %4080 = vmatpush1.bf16.msra.mxu0 %v4044
    %4081 = vmatprep.subr.bf16.mxu0 0
    %4082 = vmatpush1.bf16.msra.mxu0 %v4045
    %4083 = vmatprep.subr.bf16.mxu0 0
    %4084 = vmatpush1.bf16.msra.mxu0 %v4046
    %4085 = vmatprep.subr.bf16.mxu0 0
    %4086 = vmatpush1.bf16.msra.mxu0 %v4047
    %4087 = vmatprep.subr.bf16.mxu0 0
    %4088 = vmatpush1.bf16.msra.mxu0 %v4048
    %4089 = vmatprep.subr.bf16.mxu0 0
    %4090 = vmatpush1.bf16.msra.mxu0 %v4049
    %4091 = vmatprep.subr.bf16.mxu0 0
    %4092 = vmatpush1.bf16.msra.mxu0 %v4050
    %4093 = vmatprep.subr.bf16.mxu0 0
    %4094 = vmatpush1.bf16.msra.mxu0 %v4051
    %4095 = vmatprep.subr.bf16.mxu0 0
    %4096 = vmatpush1.bf16.msra.mxu0 %v4052
    %4097 = vmatprep.subr.bf16.mxu0 0
    %4098 = vmatpush1.bf16.msra.mxu0 %v4053
    %4099 = vmatprep.subr.bf16.mxu0 0
    %4100 = vmatpush1.bf16.msra.mxu0 %v4054
    %4101 = vmatprep.subr.bf16.mxu0 0
    %4102 = vmatpush1.bf16.msra.mxu0 %v4055
    %4103 = vmatprep.subr.bf16.mxu0 0
    %4104 = vmatpush1.bf16.msra.mxu0 %v4056
    %4105 = vmatprep.mubr.bf16.mxu0 %v3937
    %4106 = vmatmul.mubr.bf16.gmra.mrb[0].mxu0 %v3936
    %v4107 = vpop.f32.mrb[0].mxu0
    %v4108 = vadd.f32 %v3975, %v4107
    %v4109 = vpop.f32.mrb[0].mxu0
    %v4110 = vpop.f32.mrb[0].mxu0
    %v4111 = vpop.f32.mrb[0].mxu0
    %4112 = vdwg.mxu0
    %v4113 = vmax.f32 %v4108, 0.0
    %v4114 = vpack.c.bf16 %v4113, %v4113
    %v4115 = vld [vmem:[#allocation16] sm:$0xf]
    %v4116 = vld [vmem:[#allocation16 + $0x4] sm:$0xf]
    %v4117 = vld [vmem:[#allocation16 + $0x8] sm:$0xf]
    %v4118 = vld [vmem:[#allocation16 + $0xc] sm:$0xf]
    %v4119 = vld [vmem:[#allocation16 + $0x10] sm:$0xf]
    %v4120 = vld [vmem:[#allocation16 + $0x14] sm:$0xf]
    %v4121 = vld [vmem:[#allocation16 + $0x18] sm:$0xf]
    %v4122 = vld [vmem:[#allocation16 + $0x1c] sm:$0xf]
    %v4123 = vld [vmem:[#allocation16 + $0x20] sm:$0xf]
    %v4124 = vld [vmem:[#allocation16 + $0x24] sm:$0xf]
    %v4125 = vld [vmem:[#allocation16 + $0x28] sm:$0xf]
    %v4126 = vld [vmem:[#allocation16 + $0x2c] sm:$0xf]
    %v4127 = vld [vmem:[#allocation16 + $0x30] sm:$0xf]
    %v4128 = vld [vmem:[#allocation16 + $0x34] sm:$0xf]
    %v4129 = vld [vmem:[#allocation16 + $0x38] sm:$0xf]
    %v4130 = vld [vmem:[#allocation16 + $0x3c] sm:$0xf]
    %v4131 = vld [vmem:[#allocation18] sm:$0x1]
    %v4133 = vlaneseq
    %v4134 = vshrl.u32 %v4133, 7
    %v4135 = vsub.s32 0, %v4134
    %v4136 = vrot.slane %v4131, %v4135
    %v4154 = vunpack.c.l.b16 %v4115
    %v4155 = vunpack.c.l.b16 %v4116
    %v4156 = vunpack.c.l.b16 %v4117
    %v4157 = vunpack.c.l.b16 %v4118
    %v4158 = vunpack.c.l.b16 %v4119
    %v4159 = vunpack.c.l.b16 %v4120
    %v4160 = vunpack.c.l.b16 %v4121
    %v4161 = vunpack.c.l.b16 %v4122
    %v4162 = vunpack.c.l.b16 %v4123
    %v4163 = vunpack.c.l.b16 %v4124
    %v4164 = vunpack.c.l.b16 %v4125
    %v4165 = vunpack.c.l.b16 %v4126
    %v4166 = vunpack.c.l.b16 %v4127
    %v4167 = vunpack.c.l.b16 %v4128
    %v4168 = vunpack.c.l.b16 %v4129
    %v4169 = vunpack.c.l.b16 %v4130
    %v4170 = vpack.c.b16 %v4155, %v4154
    %v4171 = vpack.c.b16 %v4157, %v4156
    %v4172 = vpack.c.b16 %v4159, %v4158
    %v4173 = vpack.c.b16 %v4161, %v4160
    %v4174 = vpack.c.b16 %v4163, %v4162
    %v4175 = vpack.c.b16 %v4165, %v4164
    %v4176 = vpack.c.b16 %v4167, %v4166
    %v4177 = vpack.c.b16 %v4169, %v4168
    %4186 = vmatprep.subr.bf16.mxu0 0
    %4187 = vmatpush1.bf16.msra.mxu0 %v4170
    %4188 = vmatprep.subr.bf16.mxu0 0
    %4189 = vmatpush1.bf16.msra.mxu0 %v4171
    %4190 = vmatprep.subr.bf16.mxu0 0
    %4191 = vmatpush1.bf16.msra.mxu0 %v4172
    %4192 = vmatprep.subr.bf16.mxu0 0
    %4193 = vmatpush1.bf16.msra.mxu0 %v4173
    %4194 = vmatprep.subr.bf16.mxu0 0
    %4195 = vmatpush1.bf16.msra.mxu0 %v4174
    %4196 = vmatprep.subr.bf16.mxu0 0
    %4197 = vmatpush1.bf16.msra.mxu0 %v4175
    %4198 = vmatprep.subr.bf16.mxu0 0
    %4199 = vmatpush1.bf16.msra.mxu0 %v4176
    %4200 = vmatprep.subr.bf16.mxu0 0
    %4201 = vmatpush1.bf16.msra.mxu0 %v4177
    %4202 = vmatprep.subr.bf16.mxu0 0
    %4203 = vmatpush1.bf16.msra.mxu0 0
    %4204 = vmatprep.subr.bf16.mxu0 0
    %4205 = vmatpush1.bf16.msra.mxu0 0
    %4206 = vmatprep.subr.bf16.mxu0 0
    %4207 = vmatpush1.bf16.msra.mxu0 0
    %4208 = vmatprep.subr.bf16.mxu0 0
    %4209 = vmatpush1.bf16.msra.mxu0 0
    %4210 = vmatprep.subr.bf16.mxu0 0
    %4211 = vmatpush1.bf16.msra.mxu0 0
    %4212 = vmatprep.subr.bf16.mxu0 0
    %4213 = vmatpush1.bf16.msra.mxu0 0
    %4214 = vmatprep.subr.bf16.mxu0 0
    %4215 = vmatpush1.bf16.msra.mxu0 0
    %4216 = vmatprep.subr.bf16.mxu0 0
    %4217 = vmatpush1.bf16.msra.mxu0 0
    %4218 = vmatprep.mubr.bf16.mxu0 0
    %4219 = vmatmul.mubr.bf16.gmra.mrb[0].mxu0 %v4114
    %v4220 = vpop.f32.mrb[0].mxu0
    %v4221 = vadd.f32 %v4136, %v4220
    %v4222 = vpop.f32.mrb[0].mxu0
    %v4223 = vpop.f32.mrb[0].mxu0
    %v4224 = vpop.f32.mrb[0].mxu0
    %4225 = vdwg.mxu0
    %v4226 = vmax.f32 %v4221, 0.0
    %v4227 = vpack.c.bf16 %v4226, %v4226
    %v4228 = vld [vmem:[#allocation19] sm:$0xff]
    %v4229 = vld [vmem:[#allocation19 + $0x8] sm:$0xff]
    %v4230 = vld [vmem:[#allocation19 + $0x10] sm:$0xff]
    %v4231 = vld [vmem:[#allocation19 + $0x18] sm:$0xff]
    %v4232 = vld [vmem:[#allocation19 + $0x20] sm:$0xff]
    %v4233 = vld [vmem:[#allocation19 + $0x28] sm:$0xff]
    %v4234 = vld [vmem:[#allocation19 + $0x30] sm:$0xff]
    %v4235 = vld [vmem:[#allocation19 + $0x38] sm:$0xff]
    %v4236 = vld [vmem:[#allocation19 + $0x40] sm:$0xff]
    %v4237 = vld [vmem:[#allocation19 + $0x48] sm:$0xff]
    %v4238 = vld [vmem:[#allocation19 + $0x50] sm:$0xff]
    %v4239 = vld [vmem:[#allocation19 + $0x58] sm:$0xff]
    %v4240 = vld [vmem:[#allocation19 + $0x60] sm:$0xff]
    %v4241 = vld [vmem:[#allocation19 + $0x68] sm:$0xff]
    %v4242 = vld [vmem:[#allocation19 + $0x70] sm:$0xff]
    %v4243 = vld [vmem:[#allocation19 + $0x78] sm:$0xff]
    %v4244 = vld [vmem:[#allocation21] sm:$0xff]
    %v4245 = vld [vmem:[#allocation21 + $0x8] sm:$0xff]
    %v4246 = vld [vmem:[#allocation21 + $0x10] sm:$0xff]
    %v4247 = vld [vmem:[#allocation21 + $0x18] sm:$0xff]
    %v4248 = vld [vmem:[#allocation21 + $0x20] sm:$0xff]
    %v4249 = vld [vmem:[#allocation21 + $0x28] sm:$0xff]
    %v4250 = vld [vmem:[#allocation21 + $0x30] sm:$0xff]
    %v4251 = vld [vmem:[#allocation21 + $0x38] sm:$0xff]
    %v4252 = vld [vmem:[#allocation21 + $0x40] sm:$0xff]
    %v4253 = vld [vmem:[#allocation21 + $0x48] sm:$0xff]
    %v4254 = vld [vmem:[#allocation21 + $0x50] sm:$0xff]
    %v4255 = vld [vmem:[#allocation21 + $0x58] sm:$0xff]
    %v4256 = vld [vmem:[#allocation21 + $0x60] sm:$0xff]
    %v4257 = vld [vmem:[#allocation21 + $0x68] sm:$0xff]
    %v4258 = vld [vmem:[#allocation21 + $0x70] sm:$0xff]
    %v4259 = vld [vmem:[#allocation21 + $0x78] sm:$0xff]
    %v4276 = vunpack.c.l.b16 %v4244
    %v4277 = vunpack.c.h.b16 %v4244
    %v4278 = vunpack.c.l.b16 %v4245
    %v4279 = vunpack.c.h.b16 %v4245
    %v4280 = vunpack.c.l.b16 %v4246
    %v4281 = vunpack.c.h.b16 %v4246
    %v4282 = vunpack.c.l.b16 %v4247
    %v4283 = vunpack.c.h.b16 %v4247
    %v4284 = vunpack.c.l.b16 %v4248
    %v4285 = vunpack.c.h.b16 %v4248
    %v4286 = vunpack.c.l.b16 %v4249
    %v4287 = vunpack.c.h.b16 %v4249
    %v4288 = vunpack.c.l.b16 %v4250
    %v4289 = vunpack.c.h.b16 %v4250
    %v4290 = vunpack.c.l.b16 %v4251
    %v4291 = vunpack.c.h.b16 %v4251
    %v4292 = vunpack.c.l.b16 %v4252
    %v4293 = vunpack.c.h.b16 %v4252
    %v4294 = vunpack.c.l.b16 %v4253
    %v4295 = vunpack.c.h.b16 %v4253
    %v4296 = vunpack.c.l.b16 %v4254
    %v4297 = vunpack.c.h.b16 %v4254
    %v4298 = vunpack.c.l.b16 %v4255
    %v4299 = vunpack.c.h.b16 %v4255
    %v4300 = vunpack.c.l.b16 %v4256
    %v4301 = vunpack.c.h.b16 %v4256
    %v4302 = vunpack.c.l.b16 %v4257
    %v4303 = vunpack.c.h.b16 %v4257
    %v4304 = vunpack.c.l.b16 %v4258
    %v4305 = vunpack.c.h.b16 %v4258
    %v4306 = vunpack.c.l.b16 %v4259
    %v4307 = vunpack.c.h.b16 %v4259
    %v4308 = vpack.c.b16 %v4278, %v4276
    %v4309 = vpack.c.b16 %v4279, %v4277
    %v4310 = vpack.c.b16 %v4282, %v4280
    %v4311 = vpack.c.b16 %v4283, %v4281
    %v4312 = vpack.c.b16 %v4286, %v4284
    %v4313 = vpack.c.b16 %v4287, %v4285
    %v4314 = vpack.c.b16 %v4290, %v4288
    %v4315 = vpack.c.b16 %v4291, %v4289
    %v4316 = vpack.c.b16 %v4294, %v4292
    %v4317 = vpack.c.b16 %v4295, %v4293
    %v4318 = vpack.c.b16 %v4298, %v4296
    %v4319 = vpack.c.b16 %v4299, %v4297
    %v4320 = vpack.c.b16 %v4302, %v4300
    %v4321 = vpack.c.b16 %v4303, %v4301
    %v4322 = vpack.c.b16 %v4306, %v4304
    %v4323 = vpack.c.b16 %v4307, %v4305
    %4340 = vmatprep.subr.bf16.mxu0 %v4309
    %4341 = vmatpush1.bf16.msra.mxu0 %v4308
    %4342 = vmatprep.subr.bf16.mxu0 %v4311
    %4343 = vmatpush1.bf16.msra.mxu0 %v4310
    %4344 = vmatprep.subr.bf16.mxu0 %v4313
    %4345 = vmatpush1.bf16.msra.mxu0 %v4312
    %4346 = vmatprep.subr.bf16.mxu0 %v4315
    %4347 = vmatpush1.bf16.msra.mxu0 %v4314
    %4348 = vmatprep.subr.bf16.mxu0 %v4317
    %4349 = vmatpush1.bf16.msra.mxu0 %v4316
    %4350 = vmatprep.subr.bf16.mxu0 %v4319
    %4351 = vmatpush1.bf16.msra.mxu0 %v4318
    %4352 = vmatprep.subr.bf16.mxu0 %v4321
    %4353 = vmatpush1.bf16.msra.mxu0 %v4320
    %4354 = vmatprep.subr.bf16.mxu0 %v4323
    %4355 = vmatpush1.bf16.msra.mxu0 %v4322
    %4356 = vmatprep.subr.bf16.mxu0 0
    %4357 = vmatpush1.bf16.msra.mxu0 0
    %4358 = vmatprep.subr.bf16.mxu0 0
    %4359 = vmatpush1.bf16.msra.mxu0 0
    %4360 = vmatprep.subr.bf16.mxu0 0
    %4361 = vmatpush1.bf16.msra.mxu0 0
    %4362 = vmatprep.subr.bf16.mxu0 0
    %4363 = vmatpush1.bf16.msra.mxu0 0
    %4364 = vmatprep.subr.bf16.mxu0 0
    %4365 = vmatpush1.bf16.msra.mxu0 0
    %4366 = vmatprep.subr.bf16.mxu0 0
    %4367 = vmatpush1.bf16.msra.mxu0 0
    %4368 = vmatprep.subr.bf16.mxu0 0
    %4369 = vmatpush1.bf16.msra.mxu0 0
    %4370 = vmatprep.subr.bf16.mxu0 0
    %4371 = vmatpush1.bf16.msra.mxu0 0
    %4372 = vmatprep.mubr.bf16.mxu0 0
    %4373 = vmatmul.mubr.bf16.gmra.mrb[0].mxu0 %v4227
    %v4374 = vpop.f32.mrb[0].mxu0
    %v4375 = vadd.f32 0.0, %v4374
    %v4376 = vpop.f32.mrb[0].mxu0
    %v4377 = vadd.f32 0.0, %v4376
    %v4378 = vpop.f32.mrb[0].mxu0
    %v4379 = vpop.f32.mrb[0].mxu0
    %4380 = vdwg.mxu0
    %v4397 = vunpack.c.l.b16 %v4228
    %v4398 = vunpack.c.h.b16 %v4228
    %v4399 = vunpack.c.l.b16 %v4229
    %v4400 = vunpack.c.h.b16 %v4229
    %v4401 = vunpack.c.l.b16 %v4230
    %v4402 = vunpack.c.h.b16 %v4230
    %v4403 = vunpack.c.l.b16 %v4231
    %v4404 = vunpack.c.h.b16 %v4231
    %v4405 = vunpack.c.l.b16 %v4232
    %v4406 = vunpack.c.h.b16 %v4232
    %v4407 = vunpack.c.l.b16 %v4233
    %v4408 = vunpack.c.h.b16 %v4233
    %v4409 = vunpack.c.l.b16 %v4234
    %v4410 = vunpack.c.h.b16 %v4234
    %v4411 = vunpack.c.l.b16 %v4235
    %v4412 = vunpack.c.h.b16 %v4235
    %v4413 = vunpack.c.l.b16 %v4236
    %v4414 = vunpack.c.h.b16 %v4236
    %v4415 = vunpack.c.l.b16 %v4237
    %v4416 = vunpack.c.h.b16 %v4237
    %v4417 = vunpack.c.l.b16 %v4238
    %v4418 = vunpack.c.h.b16 %v4238
    %v4419 = vunpack.c.l.b16 %v4239
    %v4420 = vunpack.c.h.b16 %v4239
    %v4421 = vunpack.c.l.b16 %v4240
    %v4422 = vunpack.c.h.b16 %v4240
    %v4423 = vunpack.c.l.b16 %v4241
    %v4424 = vunpack.c.h.b16 %v4241
    %v4425 = vunpack.c.l.b16 %v4242
    %v4426 = vunpack.c.h.b16 %v4242
    %v4427 = vunpack.c.l.b16 %v4243
    %v4428 = vunpack.c.h.b16 %v4243
    %v4429 = vpack.c.b16 %v4399, %v4397
    %v4430 = vpack.c.b16 %v4400, %v4398
    %v4431 = vpack.c.b16 %v4403, %v4401
    %v4432 = vpack.c.b16 %v4404, %v4402
    %v4433 = vpack.c.b16 %v4407, %v4405
    %v4434 = vpack.c.b16 %v4408, %v4406
    %v4435 = vpack.c.b16 %v4411, %v4409
    %v4436 = vpack.c.b16 %v4412, %v4410
    %v4437 = vpack.c.b16 %v4415, %v4413
    %v4438 = vpack.c.b16 %v4416, %v4414
    %v4439 = vpack.c.b16 %v4419, %v4417
    %v4440 = vpack.c.b16 %v4420, %v4418
    %v4441 = vpack.c.b16 %v4423, %v4421
    %v4442 = vpack.c.b16 %v4424, %v4422
    %v4443 = vpack.c.b16 %v4427, %v4425
    %v4444 = vpack.c.b16 %v4428, %v4426
    %4461 = vmatprep.subr.bf16.mxu0 %v4430
    %4462 = vmatpush1.bf16.msra.mxu0 %v4429
    %4463 = vmatprep.subr.bf16.mxu0 %v4432
    %4464 = vmatpush1.bf16.msra.mxu0 %v4431
    %4465 = vmatprep.subr.bf16.mxu0 %v4434
    %4466 = vmatpush1.bf16.msra.mxu0 %v4433
    %4467 = vmatprep.subr.bf16.mxu0 %v4436
    %4468 = vmatpush1.bf16.msra.mxu0 %v4435
    %4469 = vmatprep.subr.bf16.mxu0 %v4438
    %4470 = vmatpush1.bf16.msra.mxu0 %v4437
    %4471 = vmatprep.subr.bf16.mxu0 %v4440
    %4472 = vmatpush1.bf16.msra.mxu0 %v4439
    %4473 = vmatprep.subr.bf16.mxu0 %v4442
    %4474 = vmatpush1.bf16.msra.mxu0 %v4441
    %4475 = vmatprep.subr.bf16.mxu0 %v4444
    %4476 = vmatpush1.bf16.msra.mxu0 %v4443
    %4477 = vmatprep.subr.bf16.mxu0 0
    %4478 = vmatpush1.bf16.msra.mxu0 0
    %4479 = vmatprep.subr.bf16.mxu0 0
    %4480 = vmatpush1.bf16.msra.mxu0 0
    %4481 = vmatprep.subr.bf16.mxu0 0
    %4482 = vmatpush1.bf16.msra.mxu0 0
    %4483 = vmatprep.subr.bf16.mxu0 0
    %4484 = vmatpush1.bf16.msra.mxu0 0
    %4485 = vmatprep.subr.bf16.mxu0 0
    %4486 = vmatpush1.bf16.msra.mxu0 0
    %4487 = vmatprep.subr.bf16.mxu0 0
    %4488 = vmatpush1.bf16.msra.mxu0 0
    %4489 = vmatprep.subr.bf16.mxu0 0
    %4490 = vmatpush1.bf16.msra.mxu0 0
    %4491 = vmatprep.subr.bf16.mxu0 0
    %4492 = vmatpush1.bf16.msra.mxu0 0
    %4493 = vmatprep.mubr.bf16.mxu0 0
    %4494 = vmatmul.mubr.bf16.gmra.mrb[0].mxu0 %v3718
    %v4495 = vpop.f32.mrb[0].mxu0
    %v4496 = vadd.f32 %v4375, %v4495
    %v4497 = vpop.f32.mrb[0].mxu0
    %v4498 = vadd.f32 %v4377, %v4497
    %v4499 = vpop.f32.mrb[0].mxu0
    %v4500 = vpop.f32.mrb[0].mxu0
    %4501 = vdwg.mxu0
    %v4502 = vld [vmem:[#allocation22] sm:$0x3]
    %v4504 = vlaneseq
    %v4505 = vshrl.u32 %v4504, 7
    %v4506 = vsub.s32 0, %v4505
    %v4507 = vrot.slane %v4502, %v4506
    %v4508 = vlaneseq
    %v4509 = vshrl.u32 %v4508, 7
    %v4510 = vsub.s32 1, %v4509
    %v4511 = vrot.slane %v4502, %v4510
    %v4514 = vadd.f32 %v4496, %v4507
    %v4515 = vadd.f32 %v4498, %v4511
    %v4516 = vmax.f32 %v4514, 0.0
    %v4517 = vmax.f32 %v4515, 0.0
    %v4518 = vpack.c.bf16 %v4516, %v4516
    %v4519 = vpack.c.bf16 %v4517, %v4517
    %v4520 = vld [vmem:[#allocation24] sm:$0xf]
    %v4521 = vld [vmem:[#allocation24 + $0x4] sm:$0xf]
    %v4522 = vld [vmem:[#allocation24 + $0x8] sm:$0xf]
    %v4523 = vld [vmem:[#allocation24 + $0xc] sm:$0xf]
    %v4524 = vld [vmem:[#allocation24 + $0x10] sm:$0xf]
    %v4525 = vld [vmem:[#allocation24 + $0x14] sm:$0xf]
    %v4526 = vld [vmem:[#allocation24 + $0x18] sm:$0xf]
    %v4527 = vld [vmem:[#allocation24 + $0x1c] sm:$0xf]
    %v4528 = vld [vmem:[#allocation24 + $0x20] sm:$0xf]
    %v4529 = vld [vmem:[#allocation24 + $0x24] sm:$0xf]
    %v4530 = vld [vmem:[#allocation24 + $0x28] sm:$0xf]
    %v4531 = vld [vmem:[#allocation24 + $0x2c] sm:$0xf]
    %v4532 = vld [vmem:[#allocation24 + $0x30] sm:$0xf]
    %v4533 = vld [vmem:[#allocation24 + $0x34] sm:$0xf]
    %v4534 = vld [vmem:[#allocation24 + $0x38] sm:$0xf]
    %v4535 = vld [vmem:[#allocation24 + $0x3c] sm:$0xf]
    %v4536 = vld [vmem:[#allocation24 + $0x40] sm:$0xf]
    %v4537 = vld [vmem:[#allocation24 + $0x44] sm:$0xf]
    %v4538 = vld [vmem:[#allocation24 + $0x48] sm:$0xf]
    %v4539 = vld [vmem:[#allocation24 + $0x4c] sm:$0xf]
    %v4540 = vld [vmem:[#allocation24 + $0x50] sm:$0xf]
    %v4541 = vld [vmem:[#allocation24 + $0x54] sm:$0xf]
    %v4542 = vld [vmem:[#allocation24 + $0x58] sm:$0xf]
    %v4543 = vld [vmem:[#allocation24 + $0x5c] sm:$0xf]
    %v4544 = vld [vmem:[#allocation24 + $0x60] sm:$0xf]
    %v4545 = vld [vmem:[#allocation24 + $0x64] sm:$0xf]
    %v4546 = vld [vmem:[#allocation24 + $0x68] sm:$0xf]
    %v4547 = vld [vmem:[#allocation24 + $0x6c] sm:$0xf]
    %v4548 = vld [vmem:[#allocation24 + $0x70] sm:$0xf]
    %v4549 = vld [vmem:[#allocation24 + $0x74] sm:$0xf]
    %v4550 = vld [vmem:[#allocation24 + $0x78] sm:$0xf]
    %v4551 = vld [vmem:[#allocation24 + $0x7c] sm:$0xf]
    %v4552 = vld [vmem:[#allocation25] sm:$0x1]
    %v4554 = vlaneseq
    %v4555 = vshrl.u32 %v4554, 7
    %v4556 = vsub.s32 0, %v4555
    %v4557 = vrot.slane %v4552, %v4556
    %v4591 = vunpack.c.l.b16 %v4520
    %v4592 = vunpack.c.l.b16 %v4521
    %v4593 = vunpack.c.l.b16 %v4522
    %v4594 = vunpack.c.l.b16 %v4523
    %v4595 = vunpack.c.l.b16 %v4524
    %v4596 = vunpack.c.l.b16 %v4525
    %v4597 = vunpack.c.l.b16 %v4526
    %v4598 = vunpack.c.l.b16 %v4527
    %v4599 = vunpack.c.l.b16 %v4528
    %v4600 = vunpack.c.l.b16 %v4529
    %v4601 = vunpack.c.l.b16 %v4530
    %v4602 = vunpack.c.l.b16 %v4531
    %v4603 = vunpack.c.l.b16 %v4532
    %v4604 = vunpack.c.l.b16 %v4533
    %v4605 = vunpack.c.l.b16 %v4534
    %v4606 = vunpack.c.l.b16 %v4535
    %v4607 = vunpack.c.l.b16 %v4536
    %v4608 = vunpack.c.l.b16 %v4537
    %v4609 = vunpack.c.l.b16 %v4538
    %v4610 = vunpack.c.l.b16 %v4539
    %v4611 = vunpack.c.l.b16 %v4540
    %v4612 = vunpack.c.l.b16 %v4541
    %v4613 = vunpack.c.l.b16 %v4542
    %v4614 = vunpack.c.l.b16 %v4543
    %v4615 = vunpack.c.l.b16 %v4544
    %v4616 = vunpack.c.l.b16 %v4545
    %v4617 = vunpack.c.l.b16 %v4546
    %v4618 = vunpack.c.l.b16 %v4547
    %v4619 = vunpack.c.l.b16 %v4548
    %v4620 = vunpack.c.l.b16 %v4549
    %v4621 = vunpack.c.l.b16 %v4550
    %v4622 = vunpack.c.l.b16 %v4551
    %v4623 = vpack.c.b16 %v4592, %v4591
    %v4624 = vpack.c.b16 %v4594, %v4593
    %v4625 = vpack.c.b16 %v4596, %v4595
    %v4626 = vpack.c.b16 %v4598, %v4597
    %v4627 = vpack.c.b16 %v4600, %v4599
    %v4628 = vpack.c.b16 %v4602, %v4601
    %v4629 = vpack.c.b16 %v4604, %v4603
    %v4630 = vpack.c.b16 %v4606, %v4605
    %v4631 = vpack.c.b16 %v4608, %v4607
    %v4632 = vpack.c.b16 %v4610, %v4609
    %v4633 = vpack.c.b16 %v4612, %v4611
    %v4634 = vpack.c.b16 %v4614, %v4613
    %v4635 = vpack.c.b16 %v4616, %v4615
    %v4636 = vpack.c.b16 %v4618, %v4617
    %v4637 = vpack.c.b16 %v4620, %v4619
    %v4638 = vpack.c.b16 %v4622, %v4621
    %4655 = vmatprep.subr.bf16.mxu0 0
    %4656 = vmatpush1.bf16.msra.mxu0 %v4623
    %4657 = vmatprep.subr.bf16.mxu0 0
    %4658 = vmatpush1.bf16.msra.mxu0 %v4624
    %4659 = vmatprep.subr.bf16.mxu0 0
    %4660 = vmatpush1.bf16.msra.mxu0 %v4625
    %4661 = vmatprep.subr.bf16.mxu0 0
    %4662 = vmatpush1.bf16.msra.mxu0 %v4626
    %4663 = vmatprep.subr.bf16.mxu0 0
    %4664 = vmatpush1.bf16.msra.mxu0 %v4627
    %4665 = vmatprep.subr.bf16.mxu0 0
    %4666 = vmatpush1.bf16.msra.mxu0 %v4628
    %4667 = vmatprep.subr.bf16.mxu0 0
    %4668 = vmatpush1.bf16.msra.mxu0 %v4629
    %4669 = vmatprep.subr.bf16.mxu0 0
    %4670 = vmatpush1.bf16.msra.mxu0 %v4630
    %4671 = vmatprep.subr.bf16.mxu0 0
    %4672 = vmatpush1.bf16.msra.mxu0 %v4631
    %4673 = vmatprep.subr.bf16.mxu0 0
    %4674 = vmatpush1.bf16.msra.mxu0 %v4632
    %4675 = vmatprep.subr.bf16.mxu0 0
    %4676 = vmatpush1.bf16.msra.mxu0 %v4633
    %4677 = vmatprep.subr.bf16.mxu0 0
    %4678 = vmatpush1.bf16.msra.mxu0 %v4634
    %4679 = vmatprep.subr.bf16.mxu0 0
    %4680 = vmatpush1.bf16.msra.mxu0 %v4635
    %4681 = vmatprep.subr.bf16.mxu0 0
    %4682 = vmatpush1.bf16.msra.mxu0 %v4636
    %4683 = vmatprep.subr.bf16.mxu0 0
    %4684 = vmatpush1.bf16.msra.mxu0 %v4637
    %4685 = vmatprep.subr.bf16.mxu0 0
    %4686 = vmatpush1.bf16.msra.mxu0 %v4638
    %4687 = vmatprep.mubr.bf16.mxu0 %v4519
    %4688 = vmatmul.mubr.bf16.gmra.mrb[0].mxu0 %v4518
    %v4689 = vpop.f32.mrb[0].mxu0
    %v4690 = vadd.f32 %v4557, %v4689
    %v4691 = vpop.f32.mrb[0].mxu0
    %v4692 = vpop.f32.mrb[0].mxu0
    %v4693 = vpop.f32.mrb[0].mxu0
    %4694 = vdwg.mxu0
    %4695 = vst [vmem:[%s23] sm:$0x3] %v4690
    // Predicated region
    $region158: #{forward.1} parent=1 // pred_check
      _
    $region159: #{forward.1} parent=1 // pred_check_branch
      %4697 = sbr.rel (0) target = $region161
    $region160: #{forward.1} parent=1 // pred_region
      _
    $region161: #{forward.1} parent=1 // pred_fallthru
      _
    // Predicated region
    $region162: #{forward.1} parent=1 // pred_check
      _
    $region163: #{forward.1} parent=1 // pred_check_branch
      %4699 = sbr.rel (0) target = $region165
    $region164: #{forward.1} parent=1 // pred_region
      _
    $region165: #{forward.1} parent=1 // pred_fallthru
      _
    %4700 = vsyncpa [#allocation3], 1
    %4701 = vsyncpa [#allocation5], 1
    %4702 = vsyncpa [#allocation8], 1
    %4703 = vsyncpa [#allocation11], 1
    %4704 = vsyncpa [#allocation14], 1
    %4705 = vsyncpa [#allocation17], 1
    %4706 = vsyncpa [#allocation20], 1
    %4707 = vsyncpa [#allocation23], 1
    %4708 = vsyncpa [#allocation26], 1

</llo_original>
